<compile_context>
chip_gen: v5e
topology: v5e:2x2
jax: 0.10.0
libtpu: 0.0.40
codegen_flags: <defaults>
</compile_context>

<pallas_src>
import functools

import jax
import jax.numpy as jnp
from jax.experimental import pallas as pl
from jax.experimental.pallas import tpu as pltpu


def _gelu(x):
    # Gelu(x) = x * sigmoid(1.702 * x)   (matches the PyTorch reference)
    return x * jax.nn.sigmoid(1.702 * x)


def one_transfer_kernel(x_ref, w1_ref, b1_ref, w2_ref, b2_ref,
                        fw1_ref, fb1_ref, fw2_ref, fb2_ref,
                        out_ref, flat_ref, *, k, d, c1, c2):
    x = x_ref[...]                                        # (Bp, k*d) f32
    xs = [x[:, kk * d:(kk + 1) * d] for kk in range(k)]   # k tiles of (Bp, d)

    # conv1 (kernel (k,1), stride 1) on the VPU: c1*k scalar-broadcast FMAs
    # from compact SMEM weights (no Kron-expanded zero traffic from HBM).
    h1 = []
    for c in range(c1):
        acc = xs[0] * w1_ref[c * k + 0]
        for kk in range(1, k):
            acc = acc + xs[kk] * w1_ref[c * k + kk]
        h1.append(_gelu(acc + b1_ref[c]))

    # conv2 (1x1 channel mix) on the VPU, written channel-major into the
    # (Bp, c2*d) scratch so column index (e*d + dd) matches torch's
    # .view(-1, c2*d) flatten ordering.
    for e in range(c2):
        acc = h1[0] * w2_ref[e * c1 + 0]
        for c in range(1, c1):
            acc = acc + h1[c] * w2_ref[e * c1 + c]
        flat_ref[:, e * d:(e + 1) * d] = acc + b2_ref[e]

    # Gelu after the (implicit) flatten, exactly like torch.
    flat = _gelu(flat_ref[...])                           # (Bp, c2*d)

    hp = jax.lax.Precision.HIGHEST                        # match f32 reference
    z1 = _gelu(jnp.dot(flat, fw1_ref[...],
                       preferred_element_type=jnp.float32, precision=hp)
               + fb1_ref[...])
    out_ref[...] = (jnp.dot(z1, fw2_ref[...],
                            preferred_element_type=jnp.float32, precision=hp)
                    + fb2_ref[...])


def prepare_params(params):
    """One-time weight layout prep. Cache/reuse the result across calls."""
    w1 = params["conv1_w"][:, 0, :, 0].astype(jnp.float32)   # (c1, k)
    w2 = params["conv2_w"][:, :, 0, 0].astype(jnp.float32)   # (c2, c1)
    return {
        "w1_flat": w1.reshape(-1),                            # (c1*k,)  SMEM
        "b1": params["conv1_b"].astype(jnp.float32),          # (c1,)    SMEM
        "w2_flat": w2.reshape(-1),                            # (c2*c1,) SMEM
        "b2": params["conv2_b"].astype(jnp.float32),          # (c2,)    SMEM
        "fw1": params["fc1_w"].T.astype(jnp.float32),          # (c2*D, hid)
        "fb1": params["fc1_b"][None, :].astype(jnp.float32),   # (1, hid)
        "fw2": params["fc2_w"].T.astype(jnp.float32),          # (hid, out)
        "fb2": params["fc2_b"][None, :].astype(jnp.float32),   # (1, out)
        "c1": int(w1.shape[0]),
        "k": int(w1.shape[1]),
        "c2": int(w2.shape[0]),
    }


def one_transfer_forward(x_nchw, prep):
    """x_nchw: (B, 1, kernel, D) float32.  Returns (B, out_dim) float32."""
    B, _, k, D = x_nchw.shape
    assert k == prep["k"]
    c1, c2 = prep["c1"], prep["c2"]
    out_dim = prep["fw2"].shape[1]

    # Per-call work is limited to reshaping / row-padding x (it changes per
    # call anyway); all weight prep lives in prepare_params.
    Bp = max(8, ((B + 7) // 8) * 8)                 # full f32 sublane tile
    x_flat = x_nchw[:, 0, :, :].reshape(B, k * D)   # row layout (k, d)
    if Bp != B:
        x_flat = jnp.pad(x_flat, ((0, Bp - B), (0, 0)))

    vmem = pl.BlockSpec(memory_space=pltpu.MemorySpace.VMEM)
    smem = pl.BlockSpec(memory_space=pltpu.MemorySpace.SMEM)

    kernel = functools.partial(one_transfer_kernel, k=k, d=D, c1=c1, c2=c2)
    # No grid: single invocation, full-array blocks, no pipeline scaffolding.
    out = pl.pallas_call(
        kernel,
        out_shape=jax.ShapeDtypeStruct((Bp, out_dim), jnp.float32),
        in_specs=[vmem, smem, smem, smem, smem, vmem, vmem, vmem, vmem],
        out_specs=vmem,
        scratch_shapes=[pltpu.VMEM((Bp, c2 * D), jnp.float32)],
    )(x_flat, prep["w1_flat"], prep["b1"], prep["w2_flat"], prep["b2"],
      prep["fw1"], prep["fb1"], prep["fw2"], prep["fb2"])
    return out[:B, :]


def one_transfer_ref(x_nchw, params):
    """Pure-JAX reference replicating the PyTorch forward exactly."""
    B = x_nchw.shape[0]
    hp = jax.lax.Precision.HIGHEST
    h1 = (jnp.einsum("bid,ci->bcd", x_nchw[:, 0, :, :],
                     params["conv1_w"][:, 0, :, 0], precision=hp)
          + params["conv1_b"][None, :, None])
    h1 = _gelu(h1)
    h2 = (jnp.einsum("bcd,ec->bed", h1, params["conv2_w"][:, :, 0, 0],
                     precision=hp)
          + params["conv2_b"][None, :, None])
    flat = h2.reshape(B, -1)                    # channel-major, like torch .view
    flat = _gelu(flat)
    z1 = _gelu(jnp.dot(flat, params["fc1_w"].T, precision=hp) + params["fc1_b"])
    return jnp.dot(z1, params["fc2_w"].T, precision=hp) + params["fc2_b"]


def init_params(key, input_dim, out_dim, kernel, c1=10, c2=5, hid=512):
    ks = jax.random.split(key, 8)
    f32 = jnp.float32
    return {
        "conv1_w": 0.2 * jax.random.normal(ks[0], (c1, 1, kernel, 1), f32),
        "conv1_b": 0.1 * jax.random.normal(ks[1], (c1,), f32),
        "conv2_w": 0.2 * jax.random.normal(ks[2], (c2, c1, 1, 1), f32),
        "conv2_b": 0.1 * jax.random.normal(ks[3], (c2,), f32),
        "fc1_w": 0.05 * jax.random.normal(ks[4], (hid, input_dim * c2), f32),
        "fc1_b": 0.05 * jax.random.normal(ks[5], (hid,), f32),
        "fc2_w": 0.05 * jax.random.normal(ks[6], (out_dim, hid), f32),
        "fc2_b": 0.05 * jax.random.normal(ks[7], (out_dim,), f32),
    }


if __name__ == "__main__":
    B, INPUT_DIM, OUT_DIM, KERNEL = 2, 32, 16, 2

    key = jax.random.PRNGKey(0)
    k_param, k_x = jax.random.split(key)
    params = init_params(k_param, INPUT_DIM, OUT_DIM, KERNEL)

    # PyTorch-style NCHW input: (B, 1, kernel, input_dim)
    x = jax.random.normal(k_x, (B, 1, KERNEL, INPUT_DIM), jnp.float32)

    prep = prepare_params(params)            # one-time, reused across calls
    out = one_transfer_forward(x, prep)
    out = jax.block_until_ready(out)

    ref = one_transfer_ref(x, params)
    assert out.shape == (B, OUT_DIM), out.shape
    assert jnp.allclose(out, ref, rtol=2e-4, atol=2e-4), (
        float(jnp.max(jnp.abs(out - ref))))

    print("KERNEL_OK")
</pallas_src>

<mosaic_0001>
module attributes {stable_mosaic.version = 11 : i64} {
  func.func @one_transfer_kernel(%arg0: memref<8x64xf32, #tpu.memory_space<vmem>>, %arg1: memref<20xf32, #tpu.memory_space<smem>>, %arg2: memref<10xf32, #tpu.memory_space<smem>>, %arg3: memref<50xf32, #tpu.memory_space<smem>>, %arg4: memref<5xf32, #tpu.memory_space<smem>>, %arg5: memref<160x512xf32, #tpu.memory_space<vmem>>, %arg6: memref<1x512xf32, #tpu.memory_space<vmem>>, %arg7: memref<512x16xf32, #tpu.memory_space<vmem>>, %arg8: memref<1x16xf32, #tpu.memory_space<vmem>>, %arg9: memref<8x16xf32, #tpu.memory_space<vmem>>, %arg10: memref<8x160xf32, #tpu.memory_space<vmem>>) attributes {dimension_semantics = [], scalar_prefetch = 0 : i64, scratch_operands = 1 : i64, tpu.core_type = #tpu.core_type<tc>} {
    %c0 = arith.constant 0 : index
    %c0_0 = arith.constant 0 : index
    %0 = vector.load %arg0[%c0, %c0_0] : memref<8x64xf32, #tpu.memory_space<vmem>>, vector<8x64xf32>
    %1 = vector.extract_strided_slice %0 {offsets = [0, 0], sizes = [8, 32], strides = [1, 1]} : vector<8x64xf32> to vector<8x32xf32>
    %2 = vector.extract_strided_slice %0 {offsets = [0, 32], sizes = [8, 32], strides = [1, 1]} : vector<8x64xf32> to vector<8x32xf32>
    %c0_1 = arith.constant 0 : index
    %3 = memref.load %arg1[%c0_1] : memref<20xf32, #tpu.memory_space<smem>>
    %4 = vector.broadcast %3 : f32 to vector<8x32xf32>
    %5 = arith.mulf %1, %4 : vector<8x32xf32>
    %c1 = arith.constant 1 : index
    %6 = memref.load %arg1[%c1] : memref<20xf32, #tpu.memory_space<smem>>
    %7 = vector.broadcast %6 : f32 to vector<8x32xf32>
    %8 = arith.mulf %2, %7 : vector<8x32xf32>
    %9 = arith.addf %5, %8 : vector<8x32xf32>
    %c0_2 = arith.constant 0 : index
    %10 = memref.load %arg2[%c0_2] : memref<10xf32, #tpu.memory_space<smem>>
    %11 = vector.broadcast %10 : f32 to vector<8x32xf32>
    %12 = arith.addf %9, %11 : vector<8x32xf32>
    %cst = arith.constant 1.702000e+00 : f32
    %13 = vector.broadcast %cst : f32 to vector<8x32xf32>
    %14 = arith.mulf %13, %12 : vector<8x32xf32>
    %15 = arith.negf %14 : vector<8x32xf32>
    %16 = math.exp %15 : vector<8x32xf32>
    %cst_3 = arith.constant 1.000000e+00 : f32
    %17 = vector.broadcast %cst_3 : f32 to vector<8x32xf32>
    %18 = arith.addf %17, %16 : vector<8x32xf32>
    %19 = arith.divf %17, %18 : vector<8x32xf32>
    %20 = arith.mulf %12, %19 : vector<8x32xf32>
    %c2 = arith.constant 2 : index
    %21 = memref.load %arg1[%c2] : memref<20xf32, #tpu.memory_space<smem>>
    %22 = vector.broadcast %21 : f32 to vector<8x32xf32>
    %23 = arith.mulf %1, %22 : vector<8x32xf32>
    %c3 = arith.constant 3 : index
    %24 = memref.load %arg1[%c3] : memref<20xf32, #tpu.memory_space<smem>>
    %25 = vector.broadcast %24 : f32 to vector<8x32xf32>
    %26 = arith.mulf %2, %25 : vector<8x32xf32>
    %27 = arith.addf %23, %26 : vector<8x32xf32>
    %c1_4 = arith.constant 1 : index
    %28 = memref.load %arg2[%c1_4] : memref<10xf32, #tpu.memory_space<smem>>
    %29 = vector.broadcast %28 : f32 to vector<8x32xf32>
    %30 = arith.addf %27, %29 : vector<8x32xf32>
    %cst_5 = arith.constant 1.702000e+00 : f32
    %31 = vector.broadcast %cst_5 : f32 to vector<8x32xf32>
    %32 = arith.mulf %31, %30 : vector<8x32xf32>
    %33 = arith.negf %32 : vector<8x32xf32>
    %34 = math.exp %33 : vector<8x32xf32>
    %cst_6 = arith.constant 1.000000e+00 : f32
    %35 = vector.broadcast %cst_6 : f32 to vector<8x32xf32>
    %36 = arith.addf %35, %34 : vector<8x32xf32>
    %37 = arith.divf %35, %36 : vector<8x32xf32>
    %38 = arith.mulf %30, %37 : vector<8x32xf32>
    %c4 = arith.constant 4 : index
    %39 = memref.load %arg1[%c4] : memref<20xf32, #tpu.memory_space<smem>>
    %40 = vector.broadcast %39 : f32 to vector<8x32xf32>
    %41 = arith.mulf %1, %40 : vector<8x32xf32>
    %c5 = arith.constant 5 : index
    %42 = memref.load %arg1[%c5] : memref<20xf32, #tpu.memory_space<smem>>
    %43 = vector.broadcast %42 : f32 to vector<8x32xf32>
    %44 = arith.mulf %2, %43 : vector<8x32xf32>
    %45 = arith.addf %41, %44 : vector<8x32xf32>
    %c2_7 = arith.constant 2 : index
    %46 = memref.load %arg2[%c2_7] : memref<10xf32, #tpu.memory_space<smem>>
    %47 = vector.broadcast %46 : f32 to vector<8x32xf32>
    %48 = arith.addf %45, %47 : vector<8x32xf32>
    %cst_8 = arith.constant 1.702000e+00 : f32
    %49 = vector.broadcast %cst_8 : f32 to vector<8x32xf32>
    %50 = arith.mulf %49, %48 : vector<8x32xf32>
    %51 = arith.negf %50 : vector<8x32xf32>
    %52 = math.exp %51 : vector<8x32xf32>
    %cst_9 = arith.constant 1.000000e+00 : f32
    %53 = vector.broadcast %cst_9 : f32 to vector<8x32xf32>
    %54 = arith.addf %53, %52 : vector<8x32xf32>
    %55 = arith.divf %53, %54 : vector<8x32xf32>
    %56 = arith.mulf %48, %55 : vector<8x32xf32>
    %c6 = arith.constant 6 : index
    %57 = memref.load %arg1[%c6] : memref<20xf32, #tpu.memory_space<smem>>
    %58 = vector.broadcast %57 : f32 to vector<8x32xf32>
    %59 = arith.mulf %1, %58 : vector<8x32xf32>
    %c7 = arith.constant 7 : index
    %60 = memref.load %arg1[%c7] : memref<20xf32, #tpu.memory_space<smem>>
    %61 = vector.broadcast %60 : f32 to vector<8x32xf32>
    %62 = arith.mulf %2, %61 : vector<8x32xf32>
    %63 = arith.addf %59, %62 : vector<8x32xf32>
    %c3_10 = arith.constant 3 : index
    %64 = memref.load %arg2[%c3_10] : memref<10xf32, #tpu.memory_space<smem>>
    %65 = vector.broadcast %64 : f32 to vector<8x32xf32>
    %66 = arith.addf %63, %65 : vector<8x32xf32>
    %cst_11 = arith.constant 1.702000e+00 : f32
    %67 = vector.broadcast %cst_11 : f32 to vector<8x32xf32>
    %68 = arith.mulf %67, %66 : vector<8x32xf32>
    %69 = arith.negf %68 : vector<8x32xf32>
    %70 = math.exp %69 : vector<8x32xf32>
    %cst_12 = arith.constant 1.000000e+00 : f32
    %71 = vector.broadcast %cst_12 : f32 to vector<8x32xf32>
    %72 = arith.addf %71, %70 : vector<8x32xf32>
    %73 = arith.divf %71, %72 : vector<8x32xf32>
    %74 = arith.mulf %66, %73 : vector<8x32xf32>
    %c8 = arith.constant 8 : index
    %75 = memref.load %arg1[%c8] : memref<20xf32, #tpu.memory_space<smem>>
    %76 = vector.broadcast %75 : f32 to vector<8x32xf32>
    %77 = arith.mulf %1, %76 : vector<8x32xf32>
    %c9 = arith.constant 9 : index
    %78 = memref.load %arg1[%c9] : memref<20xf32, #tpu.memory_space<smem>>
    %79 = vector.broadcast %78 : f32 to vector<8x32xf32>
    %80 = arith.mulf %2, %79 : vector<8x32xf32>
    %81 = arith.addf %77, %80 : vector<8x32xf32>
    %c4_13 = arith.constant 4 : index
    %82 = memref.load %arg2[%c4_13] : memref<10xf32, #tpu.memory_space<smem>>
    %83 = vector.broadcast %82 : f32 to vector<8x32xf32>
    %84 = arith.addf %81, %83 : vector<8x32xf32>
    %cst_14 = arith.constant 1.702000e+00 : f32
    %85 = vector.broadcast %cst_14 : f32 to vector<8x32xf32>
    %86 = arith.mulf %85, %84 : vector<8x32xf32>
    %87 = arith.negf %86 : vector<8x32xf32>
    %88 = math.exp %87 : vector<8x32xf32>
    %cst_15 = arith.constant 1.000000e+00 : f32
    %89 = vector.broadcast %cst_15 : f32 to vector<8x32xf32>
    %90 = arith.addf %89, %88 : vector<8x32xf32>
    %91 = arith.divf %89, %90 : vector<8x32xf32>
    %92 = arith.mulf %84, %91 : vector<8x32xf32>
    %c10 = arith.constant 10 : index
    %93 = memref.load %arg1[%c10] : memref<20xf32, #tpu.memory_space<smem>>
    %94 = vector.broadcast %93 : f32 to vector<8x32xf32>
    %95 = arith.mulf %1, %94 : vector<8x32xf32>
    %c11 = arith.constant 11 : index
    %96 = memref.load %arg1[%c11] : memref<20xf32, #tpu.memory_space<smem>>
    %97 = vector.broadcast %96 : f32 to vector<8x32xf32>
    %98 = arith.mulf %2, %97 : vector<8x32xf32>
    %99 = arith.addf %95, %98 : vector<8x32xf32>
    %c5_16 = arith.constant 5 : index
    %100 = memref.load %arg2[%c5_16] : memref<10xf32, #tpu.memory_space<smem>>
    %101 = vector.broadcast %100 : f32 to vector<8x32xf32>
    %102 = arith.addf %99, %101 : vector<8x32xf32>
    %cst_17 = arith.constant 1.702000e+00 : f32
    %103 = vector.broadcast %cst_17 : f32 to vector<8x32xf32>
    %104 = arith.mulf %103, %102 : vector<8x32xf32>
    %105 = arith.negf %104 : vector<8x32xf32>
    %106 = math.exp %105 : vector<8x32xf32>
    %cst_18 = arith.constant 1.000000e+00 : f32
    %107 = vector.broadcast %cst_18 : f32 to vector<8x32xf32>
    %108 = arith.addf %107, %106 : vector<8x32xf32>
    %109 = arith.divf %107, %108 : vector<8x32xf32>
    %110 = arith.mulf %102, %109 : vector<8x32xf32>
    %c12 = arith.constant 12 : index
    %111 = memref.load %arg1[%c12] : memref<20xf32, #tpu.memory_space<smem>>
    %112 = vector.broadcast %111 : f32 to vector<8x32xf32>
    %113 = arith.mulf %1, %112 : vector<8x32xf32>
    %c13 = arith.constant 13 : index
    %114 = memref.load %arg1[%c13] : memref<20xf32, #tpu.memory_space<smem>>
    %115 = vector.broadcast %114 : f32 to vector<8x32xf32>
    %116 = arith.mulf %2, %115 : vector<8x32xf32>
    %117 = arith.addf %113, %116 : vector<8x32xf32>
    %c6_19 = arith.constant 6 : index
    %118 = memref.load %arg2[%c6_19] : memref<10xf32, #tpu.memory_space<smem>>
    %119 = vector.broadcast %118 : f32 to vector<8x32xf32>
    %120 = arith.addf %117, %119 : vector<8x32xf32>
    %cst_20 = arith.constant 1.702000e+00 : f32
    %121 = vector.broadcast %cst_20 : f32 to vector<8x32xf32>
    %122 = arith.mulf %121, %120 : vector<8x32xf32>
    %123 = arith.negf %122 : vector<8x32xf32>
    %124 = math.exp %123 : vector<8x32xf32>
    %cst_21 = arith.constant 1.000000e+00 : f32
    %125 = vector.broadcast %cst_21 : f32 to vector<8x32xf32>
    %126 = arith.addf %125, %124 : vector<8x32xf32>
    %127 = arith.divf %125, %126 : vector<8x32xf32>
    %128 = arith.mulf %120, %127 : vector<8x32xf32>
    %c14 = arith.constant 14 : index
    %129 = memref.load %arg1[%c14] : memref<20xf32, #tpu.memory_space<smem>>
    %130 = vector.broadcast %129 : f32 to vector<8x32xf32>
    %131 = arith.mulf %1, %130 : vector<8x32xf32>
    %c15 = arith.constant 15 : index
    %132 = memref.load %arg1[%c15] : memref<20xf32, #tpu.memory_space<smem>>
    %133 = vector.broadcast %132 : f32 to vector<8x32xf32>
    %134 = arith.mulf %2, %133 : vector<8x32xf32>
    %135 = arith.addf %131, %134 : vector<8x32xf32>
    %c7_22 = arith.constant 7 : index
    %136 = memref.load %arg2[%c7_22] : memref<10xf32, #tpu.memory_space<smem>>
    %137 = vector.broadcast %136 : f32 to vector<8x32xf32>
    %138 = arith.addf %135, %137 : vector<8x32xf32>
    %cst_23 = arith.constant 1.702000e+00 : f32
    %139 = vector.broadcast %cst_23 : f32 to vector<8x32xf32>
    %140 = arith.mulf %139, %138 : vector<8x32xf32>
    %141 = arith.negf %140 : vector<8x32xf32>
    %142 = math.exp %141 : vector<8x32xf32>
    %cst_24 = arith.constant 1.000000e+00 : f32
    %143 = vector.broadcast %cst_24 : f32 to vector<8x32xf32>
    %144 = arith.addf %143, %142 : vector<8x32xf32>
    %145 = arith.divf %143, %144 : vector<8x32xf32>
    %146 = arith.mulf %138, %145 : vector<8x32xf32>
    %c16 = arith.constant 16 : index
    %147 = memref.load %arg1[%c16] : memref<20xf32, #tpu.memory_space<smem>>
    %148 = vector.broadcast %147 : f32 to vector<8x32xf32>
    %149 = arith.mulf %1, %148 : vector<8x32xf32>
    %c17 = arith.constant 17 : index
    %150 = memref.load %arg1[%c17] : memref<20xf32, #tpu.memory_space<smem>>
    %151 = vector.broadcast %150 : f32 to vector<8x32xf32>
    %152 = arith.mulf %2, %151 : vector<8x32xf32>
    %153 = arith.addf %149, %152 : vector<8x32xf32>
    %c8_25 = arith.constant 8 : index
    %154 = memref.load %arg2[%c8_25] : memref<10xf32, #tpu.memory_space<smem>>
    %155 = vector.broadcast %154 : f32 to vector<8x32xf32>
    %156 = arith.addf %153, %155 : vector<8x32xf32>
    %cst_26 = arith.constant 1.702000e+00 : f32
    %157 = vector.broadcast %cst_26 : f32 to vector<8x32xf32>
    %158 = arith.mulf %157, %156 : vector<8x32xf32>
    %159 = arith.negf %158 : vector<8x32xf32>
    %160 = math.exp %159 : vector<8x32xf32>
    %cst_27 = arith.constant 1.000000e+00 : f32
    %161 = vector.broadcast %cst_27 : f32 to vector<8x32xf32>
    %162 = arith.addf %161, %160 : vector<8x32xf32>
    %163 = arith.divf %161, %162 : vector<8x32xf32>
    %164 = arith.mulf %156, %163 : vector<8x32xf32>
    %c18 = arith.constant 18 : index
    %165 = memref.load %arg1[%c18] : memref<20xf32, #tpu.memory_space<smem>>
    %166 = vector.broadcast %165 : f32 to vector<8x32xf32>
    %167 = arith.mulf %1, %166 : vector<8x32xf32>
    %c19 = arith.constant 19 : index
    %168 = memref.load %arg1[%c19] : memref<20xf32, #tpu.memory_space<smem>>
    %169 = vector.broadcast %168 : f32 to vector<8x32xf32>
    %170 = arith.mulf %2, %169 : vector<8x32xf32>
    %171 = arith.addf %167, %170 : vector<8x32xf32>
    %c9_28 = arith.constant 9 : index
    %172 = memref.load %arg2[%c9_28] : memref<10xf32, #tpu.memory_space<smem>>
    %173 = vector.broadcast %172 : f32 to vector<8x32xf32>
    %174 = arith.addf %171, %173 : vector<8x32xf32>
    %cst_29 = arith.constant 1.702000e+00 : f32
    %175 = vector.broadcast %cst_29 : f32 to vector<8x32xf32>
    %176 = arith.mulf %175, %174 : vector<8x32xf32>
    %177 = arith.negf %176 : vector<8x32xf32>
    %178 = math.exp %177 : vector<8x32xf32>
    %cst_30 = arith.constant 1.000000e+00 : f32
    %179 = vector.broadcast %cst_30 : f32 to vector<8x32xf32>
    %180 = arith.addf %179, %178 : vector<8x32xf32>
    %181 = arith.divf %179, %180 : vector<8x32xf32>
    %182 = arith.mulf %174, %181 : vector<8x32xf32>
    %c0_31 = arith.constant 0 : index
    %183 = memref.load %arg3[%c0_31] : memref<50xf32, #tpu.memory_space<smem>>
    %184 = vector.broadcast %183 : f32 to vector<8x32xf32>
    %185 = arith.mulf %20, %184 : vector<8x32xf32>
    %c1_32 = arith.constant 1 : index
    %186 = memref.load %arg3[%c1_32] : memref<50xf32, #tpu.memory_space<smem>>
    %187 = vector.broadcast %186 : f32 to vector<8x32xf32>
    %188 = arith.mulf %38, %187 : vector<8x32xf32>
    %189 = arith.addf %185, %188 : vector<8x32xf32>
    %c2_33 = arith.constant 2 : index
    %190 = memref.load %arg3[%c2_33] : memref<50xf32, #tpu.memory_space<smem>>
    %191 = vector.broadcast %190 : f32 to vector<8x32xf32>
    %192 = arith.mulf %56, %191 : vector<8x32xf32>
    %193 = arith.addf %189, %192 : vector<8x32xf32>
    %c3_34 = arith.constant 3 : index
    %194 = memref.load %arg3[%c3_34] : memref<50xf32, #tpu.memory_space<smem>>
    %195 = vector.broadcast %194 : f32 to vector<8x32xf32>
    %196 = arith.mulf %74, %195 : vector<8x32xf32>
    %197 = arith.addf %193, %196 : vector<8x32xf32>
    %c4_35 = arith.constant 4 : index
    %198 = memref.load %arg3[%c4_35] : memref<50xf32, #tpu.memory_space<smem>>
    %199 = vector.broadcast %198 : f32 to vector<8x32xf32>
    %200 = arith.mulf %92, %199 : vector<8x32xf32>
    %201 = arith.addf %197, %200 : vector<8x32xf32>
    %c5_36 = arith.constant 5 : index
    %202 = memref.load %arg3[%c5_36] : memref<50xf32, #tpu.memory_space<smem>>
    %203 = vector.broadcast %202 : f32 to vector<8x32xf32>
    %204 = arith.mulf %110, %203 : vector<8x32xf32>
    %205 = arith.addf %201, %204 : vector<8x32xf32>
    %c6_37 = arith.constant 6 : index
    %206 = memref.load %arg3[%c6_37] : memref<50xf32, #tpu.memory_space<smem>>
    %207 = vector.broadcast %206 : f32 to vector<8x32xf32>
    %208 = arith.mulf %128, %207 : vector<8x32xf32>
    %209 = arith.addf %205, %208 : vector<8x32xf32>
    %c7_38 = arith.constant 7 : index
    %210 = memref.load %arg3[%c7_38] : memref<50xf32, #tpu.memory_space<smem>>
    %211 = vector.broadcast %210 : f32 to vector<8x32xf32>
    %212 = arith.mulf %146, %211 : vector<8x32xf32>
    %213 = arith.addf %209, %212 : vector<8x32xf32>
    %c8_39 = arith.constant 8 : index
    %214 = memref.load %arg3[%c8_39] : memref<50xf32, #tpu.memory_space<smem>>
    %215 = vector.broadcast %214 : f32 to vector<8x32xf32>
    %216 = arith.mulf %164, %215 : vector<8x32xf32>
    %217 = arith.addf %213, %216 : vector<8x32xf32>
    %c9_40 = arith.constant 9 : index
    %218 = memref.load %arg3[%c9_40] : memref<50xf32, #tpu.memory_space<smem>>
    %219 = vector.broadcast %218 : f32 to vector<8x32xf32>
    %220 = arith.mulf %182, %219 : vector<8x32xf32>
    %221 = arith.addf %217, %220 : vector<8x32xf32>
    %c0_41 = arith.constant 0 : index
    %222 = memref.load %arg4[%c0_41] : memref<5xf32, #tpu.memory_space<smem>>
    %223 = vector.broadcast %222 : f32 to vector<8x32xf32>
    %224 = arith.addf %221, %223 : vector<8x32xf32>
    %c0_42 = arith.constant 0 : index
    %c0_43 = arith.constant 0 : index
    %225 = vector.load %arg10[%c0_42, %c0_43] : memref<8x160xf32, #tpu.memory_space<vmem>>, vector<8x32xf32>
    tpu.vector_store %arg10[%c0_42, %c0_43], %224 {strides = array<i32>} : memref<8x160xf32, #tpu.memory_space<vmem>>, vector<8x32xf32>,
    %c10_44 = arith.constant 10 : index
    %226 = memref.load %arg3[%c10_44] : memref<50xf32, #tpu.memory_space<smem>>
    %227 = vector.broadcast %226 : f32 to vector<8x32xf32>
    %228 = arith.mulf %20, %227 : vector<8x32xf32>
    %c11_45 = arith.constant 11 : index
    %229 = memref.load %arg3[%c11_45] : memref<50xf32, #tpu.memory_space<smem>>
    %230 = vector.broadcast %229 : f32 to vector<8x32xf32>
    %231 = arith.mulf %38, %230 : vector<8x32xf32>
    %232 = arith.addf %228, %231 : vector<8x32xf32>
    %c12_46 = arith.constant 12 : index
    %233 = memref.load %arg3[%c12_46] : memref<50xf32, #tpu.memory_space<smem>>
    %234 = vector.broadcast %233 : f32 to vector<8x32xf32>
    %235 = arith.mulf %56, %234 : vector<8x32xf32>
    %236 = arith.addf %232, %235 : vector<8x32xf32>
    %c13_47 = arith.constant 13 : index
    %237 = memref.load %arg3[%c13_47] : memref<50xf32, #tpu.memory_space<smem>>
    %238 = vector.broadcast %237 : f32 to vector<8x32xf32>
    %239 = arith.mulf %74, %238 : vector<8x32xf32>
    %240 = arith.addf %236, %239 : vector<8x32xf32>
    %c14_48 = arith.constant 14 : index
    %241 = memref.load %arg3[%c14_48] : memref<50xf32, #tpu.memory_space<smem>>
    %242 = vector.broadcast %241 : f32 to vector<8x32xf32>
    %243 = arith.mulf %92, %242 : vector<8x32xf32>
    %244 = arith.addf %240, %243 : vector<8x32xf32>
    %c15_49 = arith.constant 15 : index
    %245 = memref.load %arg3[%c15_49] : memref<50xf32, #tpu.memory_space<smem>>
    %246 = vector.broadcast %245 : f32 to vector<8x32xf32>
    %247 = arith.mulf %110, %246 : vector<8x32xf32>
    %248 = arith.addf %244, %247 : vector<8x32xf32>
    %c16_50 = arith.constant 16 : index
    %249 = memref.load %arg3[%c16_50] : memref<50xf32, #tpu.memory_space<smem>>
    %250 = vector.broadcast %249 : f32 to vector<8x32xf32>
    %251 = arith.mulf %128, %250 : vector<8x32xf32>
    %252 = arith.addf %248, %251 : vector<8x32xf32>
    %c17_51 = arith.constant 17 : index
    %253 = memref.load %arg3[%c17_51] : memref<50xf32, #tpu.memory_space<smem>>
    %254 = vector.broadcast %253 : f32 to vector<8x32xf32>
    %255 = arith.mulf %146, %254 : vector<8x32xf32>
    %256 = arith.addf %252, %255 : vector<8x32xf32>
    %c18_52 = arith.constant 18 : index
    %257 = memref.load %arg3[%c18_52] : memref<50xf32, #tpu.memory_space<smem>>
    %258 = vector.broadcast %257 : f32 to vector<8x32xf32>
    %259 = arith.mulf %164, %258 : vector<8x32xf32>
    %260 = arith.addf %256, %259 : vector<8x32xf32>
    %c19_53 = arith.constant 19 : index
    %261 = memref.load %arg3[%c19_53] : memref<50xf32, #tpu.memory_space<smem>>
    %262 = vector.broadcast %261 : f32 to vector<8x32xf32>
    %263 = arith.mulf %182, %262 : vector<8x32xf32>
    %264 = arith.addf %260, %263 : vector<8x32xf32>
    %c1_54 = arith.constant 1 : index
    %265 = memref.load %arg4[%c1_54] : memref<5xf32, #tpu.memory_space<smem>>
    %266 = vector.broadcast %265 : f32 to vector<8x32xf32>
    %267 = arith.addf %264, %266 : vector<8x32xf32>
    %c0_55 = arith.constant 0 : index
    %c32 = arith.constant 32 : index
    %268 = vector.load %arg10[%c0_55, %c32] : memref<8x160xf32, #tpu.memory_space<vmem>>, vector<8x32xf32>
    tpu.vector_store %arg10[%c0_55, %c32], %267 {strides = array<i32>} : memref<8x160xf32, #tpu.memory_space<vmem>>, vector<8x32xf32>,
    %c20 = arith.constant 20 : index
    %269 = memref.load %arg3[%c20] : memref<50xf32, #tpu.memory_space<smem>>
    %270 = vector.broadcast %269 : f32 to vector<8x32xf32>
    %271 = arith.mulf %20, %270 : vector<8x32xf32>
    %c21 = arith.constant 21 : index
    %272 = memref.load %arg3[%c21] : memref<50xf32, #tpu.memory_space<smem>>
    %273 = vector.broadcast %272 : f32 to vector<8x32xf32>
    %274 = arith.mulf %38, %273 : vector<8x32xf32>
    %275 = arith.addf %271, %274 : vector<8x32xf32>
    %c22 = arith.constant 22 : index
    %276 = memref.load %arg3[%c22] : memref<50xf32, #tpu.memory_space<smem>>
    %277 = vector.broadcast %276 : f32 to vector<8x32xf32>
    %278 = arith.mulf %56, %277 : vector<8x32xf32>
    %279 = arith.addf %275, %278 : vector<8x32xf32>
    %c23 = arith.constant 23 : index
    %280 = memref.load %arg3[%c23] : memref<50xf32, #tpu.memory_space<smem>>
    %281 = vector.broadcast %280 : f32 to vector<8x32xf32>
    %282 = arith.mulf %74, %281 : vector<8x32xf32>
    %283 = arith.addf %279, %282 : vector<8x32xf32>
    %c24 = arith.constant 24 : index
    %284 = memref.load %arg3[%c24] : memref<50xf32, #tpu.memory_space<smem>>
    %285 = vector.broadcast %284 : f32 to vector<8x32xf32>
    %286 = arith.mulf %92, %285 : vector<8x32xf32>
    %287 = arith.addf %283, %286 : vector<8x32xf32>
    %c25 = arith.constant 25 : index
    %288 = memref.load %arg3[%c25] : memref<50xf32, #tpu.memory_space<smem>>
    %289 = vector.broadcast %288 : f32 to vector<8x32xf32>
    %290 = arith.mulf %110, %289 : vector<8x32xf32>
    %291 = arith.addf %287, %290 : vector<8x32xf32>
    %c26 = arith.constant 26 : index
    %292 = memref.load %arg3[%c26] : memref<50xf32, #tpu.memory_space<smem>>
    %293 = vector.broadcast %292 : f32 to vector<8x32xf32>
    %294 = arith.mulf %128, %293 : vector<8x32xf32>
    %295 = arith.addf %291, %294 : vector<8x32xf32>
    %c27 = arith.constant 27 : index
    %296 = memref.load %arg3[%c27] : memref<50xf32, #tpu.memory_space<smem>>
    %297 = vector.broadcast %296 : f32 to vector<8x32xf32>
    %298 = arith.mulf %146, %297 : vector<8x32xf32>
    %299 = arith.addf %295, %298 : vector<8x32xf32>
    %c28 = arith.constant 28 : index
    %300 = memref.load %arg3[%c28] : memref<50xf32, #tpu.memory_space<smem>>
    %301 = vector.broadcast %300 : f32 to vector<8x32xf32>
    %302 = arith.mulf %164, %301 : vector<8x32xf32>
    %303 = arith.addf %299, %302 : vector<8x32xf32>
    %c29 = arith.constant 29 : index
    %304 = memref.load %arg3[%c29] : memref<50xf32, #tpu.memory_space<smem>>
    %305 = vector.broadcast %304 : f32 to vector<8x32xf32>
    %306 = arith.mulf %182, %305 : vector<8x32xf32>
    %307 = arith.addf %303, %306 : vector<8x32xf32>
    %c2_56 = arith.constant 2 : index
    %308 = memref.load %arg4[%c2_56] : memref<5xf32, #tpu.memory_space<smem>>
    %309 = vector.broadcast %308 : f32 to vector<8x32xf32>
    %310 = arith.addf %307, %309 : vector<8x32xf32>
    %c0_57 = arith.constant 0 : index
    %c64 = arith.constant 64 : index
    %311 = vector.load %arg10[%c0_57, %c64] : memref<8x160xf32, #tpu.memory_space<vmem>>, vector<8x32xf32>
    tpu.vector_store %arg10[%c0_57, %c64], %310 {strides = array<i32>} : memref<8x160xf32, #tpu.memory_space<vmem>>, vector<8x32xf32>,
    %c30 = arith.constant 30 : index
    %312 = memref.load %arg3[%c30] : memref<50xf32, #tpu.memory_space<smem>>
    %313 = vector.broadcast %312 : f32 to vector<8x32xf32>
    %314 = arith.mulf %20, %313 : vector<8x32xf32>
    %c31 = arith.constant 31 : index
    %315 = memref.load %arg3[%c31] : memref<50xf32, #tpu.memory_space<smem>>
    %316 = vector.broadcast %315 : f32 to vector<8x32xf32>
    %317 = arith.mulf %38, %316 : vector<8x32xf32>
    %318 = arith.addf %314, %317 : vector<8x32xf32>
    %c32_58 = arith.constant 32 : index
    %319 = memref.load %arg3[%c32_58] : memref<50xf32, #tpu.memory_space<smem>>
    %320 = vector.broadcast %319 : f32 to vector<8x32xf32>
    %321 = arith.mulf %56, %320 : vector<8x32xf32>
    %322 = arith.addf %318, %321 : vector<8x32xf32>
    %c33 = arith.constant 33 : index
    %323 = memref.load %arg3[%c33] : memref<50xf32, #tpu.memory_space<smem>>
    %324 = vector.broadcast %323 : f32 to vector<8x32xf32>
    %325 = arith.mulf %74, %324 : vector<8x32xf32>
    %326 = arith.addf %322, %325 : vector<8x32xf32>
    %c34 = arith.constant 34 : index
    %327 = memref.load %arg3[%c34] : memref<50xf32, #tpu.memory_space<smem>>
    %328 = vector.broadcast %327 : f32 to vector<8x32xf32>
    %329 = arith.mulf %92, %328 : vector<8x32xf32>
    %330 = arith.addf %326, %329 : vector<8x32xf32>
    %c35 = arith.constant 35 : index
    %331 = memref.load %arg3[%c35] : memref<50xf32, #tpu.memory_space<smem>>
    %332 = vector.broadcast %331 : f32 to vector<8x32xf32>
    %333 = arith.mulf %110, %332 : vector<8x32xf32>
    %334 = arith.addf %330, %333 : vector<8x32xf32>
    %c36 = arith.constant 36 : index
    %335 = memref.load %arg3[%c36] : memref<50xf32, #tpu.memory_space<smem>>
    %336 = vector.broadcast %335 : f32 to vector<8x32xf32>
    %337 = arith.mulf %128, %336 : vector<8x32xf32>
    %338 = arith.addf %334, %337 : vector<8x32xf32>
    %c37 = arith.constant 37 : index
    %339 = memref.load %arg3[%c37] : memref<50xf32, #tpu.memory_space<smem>>
    %340 = vector.broadcast %339 : f32 to vector<8x32xf32>
    %341 = arith.mulf %146, %340 : vector<8x32xf32>
    %342 = arith.addf %338, %341 : vector<8x32xf32>
    %c38 = arith.constant 38 : index
    %343 = memref.load %arg3[%c38] : memref<50xf32, #tpu.memory_space<smem>>
    %344 = vector.broadcast %343 : f32 to vector<8x32xf32>
    %345 = arith.mulf %164, %344 : vector<8x32xf32>
    %346 = arith.addf %342, %345 : vector<8x32xf32>
    %c39 = arith.constant 39 : index
    %347 = memref.load %arg3[%c39] : memref<50xf32, #tpu.memory_space<smem>>
    %348 = vector.broadcast %347 : f32 to vector<8x32xf32>
    %349 = arith.mulf %182, %348 : vector<8x32xf32>
    %350 = arith.addf %346, %349 : vector<8x32xf32>
    %c3_59 = arith.constant 3 : index
    %351 = memref.load %arg4[%c3_59] : memref<5xf32, #tpu.memory_space<smem>>
    %352 = vector.broadcast %351 : f32 to vector<8x32xf32>
    %353 = arith.addf %350, %352 : vector<8x32xf32>
    %c0_60 = arith.constant 0 : index
    %c96 = arith.constant 96 : index
    %354 = vector.load %arg10[%c0_60, %c96] : memref<8x160xf32, #tpu.memory_space<vmem>>, vector<8x32xf32>
    tpu.vector_store %arg10[%c0_60, %c96], %353 {strides = array<i32>} : memref<8x160xf32, #tpu.memory_space<vmem>>, vector<8x32xf32>,
    %c40 = arith.constant 40 : index
    %355 = memref.load %arg3[%c40] : memref<50xf32, #tpu.memory_space<smem>>
    %356 = vector.broadcast %355 : f32 to vector<8x32xf32>
    %357 = arith.mulf %20, %356 : vector<8x32xf32>
    %c41 = arith.constant 41 : index
    %358 = memref.load %arg3[%c41] : memref<50xf32, #tpu.memory_space<smem>>
    %359 = vector.broadcast %358 : f32 to vector<8x32xf32>
    %360 = arith.mulf %38, %359 : vector<8x32xf32>
    %361 = arith.addf %357, %360 : vector<8x32xf32>
    %c42 = arith.constant 42 : index
    %362 = memref.load %arg3[%c42] : memref<50xf32, #tpu.memory_space<smem>>
    %363 = vector.broadcast %362 : f32 to vector<8x32xf32>
    %364 = arith.mulf %56, %363 : vector<8x32xf32>
    %365 = arith.addf %361, %364 : vector<8x32xf32>
    %c43 = arith.constant 43 : index
    %366 = memref.load %arg3[%c43] : memref<50xf32, #tpu.memory_space<smem>>
    %367 = vector.broadcast %366 : f32 to vector<8x32xf32>
    %368 = arith.mulf %74, %367 : vector<8x32xf32>
    %369 = arith.addf %365, %368 : vector<8x32xf32>
    %c44 = arith.constant 44 : index
    %370 = memref.load %arg3[%c44] : memref<50xf32, #tpu.memory_space<smem>>
    %371 = vector.broadcast %370 : f32 to vector<8x32xf32>
    %372 = arith.mulf %92, %371 : vector<8x32xf32>
    %373 = arith.addf %369, %372 : vector<8x32xf32>
    %c45 = arith.constant 45 : index
    %374 = memref.load %arg3[%c45] : memref<50xf32, #tpu.memory_space<smem>>
    %375 = vector.broadcast %374 : f32 to vector<8x32xf32>
    %376 = arith.mulf %110, %375 : vector<8x32xf32>
    %377 = arith.addf %373, %376 : vector<8x32xf32>
    %c46 = arith.constant 46 : index
    %378 = memref.load %arg3[%c46] : memref<50xf32, #tpu.memory_space<smem>>
    %379 = vector.broadcast %378 : f32 to vector<8x32xf32>
    %380 = arith.mulf %128, %379 : vector<8x32xf32>
    %381 = arith.addf %377, %380 : vector<8x32xf32>
    %c47 = arith.constant 47 : index
    %382 = memref.load %arg3[%c47] : memref<50xf32, #tpu.memory_space<smem>>
    %383 = vector.broadcast %382 : f32 to vector<8x32xf32>
    %384 = arith.mulf %146, %383 : vector<8x32xf32>
    %385 = arith.addf %381, %384 : vector<8x32xf32>
    %c48 = arith.constant 48 : index
    %386 = memref.load %arg3[%c48] : memref<50xf32, #tpu.memory_space<smem>>
    %387 = vector.broadcast %386 : f32 to vector<8x32xf32>
    %388 = arith.mulf %164, %387 : vector<8x32xf32>
    %389 = arith.addf %385, %388 : vector<8x32xf32>
    %c49 = arith.constant 49 : index
    %390 = memref.load %arg3[%c49] : memref<50xf32, #tpu.memory_space<smem>>
    %391 = vector.broadcast %390 : f32 to vector<8x32xf32>
    %392 = arith.mulf %182, %391 : vector<8x32xf32>
    %393 = arith.addf %389, %392 : vector<8x32xf32>
    %c4_61 = arith.constant 4 : index
    %394 = memref.load %arg4[%c4_61] : memref<5xf32, #tpu.memory_space<smem>>
    %395 = vector.broadcast %394 : f32 to vector<8x32xf32>
    %396 = arith.addf %393, %395 : vector<8x32xf32>
    %c0_62 = arith.constant 0 : index
    %c128 = arith.constant 128 : index
    %397 = vector.load %arg10[%c0_62, %c128] : memref<8x160xf32, #tpu.memory_space<vmem>>, vector<8x32xf32>
    tpu.vector_store %arg10[%c0_62, %c128], %396 {strides = array<i32>} : memref<8x160xf32, #tpu.memory_space<vmem>>, vector<8x32xf32>,
    %c0_63 = arith.constant 0 : index
    %c0_64 = arith.constant 0 : index
    %398 = vector.load %arg10[%c0_63, %c0_64] : memref<8x160xf32, #tpu.memory_space<vmem>>, vector<8x160xf32>
    %cst_65 = arith.constant 1.702000e+00 : f32
    %399 = vector.broadcast %cst_65 : f32 to vector<8x160xf32>
    %400 = arith.mulf %399, %398 : vector<8x160xf32>
    %401 = arith.negf %400 : vector<8x160xf32>
    %402 = math.exp %401 : vector<8x160xf32>
    %cst_66 = arith.constant 1.000000e+00 : f32
    %403 = vector.broadcast %cst_66 : f32 to vector<8x160xf32>
    %404 = arith.addf %403, %402 : vector<8x160xf32>
    %405 = arith.divf %403, %404 : vector<8x160xf32>
    %406 = arith.mulf %398, %405 : vector<8x160xf32>
    %c0_67 = arith.constant 0 : index
    %c0_68 = arith.constant 0 : index
    %407 = vector.load %arg5[%c0_67, %c0_68] : memref<160x512xf32, #tpu.memory_space<vmem>>, vector<160x512xf32>
    %cst_69 = arith.constant dense<0.000000e+00> : vector<8x512xf32>
    %408 = tpu.matmul %406, %407, %cst_69 {dimension_numbers = #tpu.dot_dimension_numbers<[1], [0], [0], [1], [0, 0, 1, 1], [], []>, precision = #tpu.contract_precision<fp32>} : vector<8x160xf32>, vector<160x512xf32>, vector<8x512xf32> -> vector<8x512xf32>
    %c0_70 = arith.constant 0 : index
    %c0_71 = arith.constant 0 : index
    %409 = vector.load %arg6[%c0_70, %c0_71] : memref<1x512xf32, #tpu.memory_space<vmem>>, vector<1x512xf32>
    %410 = vector.broadcast %409 : vector<1x512xf32> to vector<8x512xf32>
    %411 = arith.addf %408, %410 : vector<8x512xf32>
    %cst_72 = arith.constant 1.702000e+00 : f32
    %412 = vector.broadcast %cst_72 : f32 to vector<8x512xf32>
    %413 = arith.mulf %412, %411 : vector<8x512xf32>
    %414 = arith.negf %413 : vector<8x512xf32>
    %415 = math.exp %414 : vector<8x512xf32>
    %cst_73 = arith.constant 1.000000e+00 : f32
    %416 = vector.broadcast %cst_73 : f32 to vector<8x512xf32>
    %417 = arith.addf %416, %415 : vector<8x512xf32>
    %418 = arith.divf %416, %417 : vector<8x512xf32>
    %419 = arith.mulf %411, %418 : vector<8x512xf32>
    %c0_74 = arith.constant 0 : index
    %c0_75 = arith.constant 0 : index
    %420 = vector.load %arg7[%c0_74, %c0_75] : memref<512x16xf32, #tpu.memory_space<vmem>>, vector<512x16xf32>
    %cst_76 = arith.constant dense<0.000000e+00> : vector<8x16xf32>
    %421 = tpu.matmul %419, %420, %cst_76 {dimension_numbers = #tpu.dot_dimension_numbers<[1], [0], [0], [1], [0, 0, 1, 1], [], []>, precision = #tpu.contract_precision<fp32>} : vector<8x512xf32>, vector<512x16xf32>, vector<8x16xf32> -> vector<8x16xf32>
    %c0_77 = arith.constant 0 : index
    %c0_78 = arith.constant 0 : index
    %422 = vector.load %arg8[%c0_77, %c0_78] : memref<1x16xf32, #tpu.memory_space<vmem>>, vector<1x16xf32>
    %423 = vector.broadcast %422 : vector<1x16xf32> to vector<8x16xf32>
    %424 = arith.addf %421, %423 : vector<8x16xf32>
    %c0_79 = arith.constant 0 : index
    %c0_80 = arith.constant 0 : index
    %425 = vector.load %arg9[%c0_79, %c0_80] : memref<8x16xf32, #tpu.memory_space<vmem>>, vector<8x16xf32>
    tpu.vector_store %arg9[%c0_79, %c0_80], %424 {strides = array<i32>} : memref<8x16xf32, #tpu.memory_space<vmem>>, vector<8x16xf32>,
    return
  }
}

</mosaic_0001>

<llo_original>
// kernel: tpu_custom_call.1
$region0: #{tpu_custom_call.1}
  #allocation0 [shape = 'u32[]', space=smem, size = 0x4, offset = 0x4, fixed_abs, tag = 'smem constant byte address 0x4 - core index']
  #allocation1 [shape = 'u32[72,128]{1,0:T(1,128)}', space=vmem, size = 0x9000, scoped, tag = 'internal scratch']
  #allocation2 [shape = 'f32[8,160]{1,0:T(8,128)}', space=vmem, size = 0x2000, scoped, tag = 'scratch operand']
  %s0 = inlined_call_operand.vmem [shape: f32[8,64], index: 0, kind: input, shape index: {}]
  %s1 = inlined_call_operand.vmem [shape: f32[20], index: 1, kind: input, shape index: {}]
  %s2 = inlined_call_operand.vmem [shape: f32[10], index: 2, kind: input, shape index: {}]
  %s3 = inlined_call_operand.vmem [shape: f32[50], index: 3, kind: input, shape index: {}]
  %s4 = inlined_call_operand.vmem [shape: f32[5], index: 4, kind: input, shape index: {}]
  %s5 = inlined_call_operand.hbm [shape: f32[160,512], index: 5, kind: input, shape index: {}]
  %s6 = inlined_call_operand.vmem [shape: f32[1,512], index: 6, kind: input, shape index: {}]
  %s7 = inlined_call_operand.vmem [shape: f32[512,16], index: 7, kind: input, shape index: {}]
  %s8 = inlined_call_operand.vmem [shape: f32[1,16], index: 8, kind: input, shape index: {}]
  %s9 = inlined_call_operand.hbm [shape: f32[8,16], index: 9, kind: output, shape index: {}]
  %s10 = sld [smem:[#allocation0]]
  $region66: #{tpu_custom_call.1} parent=0
    _
  %s12 = ssub.s32 1, %s10
  %s13 = scalar_select 0, %s12, %s10
  $region1: #{tpu_custom_call.1} parent=0
    #allocation3 [shape = 'u8[512]{0}', space=smem, size = 0x200, scoped, tag = 'input window, operand 1, single buffered']
    #allocation4 [shape = 's32[1]{0}', space=sflag, size = 0x4, scoped, tag = 'scoped memory for tpu_custom_call.1']
    #allocation5 [shape = 's32[1]{0}', space=sflag, size = 0x4, scoped, tag = 'scoped memory for tpu_custom_call.1']
    #allocation6 [shape = 's32[1]{0}', space=sflag, size = 0x4, scoped, tag = 'scoped memory for tpu_custom_call.1']
    #allocation7 [shape = 'u8[512]{0}', space=smem, size = 0x200, scoped, tag = 'input window, operand 2, single buffered']
    #allocation8 [shape = 's32[1]{0}', space=sflag, size = 0x4, scoped, tag = 'scoped memory for tpu_custom_call.1']
    #allocation9 [shape = 'u8[512]{0}', space=smem, size = 0x200, scoped, tag = 'input window, operand 3, single buffered']
    #allocation10 [shape = 'u8[512]{0}', space=smem, size = 0x200, scoped, tag = 'input window, operand 4, single buffered']
    #allocation11 [shape = 's32[1]{0}', space=sflag, size = 0x4, scoped, tag = 'scoped memory for tpu_custom_call.1']
    #allocation12 [shape = 'u8[327680]{0}', space=vmem, size = 0x50000, scoped, tag = 'input window, operand 5, single buffered']
    #allocation13 [shape = 'u8[4096]{0}', space=vmem, size = 0x1000, scoped, tag = 'output window, operand 0, single buffered']
    %14 = vsyncpa [#allocation6], 0
    %15 = vsyncpa [#allocation8], 0
    %16 = vsyncpa [#allocation11], 0
    %17 = vsyncpa [#allocation4], 0
    %18 = vsyncpa [#allocation5], 0
    // Predicated region
    $region2: #{tpu_custom_call.1} parent=1 // pred_check
      _
    $region3: #{tpu_custom_call.1} parent=1 // pred_check_branch
      %20 = sbr.rel (0) target = $region5
    $region4: #{tpu_custom_call.1} parent=1 // pred_region
      _
    $region5: #{tpu_custom_call.1} parent=1 // pred_fallthru
      _
    // Predicated region
    $region6: #{tpu_custom_call.1} parent=1 // pred_check
      _
    $region7: #{tpu_custom_call.1} parent=1 // pred_check_branch
      %22 = sbr.rel (0) target = $region9
    $region8: #{tpu_custom_call.1} parent=1 // pred_region
      %24 = vsyncadd [#allocation6], 0
      %s26 = sshll.u32 %s1, 4
      %s27 = int_to_ptr.vmem [resolvable:$true] %s26
      %29 = dma.vmem_to_smem %s27, 16, [#allocation3], [#allocation6]
    $region9: #{tpu_custom_call.1} parent=1 // pred_fallthru
      _
    // Predicated region
    $region10: #{tpu_custom_call.1} parent=1 // pred_check
      _
    $region11: #{tpu_custom_call.1} parent=1 // pred_check_branch
      %31 = sbr.rel (0) target = $region13
    $region12: #{tpu_custom_call.1} parent=1 // pred_region
      %33 = vsyncadd [#allocation8], 0
      %s35 = sshll.u32 %s2, 4
      %s36 = int_to_ptr.vmem [resolvable:$true] %s35
      %38 = dma.vmem_to_smem %s36, 16, [#allocation7], [#allocation8]
    $region13: #{tpu_custom_call.1} parent=1 // pred_fallthru
      _
    // Predicated region
    $region14: #{tpu_custom_call.1} parent=1 // pred_check
      _
    $region15: #{tpu_custom_call.1} parent=1 // pred_check_branch
      %40 = sbr.rel (0) target = $region17
    $region16: #{tpu_custom_call.1} parent=1 // pred_region
      %42 = vsyncadd [#allocation8], 0
      %s44 = sshll.u32 %s3, 4
      %s45 = int_to_ptr.vmem [resolvable:$true] %s44
      %47 = dma.vmem_to_smem %s45, 16, [#allocation9], [#allocation8]
    $region17: #{tpu_custom_call.1} parent=1 // pred_fallthru
      _
    // Predicated region
    $region18: #{tpu_custom_call.1} parent=1 // pred_check
      _
    $region19: #{tpu_custom_call.1} parent=1 // pred_check_branch
      %49 = sbr.rel (0) target = $region21
    $region20: #{tpu_custom_call.1} parent=1 // pred_region
      %51 = vsyncadd [#allocation11], 0
      %s53 = sshll.u32 %s4, 4
      %s54 = int_to_ptr.vmem [resolvable:$true] %s53
      %56 = dma.vmem_to_smem %s54, 16, [#allocation10], [#allocation11]
    $region21: #{tpu_custom_call.1} parent=1 // pred_fallthru
      _
    // Predicated region
    $region22: #{tpu_custom_call.1} parent=1 // pred_check
      _
    $region23: #{tpu_custom_call.1} parent=1 // pred_check_branch
      %58 = sbr.rel (0) target = $region25
    $region24: #{tpu_custom_call.1} parent=1 // pred_region
      %60 = vsyncadd [#allocation4], 0
      %s61 = sshll.u32 %s5, 4
      %s62 = int_to_ptr.hbm [resolvable:$true] %s61
      %s63 = sshll.u32 [#allocation12], 4
      %s64 = int_to_ptr.vmem [resolvable:$true] %s63
      %69 = dma.hbm_to_vmem [thread:$0]  %s62, 10240, %s64, [#allocation4], 512, 512, 32
    $region25: #{tpu_custom_call.1} parent=1 // pred_fallthru
      _
    // Predicated region
    $region26: #{tpu_custom_call.1} parent=1 // pred_check
      _
    $region27: #{tpu_custom_call.1} parent=1 // pred_check_branch
      %71 = sbr.rel (0) target = $region29
    $region28: #{tpu_custom_call.1} parent=1 // pred_region
      _
    $region29: #{tpu_custom_call.1} parent=1 // pred_fallthru
      _
    // Predicated region
    $region30: #{tpu_custom_call.1} parent=1 // pred_check
      _
    $region31: #{tpu_custom_call.1} parent=1 // pred_check_branch
      %73 = sbr.rel (0) target = $region33
    $region32: #{tpu_custom_call.1} parent=1 // pred_region
      _
    $region33: #{tpu_custom_call.1} parent=1 // pred_fallthru
      _
    // Predicated region
    $region34: #{tpu_custom_call.1} parent=1 // pred_check
      _
    $region35: #{tpu_custom_call.1} parent=1 // pred_check_branch
      %75 = sbr.rel (0) target = $region37
    $region36: #{tpu_custom_call.1} parent=1 // pred_region
      _
    $region37: #{tpu_custom_call.1} parent=1 // pred_fallthru
      _
    // Predicated region
    $region38: #{tpu_custom_call.1} parent=1 // pred_check
      _
    $region39: #{tpu_custom_call.1} parent=1 // pred_check_branch
      %77 = sbr.rel (0) target = $region41
    $region40: #{tpu_custom_call.1} parent=1 // pred_region
      %79 = dma.done [#allocation6], 16
    $region41: #{tpu_custom_call.1} parent=1 // pred_fallthru
      _
    // Predicated region
    $region42: #{tpu_custom_call.1} parent=1 // pred_check
      _
    $region43: #{tpu_custom_call.1} parent=1 // pred_check_branch
      %81 = sbr.rel (0) target = $region45
    $region44: #{tpu_custom_call.1} parent=1 // pred_region
      %83 = dma.done [#allocation8], 16
    $region45: #{tpu_custom_call.1} parent=1 // pred_fallthru
      _
    // Predicated region
    $region46: #{tpu_custom_call.1} parent=1 // pred_check
      _
    $region47: #{tpu_custom_call.1} parent=1 // pred_check_branch
      %85 = sbr.rel (0) target = $region49
    $region48: #{tpu_custom_call.1} parent=1 // pred_region
      %87 = dma.done [#allocation8], 16
    $region49: #{tpu_custom_call.1} parent=1 // pred_fallthru
      _
    // Predicated region
    $region50: #{tpu_custom_call.1} parent=1 // pred_check
      _
    $region51: #{tpu_custom_call.1} parent=1 // pred_check_branch
      %89 = sbr.rel (0) target = $region53
    $region52: #{tpu_custom_call.1} parent=1 // pred_region
      %91 = dma.done [#allocation11], 16
    $region53: #{tpu_custom_call.1} parent=1 // pred_fallthru
      _
    // Predicated region
    $region54: #{tpu_custom_call.1} parent=1 // pred_check
      _
    $region55: #{tpu_custom_call.1} parent=1 // pred_check_branch
      %93 = sbr.rel (0) target = $region57
    $region56: #{tpu_custom_call.1} parent=1 // pred_region
      %95 = dma.done [#allocation4], 10240
    $region57: #{tpu_custom_call.1} parent=1 // pred_fallthru
      _
    %96 = sfence
    %v97 = vld [vmem:[%s0] sm:$0xff]
    %s98 = sld [smem:[#allocation3]]
    %v99 = vstv %s98
    %v100 = vmul.f32 %v97, %v99
    %s101 = sld [smem:[#allocation3 + $0x1]]
    %v102 = vstv %s101
    %v103 = vmul.f32 %v97, %v102
    %105 = vrot.lane.b32.xlu0 %v103, 96
    %v106 = vpop.permute.xlu0 %105
    %v108 = vadd.f32 %v100, %v106
    %s109 = sld [smem:[#allocation7]]
    %v110 = vstv %s109
    %v111 = vadd.f32 %v108, %v110
    %v112 = vmul.f32 %v111, 1.702
    %v113 = vxor.u32 %v112, 2147483648
    %v114 = vmul.f32 %v113, 1.442695
    %v115 = vpow.pop %v114
    %v116 = vadd.f32 %v115, 1.0
    %v117 = vrcp.pop %v116
    %v118 = vmul.f32 %v116, %v117
    %v119 = vsub.f32 1.0, %v118
    %v120 = vmul.f32 %v117, %v119
    %v121 = vadd.f32 %v117, %v120
    %vm122 = vweird.f32 %v116
    %vm123 = vweird.f32 %v117
    %vm124 = vmor %vm122, %vm123
    %v125 = vsel %vm124, %v117, %v121
    %v126 = vand.u32 2147483647, %v116
    %vm127 = vcmp.eq.f32.partialorder %v126, 8.507059e+37
    %v128 = vand.u32 %v116, 2147483648
    %v129 = vor.u32 1.1754944e-38, %v128
    %v130 = vsel %vm127, %v129, %v125
    %v131 = vmul.f32 1.0, %v130
    %v132 = vmul.f32 %v111, %v131
    %s133 = sld [smem:[#allocation3 + $0x2]]
    %v134 = vstv %s133
    %v135 = vmul.f32 %v97, %v134
    %s136 = sld [smem:[#allocation3 + $0x3]]
    %v137 = vstv %s136
    %v138 = vmul.f32 %v97, %v137
    %140 = vrot.lane.b32.xlu0 %v138, 96
    %v141 = vpop.permute.xlu0 %140
    %v143 = vadd.f32 %v135, %v141
    %s144 = sld [smem:[#allocation7 + $0x1]]
    %v145 = vstv %s144
    %v146 = vadd.f32 %v143, %v145
    %v147 = vmul.f32 %v146, 1.702
    %v148 = vxor.u32 %v147, 2147483648
    %v149 = vmul.f32 %v148, 1.442695
    %v150 = vpow.pop %v149
    %v151 = vadd.f32 %v150, 1.0
    %v152 = vrcp.pop %v151
    %v153 = vmul.f32 %v151, %v152
    %v154 = vsub.f32 1.0, %v153
    %v155 = vmul.f32 %v152, %v154
    %v156 = vadd.f32 %v152, %v155
    %vm157 = vweird.f32 %v151
    %vm158 = vweird.f32 %v152
    %vm159 = vmor %vm157, %vm158
    %v160 = vsel %vm159, %v152, %v156
    %v161 = vand.u32 2147483647, %v151
    %vm162 = vcmp.eq.f32.partialorder %v161, 8.507059e+37
    %v163 = vand.u32 %v151, 2147483648
    %v164 = vor.u32 1.1754944e-38, %v163
    %v165 = vsel %vm162, %v164, %v160
    %v166 = vmul.f32 1.0, %v165
    %v167 = vmul.f32 %v146, %v166
    %s168 = sld [smem:[#allocation3 + $0x4]]
    %v169 = vstv %s168
    %v170 = vmul.f32 %v97, %v169
    %s171 = sld [smem:[#allocation3 + $0x5]]
    %v172 = vstv %s171
    %v173 = vmul.f32 %v97, %v172
    %175 = vrot.lane.b32.xlu0 %v173, 96
    %v176 = vpop.permute.xlu0 %175
    %v178 = vadd.f32 %v170, %v176
    %s179 = sld [smem:[#allocation7 + $0x2]]
    %v180 = vstv %s179
    %v181 = vadd.f32 %v178, %v180
    %v182 = vmul.f32 %v181, 1.702
    %v183 = vxor.u32 %v182, 2147483648
    %v184 = vmul.f32 %v183, 1.442695
    %v185 = vpow.pop %v184
    %v186 = vadd.f32 %v185, 1.0
    %v187 = vrcp.pop %v186
    %v188 = vmul.f32 %v186, %v187
    %v189 = vsub.f32 1.0, %v188
    %v190 = vmul.f32 %v187, %v189
    %v191 = vadd.f32 %v187, %v190
    %vm192 = vweird.f32 %v186
    %vm193 = vweird.f32 %v187
    %vm194 = vmor %vm192, %vm193
    %v195 = vsel %vm194, %v187, %v191
    %v196 = vand.u32 2147483647, %v186
    %vm197 = vcmp.eq.f32.partialorder %v196, 8.507059e+37
    %v198 = vand.u32 %v186, 2147483648
    %v199 = vor.u32 1.1754944e-38, %v198
    %v200 = vsel %vm197, %v199, %v195
    %v201 = vmul.f32 1.0, %v200
    %v202 = vmul.f32 %v181, %v201
    %s203 = sld [smem:[#allocation3 + $0x6]]
    %v204 = vstv %s203
    %v205 = vmul.f32 %v97, %v204
    %s206 = sld [smem:[#allocation3 + $0x7]]
    %v207 = vstv %s206
    %v208 = vmul.f32 %v97, %v207
    %210 = vrot.lane.b32.xlu0 %v208, 96
    %v211 = vpop.permute.xlu0 %210
    %v213 = vadd.f32 %v205, %v211
    %s214 = sld [smem:[#allocation7 + $0x3]]
    %v215 = vstv %s214
    %v216 = vadd.f32 %v213, %v215
    %v217 = vmul.f32 %v216, 1.702
    %v218 = vxor.u32 %v217, 2147483648
    %v219 = vmul.f32 %v218, 1.442695
    %v220 = vpow.pop %v219
    %v221 = vadd.f32 %v220, 1.0
    %v222 = vrcp.pop %v221
    %v223 = vmul.f32 %v221, %v222
    %v224 = vsub.f32 1.0, %v223
    %v225 = vmul.f32 %v222, %v224
    %v226 = vadd.f32 %v222, %v225
    %vm227 = vweird.f32 %v221
    %vm228 = vweird.f32 %v222
    %vm229 = vmor %vm227, %vm228
    %v230 = vsel %vm229, %v222, %v226
    %v231 = vand.u32 2147483647, %v221
    %vm232 = vcmp.eq.f32.partialorder %v231, 8.507059e+37
    %v233 = vand.u32 %v221, 2147483648
    %v234 = vor.u32 1.1754944e-38, %v233
    %v235 = vsel %vm232, %v234, %v230
    %v236 = vmul.f32 1.0, %v235
    %v237 = vmul.f32 %v216, %v236
    %s238 = sld [smem:[#allocation3 + $0x8]]
    %v239 = vstv %s238
    %v240 = vmul.f32 %v97, %v239
    %s241 = sld [smem:[#allocation3 + $0x9]]
    %v242 = vstv %s241
    %v243 = vmul.f32 %v97, %v242
    %245 = vrot.lane.b32.xlu0 %v243, 96
    %v246 = vpop.permute.xlu0 %245
    %v248 = vadd.f32 %v240, %v246
    %s249 = sld [smem:[#allocation7 + $0x4]]
    %v250 = vstv %s249
    %v251 = vadd.f32 %v248, %v250
    %v252 = vmul.f32 %v251, 1.702
    %v253 = vxor.u32 %v252, 2147483648
    %v254 = vmul.f32 %v253, 1.442695
    %v255 = vpow.pop %v254
    %v256 = vadd.f32 %v255, 1.0
    %v257 = vrcp.pop %v256
    %v258 = vmul.f32 %v256, %v257
    %v259 = vsub.f32 1.0, %v258
    %v260 = vmul.f32 %v257, %v259
    %v261 = vadd.f32 %v257, %v260
    %vm262 = vweird.f32 %v256
    %vm263 = vweird.f32 %v257
    %vm264 = vmor %vm262, %vm263
    %v265 = vsel %vm264, %v257, %v261
    %v266 = vand.u32 2147483647, %v256
    %vm267 = vcmp.eq.f32.partialorder %v266, 8.507059e+37
    %v268 = vand.u32 %v256, 2147483648
    %v269 = vor.u32 1.1754944e-38, %v268
    %v270 = vsel %vm267, %v269, %v265
    %v271 = vmul.f32 1.0, %v270
    %v272 = vmul.f32 %v251, %v271
    %s273 = sld [smem:[#allocation3 + $0xa]]
    %v274 = vstv %s273
    %v275 = vmul.f32 %v97, %v274
    %s276 = sld [smem:[#allocation3 + $0xb]]
    %v277 = vstv %s276
    %v278 = vmul.f32 %v97, %v277
    %280 = vrot.lane.b32.xlu0 %v278, 96
    %v281 = vpop.permute.xlu0 %280
    %v283 = vadd.f32 %v275, %v281
    %s284 = sld [smem:[#allocation7 + $0x5]]
    %v285 = vstv %s284
    %v286 = vadd.f32 %v283, %v285
    %v287 = vmul.f32 %v286, 1.702
    %v288 = vxor.u32 %v287, 2147483648
    %v289 = vmul.f32 %v288, 1.442695
    %v290 = vpow.pop %v289
    %v291 = vadd.f32 %v290, 1.0
    %v292 = vrcp.pop %v291
    %v293 = vmul.f32 %v291, %v292
    %v294 = vsub.f32 1.0, %v293
    %v295 = vmul.f32 %v292, %v294
    %v296 = vadd.f32 %v292, %v295
    %vm297 = vweird.f32 %v291
    %vm298 = vweird.f32 %v292
    %vm299 = vmor %vm297, %vm298
    %v300 = vsel %vm299, %v292, %v296
    %v301 = vand.u32 2147483647, %v291
    %vm302 = vcmp.eq.f32.partialorder %v301, 8.507059e+37
    %v303 = vand.u32 %v291, 2147483648
    %v304 = vor.u32 1.1754944e-38, %v303
    %v305 = vsel %vm302, %v304, %v300
    %v306 = vmul.f32 1.0, %v305
    %v307 = vmul.f32 %v286, %v306
    %s308 = sld [smem:[#allocation3 + $0xc]]
    %v309 = vstv %s308
    %v310 = vmul.f32 %v97, %v309
    %s311 = sld [smem:[#allocation3 + $0xd]]
    %v312 = vstv %s311
    %v313 = vmul.f32 %v97, %v312
    %315 = vrot.lane.b32.xlu0 %v313, 96
    %v316 = vpop.permute.xlu0 %315
    %v318 = vadd.f32 %v310, %v316
    %s319 = sld [smem:[#allocation7 + $0x6]]
    %v320 = vstv %s319
    %v321 = vadd.f32 %v318, %v320
    %v322 = vmul.f32 %v321, 1.702
    %v323 = vxor.u32 %v322, 2147483648
    %v324 = vmul.f32 %v323, 1.442695
    %v325 = vpow.pop %v324
    %v326 = vadd.f32 %v325, 1.0
    %v327 = vrcp.pop %v326
    %v328 = vmul.f32 %v326, %v327
    %v329 = vsub.f32 1.0, %v328
    %v330 = vmul.f32 %v327, %v329
    %v331 = vadd.f32 %v327, %v330
    %vm332 = vweird.f32 %v326
    %vm333 = vweird.f32 %v327
    %vm334 = vmor %vm332, %vm333
    %v335 = vsel %vm334, %v327, %v331
    %v336 = vand.u32 2147483647, %v326
    %vm337 = vcmp.eq.f32.partialorder %v336, 8.507059e+37
    %v338 = vand.u32 %v326, 2147483648
    %v339 = vor.u32 1.1754944e-38, %v338
    %v340 = vsel %vm337, %v339, %v335
    %v341 = vmul.f32 1.0, %v340
    %v342 = vmul.f32 %v321, %v341
    %s343 = sld [smem:[#allocation3 + $0xe]]
    %v344 = vstv %s343
    %v345 = vmul.f32 %v97, %v344
    %s346 = sld [smem:[#allocation3 + $0xf]]
    %v347 = vstv %s346
    %v348 = vmul.f32 %v97, %v347
    %350 = vrot.lane.b32.xlu0 %v348, 96
    %v351 = vpop.permute.xlu0 %350
    %v353 = vadd.f32 %v345, %v351
    %s354 = sld [smem:[#allocation7 + $0x7]]
    %v355 = vstv %s354
    %v356 = vadd.f32 %v353, %v355
    %v357 = vmul.f32 %v356, 1.702
    %v358 = vxor.u32 %v357, 2147483648
    %v359 = vmul.f32 %v358, 1.442695
    %v360 = vpow.pop %v359
    %v361 = vadd.f32 %v360, 1.0
    %v362 = vrcp.pop %v361
    %v363 = vmul.f32 %v361, %v362
    %v364 = vsub.f32 1.0, %v363
    %v365 = vmul.f32 %v362, %v364
    %v366 = vadd.f32 %v362, %v365
    %vm367 = vweird.f32 %v361
    %vm368 = vweird.f32 %v362
    %vm369 = vmor %vm367, %vm368
    %v370 = vsel %vm369, %v362, %v366
    %v371 = vand.u32 2147483647, %v361
    %vm372 = vcmp.eq.f32.partialorder %v371, 8.507059e+37
    %v373 = vand.u32 %v361, 2147483648
    %v374 = vor.u32 1.1754944e-38, %v373
    %v375 = vsel %vm372, %v374, %v370
    %v376 = vmul.f32 1.0, %v375
    %v377 = vmul.f32 %v356, %v376
    %s378 = sld [smem:[#allocation3 + $0x10]]
    %v379 = vstv %s378
    %v380 = vmul.f32 %v97, %v379
    %s381 = sld [smem:[#allocation3 + $0x11]]
    %v382 = vstv %s381
    %v383 = vmul.f32 %v97, %v382
    %385 = vrot.lane.b32.xlu0 %v383, 96
    %v386 = vpop.permute.xlu0 %385
    %v388 = vadd.f32 %v380, %v386
    %s389 = sld [smem:[#allocation7 + $0x8]]
    %v390 = vstv %s389
    %v391 = vadd.f32 %v388, %v390
    %v392 = vmul.f32 %v391, 1.702
    %v393 = vxor.u32 %v392, 2147483648
    %v394 = vmul.f32 %v393, 1.442695
    %v395 = vpow.pop %v394
    %v396 = vadd.f32 %v395, 1.0
    %v397 = vrcp.pop %v396
    %v398 = vmul.f32 %v396, %v397
    %v399 = vsub.f32 1.0, %v398
    %v400 = vmul.f32 %v397, %v399
    %v401 = vadd.f32 %v397, %v400
    %vm402 = vweird.f32 %v396
    %vm403 = vweird.f32 %v397
    %vm404 = vmor %vm402, %vm403
    %v405 = vsel %vm404, %v397, %v401
    %v406 = vand.u32 2147483647, %v396
    %vm407 = vcmp.eq.f32.partialorder %v406, 8.507059e+37
    %v408 = vand.u32 %v396, 2147483648
    %v409 = vor.u32 1.1754944e-38, %v408
    %v410 = vsel %vm407, %v409, %v405
    %v411 = vmul.f32 1.0, %v410
    %v412 = vmul.f32 %v391, %v411
    %s413 = sld [smem:[#allocation3 + $0x12]]
    %v414 = vstv %s413
    %v415 = vmul.f32 %v97, %v414
    %s416 = sld [smem:[#allocation3 + $0x13]]
    %v417 = vstv %s416
    %v418 = vmul.f32 %v97, %v417
    %420 = vrot.lane.b32.xlu0 %v418, 96
    %v421 = vpop.permute.xlu0 %420
    %v423 = vadd.f32 %v415, %v421
    %s424 = sld [smem:[#allocation7 + $0x9]]
    %v425 = vstv %s424
    %v426 = vadd.f32 %v423, %v425
    %v427 = vmul.f32 %v426, 1.702
    %v428 = vxor.u32 %v427, 2147483648
    %v429 = vmul.f32 %v428, 1.442695
    %v430 = vpow.pop %v429
    %v431 = vadd.f32 %v430, 1.0
    %v432 = vrcp.pop %v431
    %v433 = vmul.f32 %v431, %v432
    %v434 = vsub.f32 1.0, %v433
    %v435 = vmul.f32 %v432, %v434
    %v436 = vadd.f32 %v432, %v435
    %vm437 = vweird.f32 %v431
    %vm438 = vweird.f32 %v432
    %vm439 = vmor %vm437, %vm438
    %v440 = vsel %vm439, %v432, %v436
    %v441 = vand.u32 2147483647, %v431
    %vm442 = vcmp.eq.f32.partialorder %v441, 8.507059e+37
    %v443 = vand.u32 %v431, 2147483648
    %v444 = vor.u32 1.1754944e-38, %v443
    %v445 = vsel %vm442, %v444, %v440
    %v446 = vmul.f32 1.0, %v445
    %v447 = vmul.f32 %v426, %v446
    %s448 = sld [smem:[#allocation9]]
    %v449 = vstv %s448
    %v450 = vmul.f32 %v132, %v449
    %s451 = sld [smem:[#allocation9 + $0x1]]
    %v452 = vstv %s451
    %v453 = vmul.f32 %v167, %v452
    %v454 = vadd.f32 %v450, %v453
    %s455 = sld [smem:[#allocation9 + $0x2]]
    %v456 = vstv %s455
    %v457 = vmul.f32 %v202, %v456
    %v458 = vadd.f32 %v454, %v457
    %s459 = sld [smem:[#allocation9 + $0x3]]
    %v460 = vstv %s459
    %v461 = vmul.f32 %v237, %v460
    %v462 = vadd.f32 %v458, %v461
    %s463 = sld [smem:[#allocation9 + $0x4]]
    %v464 = vstv %s463
    %v465 = vmul.f32 %v272, %v464
    %v466 = vadd.f32 %v462, %v465
    %s467 = sld [smem:[#allocation9 + $0x5]]
    %v468 = vstv %s467
    %v469 = vmul.f32 %v307, %v468
    %v470 = vadd.f32 %v466, %v469
    %s471 = sld [smem:[#allocation9 + $0x6]]
    %v472 = vstv %s471
    %v473 = vmul.f32 %v342, %v472
    %v474 = vadd.f32 %v470, %v473
    %s475 = sld [smem:[#allocation9 + $0x7]]
    %v476 = vstv %s475
    %v477 = vmul.f32 %v377, %v476
    %v478 = vadd.f32 %v474, %v477
    %s479 = sld [smem:[#allocation9 + $0x8]]
    %v480 = vstv %s479
    %v481 = vmul.f32 %v412, %v480
    %v482 = vadd.f32 %v478, %v481
    %s483 = sld [smem:[#allocation9 + $0x9]]
    %v484 = vstv %s483
    %v485 = vmul.f32 %v447, %v484
    %v486 = vadd.f32 %v482, %v485
    %s487 = sld [smem:[#allocation10]]
    %v488 = vstv %s487
    %v489 = vadd.f32 %v486, %v488
    %vm490 = vcmask 261120
    %491 = vst.msk [vmem:[#allocation2] sm:$0xff] %vm490, %v489
    %s492 = sld [smem:[#allocation9 + $0xa]]
    %v493 = vstv %s492
    %v494 = vmul.f32 %v132, %v493
    %s495 = sld [smem:[#allocation9 + $0xb]]
    %v496 = vstv %s495
    %v497 = vmul.f32 %v167, %v496
    %v498 = vadd.f32 %v494, %v497
    %s499 = sld [smem:[#allocation9 + $0xc]]
    %v500 = vstv %s499
    %v501 = vmul.f32 %v202, %v500
    %v502 = vadd.f32 %v498, %v501
    %s503 = sld [smem:[#allocation9 + $0xd]]
    %v504 = vstv %s503
    %v505 = vmul.f32 %v237, %v504
    %v506 = vadd.f32 %v502, %v505
    %s507 = sld [smem:[#allocation9 + $0xe]]
    %v508 = vstv %s507
    %v509 = vmul.f32 %v272, %v508
    %v510 = vadd.f32 %v506, %v509
    %s511 = sld [smem:[#allocation9 + $0xf]]
    %v512 = vstv %s511
    %v513 = vmul.f32 %v307, %v512
    %v514 = vadd.f32 %v510, %v513
    %s515 = sld [smem:[#allocation9 + $0x10]]
    %v516 = vstv %s515
    %v517 = vmul.f32 %v342, %v516
    %v518 = vadd.f32 %v514, %v517
    %s519 = sld [smem:[#allocation9 + $0x11]]
    %v520 = vstv %s519
    %v521 = vmul.f32 %v377, %v520
    %v522 = vadd.f32 %v518, %v521
    %s523 = sld [smem:[#allocation9 + $0x12]]
    %v524 = vstv %s523
    %v525 = vmul.f32 %v412, %v524
    %v526 = vadd.f32 %v522, %v525
    %s527 = sld [smem:[#allocation9 + $0x13]]
    %v528 = vstv %s527
    %v529 = vmul.f32 %v447, %v528
    %v530 = vadd.f32 %v526, %v529
    %s531 = sld [smem:[#allocation10 + $0x1]]
    %v532 = vstv %s531
    %v533 = vadd.f32 %v530, %v532
    %535 = vrot.lane.b32.xlu0 %v533, 32
    %v536 = vpop.permute.xlu0 %535
    %vm538 = vcmask 523520
    %539 = vst.msk [vmem:[#allocation2] sm:$0xff] %vm538, %v536
    %s540 = sld [smem:[#allocation9 + $0x14]]
    %v541 = vstv %s540
    %v542 = vmul.f32 %v132, %v541
    %s543 = sld [smem:[#allocation9 + $0x15]]
    %v544 = vstv %s543
    %v545 = vmul.f32 %v167, %v544
    %v546 = vadd.f32 %v542, %v545
    %s547 = sld [smem:[#allocation9 + $0x16]]
    %v548 = vstv %s547
    %v549 = vmul.f32 %v202, %v548
    %v550 = vadd.f32 %v546, %v549
    %s551 = sld [smem:[#allocation9 + $0x17]]
    %v552 = vstv %s551
    %v553 = vmul.f32 %v237, %v552
    %v554 = vadd.f32 %v550, %v553
    %s555 = sld [smem:[#allocation9 + $0x18]]
    %v556 = vstv %s555
    %v557 = vmul.f32 %v272, %v556
    %v558 = vadd.f32 %v554, %v557
    %s559 = sld [smem:[#allocation9 + $0x19]]
    %v560 = vstv %s559
    %v561 = vmul.f32 %v307, %v560
    %v562 = vadd.f32 %v558, %v561
    %s563 = sld [smem:[#allocation9 + $0x1a]]
    %v564 = vstv %s563
    %v565 = vmul.f32 %v342, %v564
    %v566 = vadd.f32 %v562, %v565
    %s567 = sld [smem:[#allocation9 + $0x1b]]
    %v568 = vstv %s567
    %v569 = vmul.f32 %v377, %v568
    %v570 = vadd.f32 %v566, %v569
    %s571 = sld [smem:[#allocation9 + $0x1c]]
    %v572 = vstv %s571
    %v573 = vmul.f32 %v412, %v572
    %v574 = vadd.f32 %v570, %v573
    %s575 = sld [smem:[#allocation9 + $0x1d]]
    %v576 = vstv %s575
    %v577 = vmul.f32 %v447, %v576
    %v578 = vadd.f32 %v574, %v577
    %s579 = sld [smem:[#allocation10 + $0x2]]
    %v580 = vstv %s579
    %v581 = vadd.f32 %v578, %v580
    %583 = vrot.lane.b32.xlu0 %v581, 64
    %v584 = vpop.permute.xlu0 %583
    %vm586 = vcmask 785920
    %587 = vst.msk [vmem:[#allocation2] sm:$0xff] %vm586, %v584
    %s588 = sld [smem:[#allocation9 + $0x1e]]
    %v589 = vstv %s588
    %v590 = vmul.f32 %v132, %v589
    %s591 = sld [smem:[#allocation9 + $0x1f]]
    %v592 = vstv %s591
    %v593 = vmul.f32 %v167, %v592
    %v594 = vadd.f32 %v590, %v593
    %s595 = sld [smem:[#allocation9 + $0x20]]
    %v596 = vstv %s595
    %v597 = vmul.f32 %v202, %v596
    %v598 = vadd.f32 %v594, %v597
    %s599 = sld [smem:[#allocation9 + $0x21]]
    %v600 = vstv %s599
    %v601 = vmul.f32 %v237, %v600
    %v602 = vadd.f32 %v598, %v601
    %s603 = sld [smem:[#allocation9 + $0x22]]
    %v604 = vstv %s603
    %v605 = vmul.f32 %v272, %v604
    %v606 = vadd.f32 %v602, %v605
    %s607 = sld [smem:[#allocation9 + $0x23]]
    %v608 = vstv %s607
    %v609 = vmul.f32 %v307, %v608
    %v610 = vadd.f32 %v606, %v609
    %s611 = sld [smem:[#allocation9 + $0x24]]
    %v612 = vstv %s611
    %v613 = vmul.f32 %v342, %v612
    %v614 = vadd.f32 %v610, %v613
    %s615 = sld [smem:[#allocation9 + $0x25]]
    %v616 = vstv %s615
    %v617 = vmul.f32 %v377, %v616
    %v618 = vadd.f32 %v614, %v617
    %s619 = sld [smem:[#allocation9 + $0x26]]
    %v620 = vstv %s619
    %v621 = vmul.f32 %v412, %v620
    %v622 = vadd.f32 %v618, %v621
    %s623 = sld [smem:[#allocation9 + $0x27]]
    %v624 = vstv %s623
    %v625 = vmul.f32 %v447, %v624
    %v626 = vadd.f32 %v622, %v625
    %s627 = sld [smem:[#allocation10 + $0x3]]
    %v628 = vstv %s627
    %v629 = vadd.f32 %v626, %v628
    %631 = vrot.lane.b32.xlu0 %v629, 96
    %v632 = vpop.permute.xlu0 %631
    %vm634 = vcmask 1048320
    %635 = vst.msk [vmem:[#allocation2] sm:$0xff] %vm634, %v632
    %s636 = sld [smem:[#allocation9 + $0x28]]
    %v637 = vstv %s636
    %v638 = vmul.f32 %v132, %v637
    %s639 = sld [smem:[#allocation9 + $0x29]]
    %v640 = vstv %s639
    %v641 = vmul.f32 %v167, %v640
    %v642 = vadd.f32 %v638, %v641
    %s643 = sld [smem:[#allocation9 + $0x2a]]
    %v644 = vstv %s643
    %v645 = vmul.f32 %v202, %v644
    %v646 = vadd.f32 %v642, %v645
    %s647 = sld [smem:[#allocation9 + $0x2b]]
    %v648 = vstv %s647
    %v649 = vmul.f32 %v237, %v648
    %v650 = vadd.f32 %v646, %v649
    %s651 = sld [smem:[#allocation9 + $0x2c]]
    %v652 = vstv %s651
    %v653 = vmul.f32 %v272, %v652
    %v654 = vadd.f32 %v650, %v653
    %s655 = sld [smem:[#allocation9 + $0x2d]]
    %v656 = vstv %s655
    %v657 = vmul.f32 %v307, %v656
    %v658 = vadd.f32 %v654, %v657
    %s659 = sld [smem:[#allocation9 + $0x2e]]
    %v660 = vstv %s659
    %v661 = vmul.f32 %v342, %v660
    %v662 = vadd.f32 %v658, %v661
    %s663 = sld [smem:[#allocation9 + $0x2f]]
    %v664 = vstv %s663
    %v665 = vmul.f32 %v377, %v664
    %v666 = vadd.f32 %v662, %v665
    %s667 = sld [smem:[#allocation9 + $0x30]]
    %v668 = vstv %s667
    %v669 = vmul.f32 %v412, %v668
    %v670 = vadd.f32 %v666, %v669
    %s671 = sld [smem:[#allocation9 + $0x31]]
    %v672 = vstv %s671
    %v673 = vmul.f32 %v447, %v672
    %v674 = vadd.f32 %v670, %v673
    %s675 = sld [smem:[#allocation10 + $0x4]]
    %v676 = vstv %s675
    %v677 = vadd.f32 %v674, %v676
    %678 = vst.msk [vmem:[#allocation2 + $0x8] sm:$0xff] %vm490, %v677
    %v679 = vld [vmem:[#allocation2] sm:$0xff]
    %v680 = vld [vmem:[#allocation2 + $0x8] sm:$0xff]
    %v681 = vmul.f32 %v679, 1.702
    %v682 = vmul.f32 %v680, 1.702
    %v683 = vxor.u32 %v681, 2147483648
    %v684 = vxor.u32 %v682, 2147483648
    %v685 = vmul.f32 %v683, 1.442695
    %v686 = vpow.pop %v685
    %v687 = vmul.f32 %v684, 1.442695
    %v688 = vpow.pop %v687
    %v689 = vadd.f32 %v686, 1.0
    %v690 = vadd.f32 %v688, 1.0
    %v691 = vrcp.pop %v689
    %v692 = vmul.f32 %v689, %v691
    %v693 = vsub.f32 1.0, %v692
    %v694 = vmul.f32 %v691, %v693
    %v695 = vadd.f32 %v691, %v694
    %vm696 = vweird.f32 %v689
    %vm697 = vweird.f32 %v691
    %vm698 = vmor %vm696, %vm697
    %v699 = vsel %vm698, %v691, %v695
    %v700 = vand.u32 2147483647, %v689
    %vm701 = vcmp.eq.f32.partialorder %v700, 8.507059e+37
    %v702 = vand.u32 %v689, 2147483648
    %v703 = vor.u32 1.1754944e-38, %v702
    %v704 = vsel %vm701, %v703, %v699
    %v705 = vmul.f32 1.0, %v704
    %v706 = vrcp.pop %v690
    %v707 = vmul.f32 %v690, %v706
    %v708 = vsub.f32 1.0, %v707
    %v709 = vmul.f32 %v706, %v708
    %v710 = vadd.f32 %v706, %v709
    %vm711 = vweird.f32 %v690
    %vm712 = vweird.f32 %v706
    %vm713 = vmor %vm711, %vm712
    %v714 = vsel %vm713, %v706, %v710
    %v715 = vand.u32 2147483647, %v690
    %vm716 = vcmp.eq.f32.partialorder %v715, 8.507059e+37
    %v717 = vand.u32 %v690, 2147483648
    %v718 = vor.u32 1.1754944e-38, %v717
    %v719 = vsel %vm716, %v718, %v714
    %v720 = vmul.f32 1.0, %v719
    %v721 = vmul.f32 %v679, %v705
    %v722 = vmul.f32 %v680, %v720
    %v723 = vld [vmem:[#allocation12] sm:$0xff]
    %v724 = vld [vmem:[#allocation12 + $0x8] sm:$0xff]
    %v725 = vld [vmem:[#allocation12 + $0x10] sm:$0xff]
    %v726 = vld [vmem:[#allocation12 + $0x18] sm:$0xff]
    %v727 = vld [vmem:[#allocation12 + $0x20] sm:$0xff]
    %v728 = vld [vmem:[#allocation12 + $0x28] sm:$0xff]
    %v729 = vld [vmem:[#allocation12 + $0x30] sm:$0xff]
    %v730 = vld [vmem:[#allocation12 + $0x38] sm:$0xff]
    %v731 = vld [vmem:[#allocation12 + $0x40] sm:$0xff]
    %v732 = vld [vmem:[#allocation12 + $0x48] sm:$0xff]
    %v733 = vld [vmem:[#allocation12 + $0x50] sm:$0xff]
    %v734 = vld [vmem:[#allocation12 + $0x58] sm:$0xff]
    %v735 = vld [vmem:[#allocation12 + $0x60] sm:$0xff]
    %v736 = vld [vmem:[#allocation12 + $0x68] sm:$0xff]
    %v737 = vld [vmem:[#allocation12 + $0x70] sm:$0xff]
    %v738 = vld [vmem:[#allocation12 + $0x78] sm:$0xff]
    %v739 = vld [vmem:[#allocation12 + $0x80] sm:$0xff]
    %v740 = vld [vmem:[#allocation12 + $0x88] sm:$0xff]
    %v741 = vld [vmem:[#allocation12 + $0x90] sm:$0xff]
    %v742 = vld [vmem:[#allocation12 + $0x98] sm:$0xff]
    %v743 = vld [vmem:[#allocation12 + $0xa0] sm:$0xff]
    %v744 = vld [vmem:[#allocation12 + $0xa8] sm:$0xff]
    %v745 = vld [vmem:[#allocation12 + $0xb0] sm:$0xff]
    %v746 = vld [vmem:[#allocation12 + $0xb8] sm:$0xff]
    %v747 = vld [vmem:[#allocation12 + $0xc0] sm:$0xff]
    %v748 = vld [vmem:[#allocation12 + $0xc8] sm:$0xff]
    %v749 = vld [vmem:[#allocation12 + $0xd0] sm:$0xff]
    %v750 = vld [vmem:[#allocation12 + $0xd8] sm:$0xff]
    %v751 = vld [vmem:[#allocation12 + $0xe0] sm:$0xff]
    %v752 = vld [vmem:[#allocation12 + $0xe8] sm:$0xff]
    %v753 = vld [vmem:[#allocation12 + $0xf0] sm:$0xff]
    %v754 = vld [vmem:[#allocation12 + $0xf8] sm:$0xff]
    %v755 = vld [vmem:[#allocation12 + $0x100] sm:$0xff]
    %v756 = vld [vmem:[#allocation12 + $0x108] sm:$0xff]
    %v757 = vld [vmem:[#allocation12 + $0x110] sm:$0xff]
    %v758 = vld [vmem:[#allocation12 + $0x118] sm:$0xff]
    %v759 = vld [vmem:[#allocation12 + $0x120] sm:$0xff]
    %v760 = vld [vmem:[#allocation12 + $0x128] sm:$0xff]
    %v761 = vld [vmem:[#allocation12 + $0x130] sm:$0xff]
    %v762 = vld [vmem:[#allocation12 + $0x138] sm:$0xff]
    %v763 = vld [vmem:[#allocation12 + $0x140] sm:$0xff]
    %v764 = vld [vmem:[#allocation12 + $0x148] sm:$0xff]
    %v765 = vld [vmem:[#allocation12 + $0x150] sm:$0xff]
    %v766 = vld [vmem:[#allocation12 + $0x158] sm:$0xff]
    %v767 = vld [vmem:[#allocation12 + $0x160] sm:$0xff]
    %v768 = vld [vmem:[#allocation12 + $0x168] sm:$0xff]
    %v769 = vld [vmem:[#allocation12 + $0x170] sm:$0xff]
    %v770 = vld [vmem:[#allocation12 + $0x178] sm:$0xff]
    %v771 = vld [vmem:[#allocation12 + $0x180] sm:$0xff]
    %v772 = vld [vmem:[#allocation12 + $0x188] sm:$0xff]
    %v773 = vld [vmem:[#allocation12 + $0x190] sm:$0xff]
    %v774 = vld [vmem:[#allocation12 + $0x198] sm:$0xff]
    %v775 = vld [vmem:[#allocation12 + $0x1a0] sm:$0xff]
    %v776 = vld [vmem:[#allocation12 + $0x1a8] sm:$0xff]
    %v777 = vld [vmem:[#allocation12 + $0x1b0] sm:$0xff]
    %v778 = vld [vmem:[#allocation12 + $0x1b8] sm:$0xff]
    %v779 = vld [vmem:[#allocation12 + $0x1c0] sm:$0xff]
    %v780 = vld [vmem:[#allocation12 + $0x1c8] sm:$0xff]
    %v781 = vld [vmem:[#allocation12 + $0x1d0] sm:$0xff]
    %v782 = vld [vmem:[#allocation12 + $0x1d8] sm:$0xff]
    %v783 = vld [vmem:[#allocation12 + $0x1e0] sm:$0xff]
    %v784 = vld [vmem:[#allocation12 + $0x1e8] sm:$0xff]
    %v785 = vld [vmem:[#allocation12 + $0x1f0] sm:$0xff]
    %v786 = vld [vmem:[#allocation12 + $0x1f8] sm:$0xff]
    %v787 = vld [vmem:[#allocation12 + $0x200] sm:$0xff]
    %v788 = vld [vmem:[#allocation12 + $0x208] sm:$0xff]
    %v789 = vld [vmem:[#allocation12 + $0x210] sm:$0xff]
    %v790 = vld [vmem:[#allocation12 + $0x218] sm:$0xff]
    %v791 = vld [vmem:[#allocation12 + $0x220] sm:$0xff]
    %v792 = vld [vmem:[#allocation12 + $0x228] sm:$0xff]
    %v793 = vld [vmem:[#allocation12 + $0x230] sm:$0xff]
    %v794 = vld [vmem:[#allocation12 + $0x238] sm:$0xff]
    %v795 = vld [vmem:[#allocation12 + $0x240] sm:$0xff]
    %v796 = vld [vmem:[#allocation12 + $0x248] sm:$0xff]
    %v797 = vld [vmem:[#allocation12 + $0x250] sm:$0xff]
    %v798 = vld [vmem:[#allocation12 + $0x258] sm:$0xff]
    %v799 = vld [vmem:[#allocation12 + $0x260] sm:$0xff]
    %v800 = vld [vmem:[#allocation12 + $0x268] sm:$0xff]
    %v801 = vld [vmem:[#allocation12 + $0x270] sm:$0xff]
    %v802 = vld [vmem:[#allocation12 + $0x278] sm:$0xff]
    %v803 = vld [vmem:[%s6] sm:$0xf]
    %v805 = vperm.slane %v803, 0
    %v806 = vperm.slane %v803, 1
    %v807 = vperm.slane %v803, 2
    %v808 = vperm.slane %v803, 3
    %v814 = vsel %vm490, %v722, 0
    %v816 = vand.u32 %v783, 4294901760
    %817 = vmatpush.msra.mxu0 %v816
    %v818 = vand.u32 %v779, 4294901760
    %819 = vmatpush.msra.mxu0 %v818
    %v820 = vand.u32 %v775, 4294901760
    %821 = vmatpush.msra.mxu0 %v820
    %v822 = vand.u32 %v771, 4294901760
    %823 = vmatpush.msra.mxu0 %v822
    %v824 = vand.u32 %v767, 4294901760
    %825 = vmatpush.msra.mxu0 %v824
    %v826 = vand.u32 %v763, 4294901760
    %827 = vmatpush.msra.mxu0 %v826
    %v828 = vand.u32 %v759, 4294901760
    %829 = vmatpush.msra.mxu0 %v828
    %v830 = vand.u32 %v755, 4294901760
    %831 = vmatpush.msra.mxu0 %v830
    %v832 = vand.u32 %v751, 4294901760
    %833 = vmatpush.msra.mxu0 %v832
    %v834 = vand.u32 %v747, 4294901760
    %835 = vmatpush.msra.mxu0 %v834
    %v836 = vand.u32 %v743, 4294901760
    %837 = vmatpush.msra.mxu0 %v836
    %v838 = vand.u32 %v739, 4294901760
    %839 = vmatpush.msra.mxu0 %v838
    %v840 = vand.u32 %v735, 4294901760
    %841 = vmatpush.msra.mxu0 %v840
    %v842 = vand.u32 %v731, 4294901760
    %843 = vmatpush.msra.mxu0 %v842
    %v844 = vand.u32 %v727, 4294901760
    %845 = vmatpush.msra.mxu0 %v844
    %v846 = vand.u32 %v723, 4294901760
    %847 = vmatpush.msra.mxu0 %v846
    %v848 = vand.u32 %v721, 4294901760
    %v849 = vsub.f32 %v721, %v848
    %v850 = vand.u32 %v849, 4294901760
    %v851 = vsub.f32 %v849, %v850
    %v852 = vand.u32 %v851, 4294901760
    %853 = vmatmul.f32.gmra.mxu0 %v852
    %v854 = vpop.f32.mrf.mxu0
    %v855 = vadd.f32 %v805, %v854
    %856 = vdwg.mxu0
    %v857 = vand.u32 %v783, 4294901760
    %v858 = vsub.f32 %v783, %v857
    %v859 = vand.u32 %v858, 4294901760
    %v860 = vsub.f32 %v858, %v859
    %v861 = vand.u32 %v860, 4294901760
    %862 = vmatpush.msra.mxu0 %v861
    %v863 = vand.u32 %v779, 4294901760
    %v864 = vsub.f32 %v779, %v863
    %v865 = vand.u32 %v864, 4294901760
    %v866 = vsub.f32 %v864, %v865
    %v867 = vand.u32 %v866, 4294901760
    %868 = vmatpush.msra.mxu0 %v867
    %v869 = vand.u32 %v775, 4294901760
    %v870 = vsub.f32 %v775, %v869
    %v871 = vand.u32 %v870, 4294901760
    %v872 = vsub.f32 %v870, %v871
    %v873 = vand.u32 %v872, 4294901760
    %874 = vmatpush.msra.mxu0 %v873
    %v875 = vand.u32 %v771, 4294901760
    %v876 = vsub.f32 %v771, %v875
    %v877 = vand.u32 %v876, 4294901760
    %v878 = vsub.f32 %v876, %v877
    %v879 = vand.u32 %v878, 4294901760
    %880 = vmatpush.msra.mxu0 %v879
    %v881 = vand.u32 %v767, 4294901760
    %v882 = vsub.f32 %v767, %v881
    %v883 = vand.u32 %v882, 4294901760
    %v884 = vsub.f32 %v882, %v883
    %v885 = vand.u32 %v884, 4294901760
    %886 = vmatpush.msra.mxu0 %v885
    %v887 = vand.u32 %v763, 4294901760
    %v888 = vsub.f32 %v763, %v887
    %v889 = vand.u32 %v888, 4294901760
    %v890 = vsub.f32 %v888, %v889
    %v891 = vand.u32 %v890, 4294901760
    %892 = vmatpush.msra.mxu0 %v891
    %v893 = vand.u32 %v759, 4294901760
    %v894 = vsub.f32 %v759, %v893
    %v895 = vand.u32 %v894, 4294901760
    %v896 = vsub.f32 %v894, %v895
    %v897 = vand.u32 %v896, 4294901760
    %898 = vmatpush.msra.mxu0 %v897
    %v899 = vand.u32 %v755, 4294901760
    %v900 = vsub.f32 %v755, %v899
    %v901 = vand.u32 %v900, 4294901760
    %v902 = vsub.f32 %v900, %v901
    %v903 = vand.u32 %v902, 4294901760
    %904 = vmatpush.msra.mxu0 %v903
    %v905 = vand.u32 %v751, 4294901760
    %v906 = vsub.f32 %v751, %v905
    %v907 = vand.u32 %v906, 4294901760
    %v908 = vsub.f32 %v906, %v907
    %v909 = vand.u32 %v908, 4294901760
    %910 = vmatpush.msra.mxu0 %v909
    %v911 = vand.u32 %v747, 4294901760
    %v912 = vsub.f32 %v747, %v911
    %v913 = vand.u32 %v912, 4294901760
    %v914 = vsub.f32 %v912, %v913
    %v915 = vand.u32 %v914, 4294901760
    %916 = vmatpush.msra.mxu0 %v915
    %v917 = vand.u32 %v743, 4294901760
    %v918 = vsub.f32 %v743, %v917
    %v919 = vand.u32 %v918, 4294901760
    %v920 = vsub.f32 %v918, %v919
    %v921 = vand.u32 %v920, 4294901760
    %922 = vmatpush.msra.mxu0 %v921
    %v923 = vand.u32 %v739, 4294901760
    %v924 = vsub.f32 %v739, %v923
    %v925 = vand.u32 %v924, 4294901760
    %v926 = vsub.f32 %v924, %v925
    %v927 = vand.u32 %v926, 4294901760
    %928 = vmatpush.msra.mxu0 %v927
    %v929 = vand.u32 %v735, 4294901760
    %v930 = vsub.f32 %v735, %v929
    %v931 = vand.u32 %v930, 4294901760
    %v932 = vsub.f32 %v930, %v931
    %v933 = vand.u32 %v932, 4294901760
    %934 = vmatpush.msra.mxu0 %v933
    %v935 = vand.u32 %v731, 4294901760
    %v936 = vsub.f32 %v731, %v935
    %v937 = vand.u32 %v936, 4294901760
    %v938 = vsub.f32 %v936, %v937
    %v939 = vand.u32 %v938, 4294901760
    %940 = vmatpush.msra.mxu0 %v939
    %v941 = vand.u32 %v727, 4294901760
    %v942 = vsub.f32 %v727, %v941
    %v943 = vand.u32 %v942, 4294901760
    %v944 = vsub.f32 %v942, %v943
    %v945 = vand.u32 %v944, 4294901760
    %946 = vmatpush.msra.mxu0 %v945
    %v947 = vand.u32 %v723, 4294901760
    %v948 = vsub.f32 %v723, %v947
    %v949 = vand.u32 %v948, 4294901760
    %v950 = vsub.f32 %v948, %v949
    %v951 = vand.u32 %v950, 4294901760
    %952 = vmatpush.msra.mxu0 %v951
    %v953 = vand.u32 %v721, 4294901760
    %954 = vmatmul.f32.gmra.mxu0 %v953
    %v955 = vpop.f32.mrf.mxu0
    %v956 = vadd.f32 %v855, %v955
    %957 = vdwg.mxu0
    %v958 = vand.u32 %v783, 4294901760
    %v959 = vsub.f32 %v783, %v958
    %960 = vmatpush.msra.mxu0 %v959
    %v961 = vand.u32 %v779, 4294901760
    %v962 = vsub.f32 %v779, %v961
    %963 = vmatpush.msra.mxu0 %v962
    %v964 = vand.u32 %v775, 4294901760
    %v965 = vsub.f32 %v775, %v964
    %966 = vmatpush.msra.mxu0 %v965
    %v967 = vand.u32 %v771, 4294901760
    %v968 = vsub.f32 %v771, %v967
    %969 = vmatpush.msra.mxu0 %v968
    %v970 = vand.u32 %v767, 4294901760
    %v971 = vsub.f32 %v767, %v970
    %972 = vmatpush.msra.mxu0 %v971
    %v973 = vand.u32 %v763, 4294901760
    %v974 = vsub.f32 %v763, %v973
    %975 = vmatpush.msra.mxu0 %v974
    %v976 = vand.u32 %v759, 4294901760
    %v977 = vsub.f32 %v759, %v976
    %978 = vmatpush.msra.mxu0 %v977
    %v979 = vand.u32 %v755, 4294901760
    %v980 = vsub.f32 %v755, %v979
    %981 = vmatpush.msra.mxu0 %v980
    %v982 = vand.u32 %v751, 4294901760
    %v983 = vsub.f32 %v751, %v982
    %984 = vmatpush.msra.mxu0 %v983
    %v985 = vand.u32 %v747, 4294901760
    %v986 = vsub.f32 %v747, %v985
    %987 = vmatpush.msra.mxu0 %v986
    %v988 = vand.u32 %v743, 4294901760
    %v989 = vsub.f32 %v743, %v988
    %990 = vmatpush.msra.mxu0 %v989
    %v991 = vand.u32 %v739, 4294901760
    %v992 = vsub.f32 %v739, %v991
    %993 = vmatpush.msra.mxu0 %v992
    %v994 = vand.u32 %v735, 4294901760
    %v995 = vsub.f32 %v735, %v994
    %996 = vmatpush.msra.mxu0 %v995
    %v997 = vand.u32 %v731, 4294901760
    %v998 = vsub.f32 %v731, %v997
    %999 = vmatpush.msra.mxu0 %v998
    %v1000 = vand.u32 %v727, 4294901760
    %v1001 = vsub.f32 %v727, %v1000
    %1002 = vmatpush.msra.mxu0 %v1001
    %v1003 = vand.u32 %v723, 4294901760
    %v1004 = vsub.f32 %v723, %v1003
    %1005 = vmatpush.msra.mxu0 %v1004
    %v1006 = vand.u32 %v721, 4294901760
    %v1007 = vsub.f32 %v721, %v1006
    %1008 = vmatmul.f32.gmra.mxu0 %v1007
    %v1009 = vpop.f32.mrf.mxu0
    %v1010 = vadd.f32 %v956, %v1009
    %1011 = vdwg.mxu0
    %v1012 = vand.u32 %v783, 4294901760
    %1013 = vmatpush.msra.mxu0 %v1012
    %v1014 = vand.u32 %v779, 4294901760
    %1015 = vmatpush.msra.mxu0 %v1014
    %v1016 = vand.u32 %v775, 4294901760
    %1017 = vmatpush.msra.mxu0 %v1016
    %v1018 = vand.u32 %v771, 4294901760
    %1019 = vmatpush.msra.mxu0 %v1018
    %v1020 = vand.u32 %v767, 4294901760
    %1021 = vmatpush.msra.mxu0 %v1020
    %v1022 = vand.u32 %v763, 4294901760
    %1023 = vmatpush.msra.mxu0 %v1022
    %v1024 = vand.u32 %v759, 4294901760
    %1025 = vmatpush.msra.mxu0 %v1024
    %v1026 = vand.u32 %v755, 4294901760
    %1027 = vmatpush.msra.mxu0 %v1026
    %v1028 = vand.u32 %v751, 4294901760
    %1029 = vmatpush.msra.mxu0 %v1028
    %v1030 = vand.u32 %v747, 4294901760
    %1031 = vmatpush.msra.mxu0 %v1030
    %v1032 = vand.u32 %v743, 4294901760
    %1033 = vmatpush.msra.mxu0 %v1032
    %v1034 = vand.u32 %v739, 4294901760
    %1035 = vmatpush.msra.mxu0 %v1034
    %v1036 = vand.u32 %v735, 4294901760
    %1037 = vmatpush.msra.mxu0 %v1036
    %v1038 = vand.u32 %v731, 4294901760
    %1039 = vmatpush.msra.mxu0 %v1038
    %v1040 = vand.u32 %v727, 4294901760
    %1041 = vmatpush.msra.mxu0 %v1040
    %v1042 = vand.u32 %v723, 4294901760
    %1043 = vmatpush.msra.mxu0 %v1042
    %v1044 = vand.u32 %v721, 4294901760
    %v1045 = vsub.f32 %v721, %v1044
    %v1046 = vand.u32 %v1045, 4294901760
    %1047 = vmatmul.f32.gmra.mxu0 %v1046
    %v1048 = vpop.f32.mrf.mxu0
    %v1049 = vadd.f32 %v1010, %v1048
    %1050 = vdwg.mxu0
    %v1051 = vand.u32 %v783, 4294901760
    %v1052 = vsub.f32 %v783, %v1051
    %v1053 = vand.u32 %v1052, 4294901760
    %1054 = vmatpush.msra.mxu0 %v1053
    %v1055 = vand.u32 %v779, 4294901760
    %v1056 = vsub.f32 %v779, %v1055
    %v1057 = vand.u32 %v1056, 4294901760
    %1058 = vmatpush.msra.mxu0 %v1057
    %v1059 = vand.u32 %v775, 4294901760
    %v1060 = vsub.f32 %v775, %v1059
    %v1061 = vand.u32 %v1060, 4294901760
    %1062 = vmatpush.msra.mxu0 %v1061
    %v1063 = vand.u32 %v771, 4294901760
    %v1064 = vsub.f32 %v771, %v1063
    %v1065 = vand.u32 %v1064, 4294901760
    %1066 = vmatpush.msra.mxu0 %v1065
    %v1067 = vand.u32 %v767, 4294901760
    %v1068 = vsub.f32 %v767, %v1067
    %v1069 = vand.u32 %v1068, 4294901760
    %1070 = vmatpush.msra.mxu0 %v1069
    %v1071 = vand.u32 %v763, 4294901760
    %v1072 = vsub.f32 %v763, %v1071
    %v1073 = vand.u32 %v1072, 4294901760
    %1074 = vmatpush.msra.mxu0 %v1073
    %v1075 = vand.u32 %v759, 4294901760
    %v1076 = vsub.f32 %v759, %v1075
    %v1077 = vand.u32 %v1076, 4294901760
    %1078 = vmatpush.msra.mxu0 %v1077
    %v1079 = vand.u32 %v755, 4294901760
    %v1080 = vsub.f32 %v755, %v1079
    %v1081 = vand.u32 %v1080, 4294901760
    %1082 = vmatpush.msra.mxu0 %v1081
    %v1083 = vand.u32 %v751, 4294901760
    %v1084 = vsub.f32 %v751, %v1083
    %v1085 = vand.u32 %v1084, 4294901760
    %1086 = vmatpush.msra.mxu0 %v1085
    %v1087 = vand.u32 %v747, 4294901760
    %v1088 = vsub.f32 %v747, %v1087
    %v1089 = vand.u32 %v1088, 4294901760
    %1090 = vmatpush.msra.mxu0 %v1089
    %v1091 = vand.u32 %v743, 4294901760
    %v1092 = vsub.f32 %v743, %v1091
    %v1093 = vand.u32 %v1092, 4294901760
    %1094 = vmatpush.msra.mxu0 %v1093
    %v1095 = vand.u32 %v739, 4294901760
    %v1096 = vsub.f32 %v739, %v1095
    %v1097 = vand.u32 %v1096, 4294901760
    %1098 = vmatpush.msra.mxu0 %v1097
    %v1099 = vand.u32 %v735, 4294901760
    %v1100 = vsub.f32 %v735, %v1099
    %v1101 = vand.u32 %v1100, 4294901760
    %1102 = vmatpush.msra.mxu0 %v1101
    %v1103 = vand.u32 %v731, 4294901760
    %v1104 = vsub.f32 %v731, %v1103
    %v1105 = vand.u32 %v1104, 4294901760
    %1106 = vmatpush.msra.mxu0 %v1105
    %v1107 = vand.u32 %v727, 4294901760
    %v1108 = vsub.f32 %v727, %v1107
    %v1109 = vand.u32 %v1108, 4294901760
    %1110 = vmatpush.msra.mxu0 %v1109
    %v1111 = vand.u32 %v723, 4294901760
    %v1112 = vsub.f32 %v723, %v1111
    %v1113 = vand.u32 %v1112, 4294901760
    %1114 = vmatpush.msra.mxu0 %v1113
    %v1115 = vand.u32 %v721, 4294901760
    %1116 = vmatmul.f32.gmra.mxu0 %v1115
    %v1117 = vpop.f32.mrf.mxu0
    %v1118 = vadd.f32 %v1049, %v1117
    %1119 = vdwg.mxu0
    %v1120 = vand.u32 %v783, 4294901760
    %1121 = vmatpush.msra.mxu0 %v1120
    %v1122 = vand.u32 %v779, 4294901760
    %1123 = vmatpush.msra.mxu0 %v1122
    %v1124 = vand.u32 %v775, 4294901760
    %1125 = vmatpush.msra.mxu0 %v1124
    %v1126 = vand.u32 %v771, 4294901760
    %1127 = vmatpush.msra.mxu0 %v1126
    %v1128 = vand.u32 %v767, 4294901760
    %1129 = vmatpush.msra.mxu0 %v1128
    %v1130 = vand.u32 %v763, 4294901760
    %1131 = vmatpush.msra.mxu0 %v1130
    %v1132 = vand.u32 %v759, 4294901760
    %1133 = vmatpush.msra.mxu0 %v1132
    %v1134 = vand.u32 %v755, 4294901760
    %1135 = vmatpush.msra.mxu0 %v1134
    %v1136 = vand.u32 %v751, 4294901760
    %1137 = vmatpush.msra.mxu0 %v1136
    %v1138 = vand.u32 %v747, 4294901760
    %1139 = vmatpush.msra.mxu0 %v1138
    %v1140 = vand.u32 %v743, 4294901760
    %1141 = vmatpush.msra.mxu0 %v1140
    %v1142 = vand.u32 %v739, 4294901760
    %1143 = vmatpush.msra.mxu0 %v1142
    %v1144 = vand.u32 %v735, 4294901760
    %1145 = vmatpush.msra.mxu0 %v1144
    %v1146 = vand.u32 %v731, 4294901760
    %1147 = vmatpush.msra.mxu0 %v1146
    %v1148 = vand.u32 %v727, 4294901760
    %1149 = vmatpush.msra.mxu0 %v1148
    %v1150 = vand.u32 %v723, 4294901760
    %1151 = vmatpush.msra.mxu0 %v1150
    %v1152 = vand.u32 %v721, 4294901760
    %1153 = vmatmul.f32.gmra.mxu0 %v1152
    %v1154 = vpop.f32.mrf.mxu0
    %v1155 = vadd.f32 %v1118, %v1154
    %1156 = vdwg.mxu0
    %1157 = vmatpush.msra.mxu0 0.0
    %1158 = vmatpush.msra.mxu0 0.0
    %1159 = vmatpush.msra.mxu0 0.0
    %1160 = vmatpush.msra.mxu0 0.0
    %1161 = vmatpush.msra.mxu0 0.0
    %1162 = vmatpush.msra.mxu0 0.0
    %1163 = vmatpush.msra.mxu0 0.0
    %1164 = vmatpush.msra.mxu0 0.0
    %1165 = vmatpush.msra.mxu0 0.0
    %1166 = vmatpush.msra.mxu0 0.0
    %1167 = vmatpush.msra.mxu0 0.0
    %1168 = vmatpush.msra.mxu0 0.0
    %v1169 = vand.u32 %v799, 4294901760
    %1170 = vmatpush.msra.mxu0 %v1169
    %v1171 = vand.u32 %v795, 4294901760
    %1172 = vmatpush.msra.mxu0 %v1171
    %v1173 = vand.u32 %v791, 4294901760
    %1174 = vmatpush.msra.mxu0 %v1173
    %v1175 = vand.u32 %v787, 4294901760
    %1176 = vmatpush.msra.mxu0 %v1175
    %v1177 = vand.u32 %v814, 4294901760
    %v1178 = vsub.f32 %v814, %v1177
    %v1179 = vand.u32 %v1178, 4294901760
    %v1180 = vsub.f32 %v1178, %v1179
    %v1181 = vand.u32 %v1180, 4294901760
    %1182 = vmatmul.f32.gmra.mxu0 %v1181
    %v1183 = vpop.f32.mrf.mxu0
    %v1184 = vadd.f32 %v1155, %v1183
    %1185 = vdwg.mxu0
    %1186 = vmatpush.msra.mxu0 0.0
    %1187 = vmatpush.msra.mxu0 0.0
    %1188 = vmatpush.msra.mxu0 0.0
    %1189 = vmatpush.msra.mxu0 0.0
    %1190 = vmatpush.msra.mxu0 0.0
    %1191 = vmatpush.msra.mxu0 0.0
    %1192 = vmatpush.msra.mxu0 0.0
    %1193 = vmatpush.msra.mxu0 0.0
    %1194 = vmatpush.msra.mxu0 0.0
    %1195 = vmatpush.msra.mxu0 0.0
    %1196 = vmatpush.msra.mxu0 0.0
    %1197 = vmatpush.msra.mxu0 0.0
    %v1198 = vand.u32 %v799, 4294901760
    %v1199 = vsub.f32 %v799, %v1198
    %v1200 = vand.u32 %v1199, 4294901760
    %v1201 = vsub.f32 %v1199, %v1200
    %v1202 = vand.u32 %v1201, 4294901760
    %1203 = vmatpush.msra.mxu0 %v1202
    %v1204 = vand.u32 %v795, 4294901760
    %v1205 = vsub.f32 %v795, %v1204
    %v1206 = vand.u32 %v1205, 4294901760
    %v1207 = vsub.f32 %v1205, %v1206
    %v1208 = vand.u32 %v1207, 4294901760
    %1209 = vmatpush.msra.mxu0 %v1208
    %v1210 = vand.u32 %v791, 4294901760
    %v1211 = vsub.f32 %v791, %v1210
    %v1212 = vand.u32 %v1211, 4294901760
    %v1213 = vsub.f32 %v1211, %v1212
    %v1214 = vand.u32 %v1213, 4294901760
    %1215 = vmatpush.msra.mxu0 %v1214
    %v1216 = vand.u32 %v787, 4294901760
    %v1217 = vsub.f32 %v787, %v1216
    %v1218 = vand.u32 %v1217, 4294901760
    %v1219 = vsub.f32 %v1217, %v1218
    %v1220 = vand.u32 %v1219, 4294901760
    %1221 = vmatpush.msra.mxu0 %v1220
    %v1222 = vand.u32 %v814, 4294901760
    %1223 = vmatmul.f32.gmra.mxu0 %v1222
    %v1224 = vpop.f32.mrf.mxu0
    %v1225 = vadd.f32 %v1184, %v1224
    %1226 = vdwg.mxu0
    %1227 = vmatpush.msra.mxu0 0.0
    %1228 = vmatpush.msra.mxu0 0.0
    %1229 = vmatpush.msra.mxu0 0.0
    %1230 = vmatpush.msra.mxu0 0.0
    %1231 = vmatpush.msra.mxu0 0.0
    %1232 = vmatpush.msra.mxu0 0.0
    %1233 = vmatpush.msra.mxu0 0.0
    %1234 = vmatpush.msra.mxu0 0.0
    %1235 = vmatpush.msra.mxu0 0.0
    %1236 = vmatpush.msra.mxu0 0.0
    %1237 = vmatpush.msra.mxu0 0.0
    %1238 = vmatpush.msra.mxu0 0.0
    %v1239 = vand.u32 %v799, 4294901760
    %v1240 = vsub.f32 %v799, %v1239
    %1241 = vmatpush.msra.mxu0 %v1240
    %v1242 = vand.u32 %v795, 4294901760
    %v1243 = vsub.f32 %v795, %v1242
    %1244 = vmatpush.msra.mxu0 %v1243
    %v1245 = vand.u32 %v791, 4294901760
    %v1246 = vsub.f32 %v791, %v1245
    %1247 = vmatpush.msra.mxu0 %v1246
    %v1248 = vand.u32 %v787, 4294901760
    %v1249 = vsub.f32 %v787, %v1248
    %1250 = vmatpush.msra.mxu0 %v1249
    %v1251 = vand.u32 %v814, 4294901760
    %v1252 = vsub.f32 %v814, %v1251
    %1253 = vmatmul.f32.gmra.mxu0 %v1252
    %v1254 = vpop.f32.mrf.mxu0
    %v1255 = vadd.f32 %v1225, %v1254
    %1256 = vdwg.mxu0
    %1257 = vmatpush.msra.mxu0 0.0
    %1258 = vmatpush.msra.mxu0 0.0
    %1259 = vmatpush.msra.mxu0 0.0
    %1260 = vmatpush.msra.mxu0 0.0
    %1261 = vmatpush.msra.mxu0 0.0
    %1262 = vmatpush.msra.mxu0 0.0
    %1263 = vmatpush.msra.mxu0 0.0
    %1264 = vmatpush.msra.mxu0 0.0
    %1265 = vmatpush.msra.mxu0 0.0
    %1266 = vmatpush.msra.mxu0 0.0
    %1267 = vmatpush.msra.mxu0 0.0
    %1268 = vmatpush.msra.mxu0 0.0
    %v1269 = vand.u32 %v799, 4294901760
    %1270 = vmatpush.msra.mxu0 %v1269
    %v1271 = vand.u32 %v795, 4294901760
    %1272 = vmatpush.msra.mxu0 %v1271
    %v1273 = vand.u32 %v791, 4294901760
    %1274 = vmatpush.msra.mxu0 %v1273
    %v1275 = vand.u32 %v787, 4294901760
    %1276 = vmatpush.msra.mxu0 %v1275
    %v1277 = vand.u32 %v814, 4294901760
    %v1278 = vsub.f32 %v814, %v1277
    %v1279 = vand.u32 %v1278, 4294901760
    %1280 = vmatmul.f32.gmra.mxu0 %v1279
    %v1281 = vpop.f32.mrf.mxu0
    %v1282 = vadd.f32 %v1255, %v1281
    %1283 = vdwg.mxu0
    %1284 = vmatpush.msra.mxu0 0.0
    %1285 = vmatpush.msra.mxu0 0.0
    %1286 = vmatpush.msra.mxu0 0.0
    %1287 = vmatpush.msra.mxu0 0.0
    %1288 = vmatpush.msra.mxu0 0.0
    %1289 = vmatpush.msra.mxu0 0.0
    %1290 = vmatpush.msra.mxu0 0.0
    %1291 = vmatpush.msra.mxu0 0.0
    %1292 = vmatpush.msra.mxu0 0.0
    %1293 = vmatpush.msra.mxu0 0.0
    %1294 = vmatpush.msra.mxu0 0.0
    %1295 = vmatpush.msra.mxu0 0.0
    %v1296 = vand.u32 %v799, 4294901760
    %v1297 = vsub.f32 %v799, %v1296
    %v1298 = vand.u32 %v1297, 4294901760
    %1299 = vmatpush.msra.mxu0 %v1298
    %v1300 = vand.u32 %v795, 4294901760
    %v1301 = vsub.f32 %v795, %v1300
    %v1302 = vand.u32 %v1301, 4294901760
    %1303 = vmatpush.msra.mxu0 %v1302
    %v1304 = vand.u32 %v791, 4294901760
    %v1305 = vsub.f32 %v791, %v1304
    %v1306 = vand.u32 %v1305, 4294901760
    %1307 = vmatpush.msra.mxu0 %v1306
    %v1308 = vand.u32 %v787, 4294901760
    %v1309 = vsub.f32 %v787, %v1308
    %v1310 = vand.u32 %v1309, 4294901760
    %1311 = vmatpush.msra.mxu0 %v1310
    %v1312 = vand.u32 %v814, 4294901760
    %1313 = vmatmul.f32.gmra.mxu0 %v1312
    %v1314 = vpop.f32.mrf.mxu0
    %v1315 = vadd.f32 %v1282, %v1314
    %1316 = vdwg.mxu0
    %1317 = vmatpush.msra.mxu0 0.0
    %1318 = vmatpush.msra.mxu0 0.0
    %1319 = vmatpush.msra.mxu0 0.0
    %1320 = vmatpush.msra.mxu0 0.0
    %1321 = vmatpush.msra.mxu0 0.0
    %1322 = vmatpush.msra.mxu0 0.0
    %1323 = vmatpush.msra.mxu0 0.0
    %1324 = vmatpush.msra.mxu0 0.0
    %1325 = vmatpush.msra.mxu0 0.0
    %1326 = vmatpush.msra.mxu0 0.0
    %1327 = vmatpush.msra.mxu0 0.0
    %1328 = vmatpush.msra.mxu0 0.0
    %v1329 = vand.u32 %v799, 4294901760
    %1330 = vmatpush.msra.mxu0 %v1329
    %v1331 = vand.u32 %v795, 4294901760
    %1332 = vmatpush.msra.mxu0 %v1331
    %v1333 = vand.u32 %v791, 4294901760
    %1334 = vmatpush.msra.mxu0 %v1333
    %v1335 = vand.u32 %v787, 4294901760
    %1336 = vmatpush.msra.mxu0 %v1335
    %v1337 = vand.u32 %v814, 4294901760
    %1338 = vmatmul.f32.gmra.mxu0 %v1337
    %v1339 = vpop.f32.mrf.mxu0
    %v1340 = vadd.f32 %v1315, %v1339
    %1341 = vdwg.mxu0
    %v1342 = vand.u32 %v784, 4294901760
    %1343 = vmatpush.msra.mxu0 %v1342
    %v1344 = vand.u32 %v780, 4294901760
    %1345 = vmatpush.msra.mxu0 %v1344
    %v1346 = vand.u32 %v776, 4294901760
    %1347 = vmatpush.msra.mxu0 %v1346
    %v1348 = vand.u32 %v772, 4294901760
    %1349 = vmatpush.msra.mxu0 %v1348
    %v1350 = vand.u32 %v768, 4294901760
    %1351 = vmatpush.msra.mxu0 %v1350
    %v1352 = vand.u32 %v764, 4294901760
    %1353 = vmatpush.msra.mxu0 %v1352
    %v1354 = vand.u32 %v760, 4294901760
    %1355 = vmatpush.msra.mxu0 %v1354
    %v1356 = vand.u32 %v756, 4294901760
    %1357 = vmatpush.msra.mxu0 %v1356
    %v1358 = vand.u32 %v752, 4294901760
    %1359 = vmatpush.msra.mxu0 %v1358
    %v1360 = vand.u32 %v748, 4294901760
    %1361 = vmatpush.msra.mxu0 %v1360
    %v1362 = vand.u32 %v744, 4294901760
    %1363 = vmatpush.msra.mxu0 %v1362
    %v1364 = vand.u32 %v740, 4294901760
    %1365 = vmatpush.msra.mxu0 %v1364
    %v1366 = vand.u32 %v736, 4294901760
    %1367 = vmatpush.msra.mxu0 %v1366
    %v1368 = vand.u32 %v732, 4294901760
    %1369 = vmatpush.msra.mxu0 %v1368
    %v1370 = vand.u32 %v728, 4294901760
    %1371 = vmatpush.msra.mxu0 %v1370
    %v1372 = vand.u32 %v724, 4294901760
    %1373 = vmatpush.msra.mxu0 %v1372
    %v1374 = vand.u32 %v721, 4294901760
    %v1375 = vsub.f32 %v721, %v1374
    %v1376 = vand.u32 %v1375, 4294901760
    %v1377 = vsub.f32 %v1375, %v1376
    %v1378 = vand.u32 %v1377, 4294901760
    %1379 = vmatmul.f32.gmra.mxu0 %v1378
    %v1380 = vpop.f32.mrf.mxu0
    %v1381 = vadd.f32 %v806, %v1380
    %1382 = vdwg.mxu0
    %v1383 = vand.u32 %v784, 4294901760
    %v1384 = vsub.f32 %v784, %v1383
    %v1385 = vand.u32 %v1384, 4294901760
    %v1386 = vsub.f32 %v1384, %v1385
    %v1387 = vand.u32 %v1386, 4294901760
    %1388 = vmatpush.msra.mxu0 %v1387
    %v1389 = vand.u32 %v780, 4294901760
    %v1390 = vsub.f32 %v780, %v1389
    %v1391 = vand.u32 %v1390, 4294901760
    %v1392 = vsub.f32 %v1390, %v1391
    %v1393 = vand.u32 %v1392, 4294901760
    %1394 = vmatpush.msra.mxu0 %v1393
    %v1395 = vand.u32 %v776, 4294901760
    %v1396 = vsub.f32 %v776, %v1395
    %v1397 = vand.u32 %v1396, 4294901760
    %v1398 = vsub.f32 %v1396, %v1397
    %v1399 = vand.u32 %v1398, 4294901760
    %1400 = vmatpush.msra.mxu0 %v1399
    %v1401 = vand.u32 %v772, 4294901760
    %v1402 = vsub.f32 %v772, %v1401
    %v1403 = vand.u32 %v1402, 4294901760
    %v1404 = vsub.f32 %v1402, %v1403
    %v1405 = vand.u32 %v1404, 4294901760
    %1406 = vmatpush.msra.mxu0 %v1405
    %v1407 = vand.u32 %v768, 4294901760
    %v1408 = vsub.f32 %v768, %v1407
    %v1409 = vand.u32 %v1408, 4294901760
    %v1410 = vsub.f32 %v1408, %v1409
    %v1411 = vand.u32 %v1410, 4294901760
    %1412 = vmatpush.msra.mxu0 %v1411
    %v1413 = vand.u32 %v764, 4294901760
    %v1414 = vsub.f32 %v764, %v1413
    %v1415 = vand.u32 %v1414, 4294901760
    %v1416 = vsub.f32 %v1414, %v1415
    %v1417 = vand.u32 %v1416, 4294901760
    %1418 = vmatpush.msra.mxu0 %v1417
    %v1419 = vand.u32 %v760, 4294901760
    %v1420 = vsub.f32 %v760, %v1419
    %v1421 = vand.u32 %v1420, 4294901760
    %v1422 = vsub.f32 %v1420, %v1421
    %v1423 = vand.u32 %v1422, 4294901760
    %1424 = vmatpush.msra.mxu0 %v1423
    %v1425 = vand.u32 %v756, 4294901760
    %v1426 = vsub.f32 %v756, %v1425
    %v1427 = vand.u32 %v1426, 4294901760
    %v1428 = vsub.f32 %v1426, %v1427
    %v1429 = vand.u32 %v1428, 4294901760
    %1430 = vmatpush.msra.mxu0 %v1429
    %v1431 = vand.u32 %v752, 4294901760
    %v1432 = vsub.f32 %v752, %v1431
    %v1433 = vand.u32 %v1432, 4294901760
    %v1434 = vsub.f32 %v1432, %v1433
    %v1435 = vand.u32 %v1434, 4294901760
    %1436 = vmatpush.msra.mxu0 %v1435
    %v1437 = vand.u32 %v748, 4294901760
    %v1438 = vsub.f32 %v748, %v1437
    %v1439 = vand.u32 %v1438, 4294901760
    %v1440 = vsub.f32 %v1438, %v1439
    %v1441 = vand.u32 %v1440, 4294901760
    %1442 = vmatpush.msra.mxu0 %v1441
    %v1443 = vand.u32 %v744, 4294901760
    %v1444 = vsub.f32 %v744, %v1443
    %v1445 = vand.u32 %v1444, 4294901760
    %v1446 = vsub.f32 %v1444, %v1445
    %v1447 = vand.u32 %v1446, 4294901760
    %1448 = vmatpush.msra.mxu0 %v1447
    %v1449 = vand.u32 %v740, 4294901760
    %v1450 = vsub.f32 %v740, %v1449
    %v1451 = vand.u32 %v1450, 4294901760
    %v1452 = vsub.f32 %v1450, %v1451
    %v1453 = vand.u32 %v1452, 4294901760
    %1454 = vmatpush.msra.mxu0 %v1453
    %v1455 = vand.u32 %v736, 4294901760
    %v1456 = vsub.f32 %v736, %v1455
    %v1457 = vand.u32 %v1456, 4294901760
    %v1458 = vsub.f32 %v1456, %v1457
    %v1459 = vand.u32 %v1458, 4294901760
    %1460 = vmatpush.msra.mxu0 %v1459
    %v1461 = vand.u32 %v732, 4294901760
    %v1462 = vsub.f32 %v732, %v1461
    %v1463 = vand.u32 %v1462, 4294901760
    %v1464 = vsub.f32 %v1462, %v1463
    %v1465 = vand.u32 %v1464, 4294901760
    %1466 = vmatpush.msra.mxu0 %v1465
    %v1467 = vand.u32 %v728, 4294901760
    %v1468 = vsub.f32 %v728, %v1467
    %v1469 = vand.u32 %v1468, 4294901760
    %v1470 = vsub.f32 %v1468, %v1469
    %v1471 = vand.u32 %v1470, 4294901760
    %1472 = vmatpush.msra.mxu0 %v1471
    %v1473 = vand.u32 %v724, 4294901760
    %v1474 = vsub.f32 %v724, %v1473
    %v1475 = vand.u32 %v1474, 4294901760
    %v1476 = vsub.f32 %v1474, %v1475
    %v1477 = vand.u32 %v1476, 4294901760
    %1478 = vmatpush.msra.mxu0 %v1477
    %v1479 = vand.u32 %v721, 4294901760
    %1480 = vmatmul.f32.gmra.mxu0 %v1479
    %v1481 = vpop.f32.mrf.mxu0
    %v1482 = vadd.f32 %v1381, %v1481
    %1483 = vdwg.mxu0
    %v1484 = vand.u32 %v784, 4294901760
    %v1485 = vsub.f32 %v784, %v1484
    %1486 = vmatpush.msra.mxu0 %v1485
    %v1487 = vand.u32 %v780, 4294901760
    %v1488 = vsub.f32 %v780, %v1487
    %1489 = vmatpush.msra.mxu0 %v1488
    %v1490 = vand.u32 %v776, 4294901760
    %v1491 = vsub.f32 %v776, %v1490
    %1492 = vmatpush.msra.mxu0 %v1491
    %v1493 = vand.u32 %v772, 4294901760
    %v1494 = vsub.f32 %v772, %v1493
    %1495 = vmatpush.msra.mxu0 %v1494
    %v1496 = vand.u32 %v768, 4294901760
    %v1497 = vsub.f32 %v768, %v1496
    %1498 = vmatpush.msra.mxu0 %v1497
    %v1499 = vand.u32 %v764, 4294901760
    %v1500 = vsub.f32 %v764, %v1499
    %1501 = vmatpush.msra.mxu0 %v1500
    %v1502 = vand.u32 %v760, 4294901760
    %v1503 = vsub.f32 %v760, %v1502
    %1504 = vmatpush.msra.mxu0 %v1503
    %v1505 = vand.u32 %v756, 4294901760
    %v1506 = vsub.f32 %v756, %v1505
    %1507 = vmatpush.msra.mxu0 %v1506
    %v1508 = vand.u32 %v752, 4294901760
    %v1509 = vsub.f32 %v752, %v1508
    %1510 = vmatpush.msra.mxu0 %v1509
    %v1511 = vand.u32 %v748, 4294901760
    %v1512 = vsub.f32 %v748, %v1511
    %1513 = vmatpush.msra.mxu0 %v1512
    %v1514 = vand.u32 %v744, 4294901760
    %v1515 = vsub.f32 %v744, %v1514
    %1516 = vmatpush.msra.mxu0 %v1515
    %v1517 = vand.u32 %v740, 4294901760
    %v1518 = vsub.f32 %v740, %v1517
    %1519 = vmatpush.msra.mxu0 %v1518
    %v1520 = vand.u32 %v736, 4294901760
    %v1521 = vsub.f32 %v736, %v1520
    %1522 = vmatpush.msra.mxu0 %v1521
    %v1523 = vand.u32 %v732, 4294901760
    %v1524 = vsub.f32 %v732, %v1523
    %1525 = vmatpush.msra.mxu0 %v1524
    %v1526 = vand.u32 %v728, 4294901760
    %v1527 = vsub.f32 %v728, %v1526
    %1528 = vmatpush.msra.mxu0 %v1527
    %v1529 = vand.u32 %v724, 4294901760
    %v1530 = vsub.f32 %v724, %v1529
    %1531 = vmatpush.msra.mxu0 %v1530
    %v1532 = vand.u32 %v721, 4294901760
    %v1533 = vsub.f32 %v721, %v1532
    %1534 = vmatmul.f32.gmra.mxu0 %v1533
    %v1535 = vpop.f32.mrf.mxu0
    %v1536 = vadd.f32 %v1482, %v1535
    %1537 = vdwg.mxu0
    %v1538 = vand.u32 %v784, 4294901760
    %1539 = vmatpush.msra.mxu0 %v1538
    %v1540 = vand.u32 %v780, 4294901760
    %1541 = vmatpush.msra.mxu0 %v1540
    %v1542 = vand.u32 %v776, 4294901760
    %1543 = vmatpush.msra.mxu0 %v1542
    %v1544 = vand.u32 %v772, 4294901760
    %1545 = vmatpush.msra.mxu0 %v1544
    %v1546 = vand.u32 %v768, 4294901760
    %1547 = vmatpush.msra.mxu0 %v1546
    %v1548 = vand.u32 %v764, 4294901760
    %1549 = vmatpush.msra.mxu0 %v1548
    %v1550 = vand.u32 %v760, 4294901760
    %1551 = vmatpush.msra.mxu0 %v1550
    %v1552 = vand.u32 %v756, 4294901760
    %1553 = vmatpush.msra.mxu0 %v1552
    %v1554 = vand.u32 %v752, 4294901760
    %1555 = vmatpush.msra.mxu0 %v1554
    %v1556 = vand.u32 %v748, 4294901760
    %1557 = vmatpush.msra.mxu0 %v1556
    %v1558 = vand.u32 %v744, 4294901760
    %1559 = vmatpush.msra.mxu0 %v1558
    %v1560 = vand.u32 %v740, 4294901760
    %1561 = vmatpush.msra.mxu0 %v1560
    %v1562 = vand.u32 %v736, 4294901760
    %1563 = vmatpush.msra.mxu0 %v1562
    %v1564 = vand.u32 %v732, 4294901760
    %1565 = vmatpush.msra.mxu0 %v1564
    %v1566 = vand.u32 %v728, 4294901760
    %1567 = vmatpush.msra.mxu0 %v1566
    %v1568 = vand.u32 %v724, 4294901760
    %1569 = vmatpush.msra.mxu0 %v1568
    %v1570 = vand.u32 %v721, 4294901760
    %v1571 = vsub.f32 %v721, %v1570
    %v1572 = vand.u32 %v1571, 4294901760
    %1573 = vmatmul.f32.gmra.mxu0 %v1572
    %v1574 = vpop.f32.mrf.mxu0
    %v1575 = vadd.f32 %v1536, %v1574
    %1576 = vdwg.mxu0
    %v1577 = vand.u32 %v784, 4294901760
    %v1578 = vsub.f32 %v784, %v1577
    %v1579 = vand.u32 %v1578, 4294901760
    %1580 = vmatpush.msra.mxu0 %v1579
    %v1581 = vand.u32 %v780, 4294901760
    %v1582 = vsub.f32 %v780, %v1581
    %v1583 = vand.u32 %v1582, 4294901760
    %1584 = vmatpush.msra.mxu0 %v1583
    %v1585 = vand.u32 %v776, 4294901760
    %v1586 = vsub.f32 %v776, %v1585
    %v1587 = vand.u32 %v1586, 4294901760
    %1588 = vmatpush.msra.mxu0 %v1587
    %v1589 = vand.u32 %v772, 4294901760
    %v1590 = vsub.f32 %v772, %v1589
    %v1591 = vand.u32 %v1590, 4294901760
    %1592 = vmatpush.msra.mxu0 %v1591
    %v1593 = vand.u32 %v768, 4294901760
    %v1594 = vsub.f32 %v768, %v1593
    %v1595 = vand.u32 %v1594, 4294901760
    %1596 = vmatpush.msra.mxu0 %v1595
    %v1597 = vand.u32 %v764, 4294901760
    %v1598 = vsub.f32 %v764, %v1597
    %v1599 = vand.u32 %v1598, 4294901760
    %1600 = vmatpush.msra.mxu0 %v1599
    %v1601 = vand.u32 %v760, 4294901760
    %v1602 = vsub.f32 %v760, %v1601
    %v1603 = vand.u32 %v1602, 4294901760
    %1604 = vmatpush.msra.mxu0 %v1603
    %v1605 = vand.u32 %v756, 4294901760
    %v1606 = vsub.f32 %v756, %v1605
    %v1607 = vand.u32 %v1606, 4294901760
    %1608 = vmatpush.msra.mxu0 %v1607
    %v1609 = vand.u32 %v752, 4294901760
    %v1610 = vsub.f32 %v752, %v1609
    %v1611 = vand.u32 %v1610, 4294901760
    %1612 = vmatpush.msra.mxu0 %v1611
    %v1613 = vand.u32 %v748, 4294901760
    %v1614 = vsub.f32 %v748, %v1613
    %v1615 = vand.u32 %v1614, 4294901760
    %1616 = vmatpush.msra.mxu0 %v1615
    %v1617 = vand.u32 %v744, 4294901760
    %v1618 = vsub.f32 %v744, %v1617
    %v1619 = vand.u32 %v1618, 4294901760
    %1620 = vmatpush.msra.mxu0 %v1619
    %v1621 = vand.u32 %v740, 4294901760
    %v1622 = vsub.f32 %v740, %v1621
    %v1623 = vand.u32 %v1622, 4294901760
    %1624 = vmatpush.msra.mxu0 %v1623
    %v1625 = vand.u32 %v736, 4294901760
    %v1626 = vsub.f32 %v736, %v1625
    %v1627 = vand.u32 %v1626, 4294901760
    %1628 = vmatpush.msra.mxu0 %v1627
    %v1629 = vand.u32 %v732, 4294901760
    %v1630 = vsub.f32 %v732, %v1629
    %v1631 = vand.u32 %v1630, 4294901760
    %1632 = vmatpush.msra.mxu0 %v1631
    %v1633 = vand.u32 %v728, 4294901760
    %v1634 = vsub.f32 %v728, %v1633
    %v1635 = vand.u32 %v1634, 4294901760
    %1636 = vmatpush.msra.mxu0 %v1635
    %v1637 = vand.u32 %v724, 4294901760
    %v1638 = vsub.f32 %v724, %v1637
    %v1639 = vand.u32 %v1638, 4294901760
    %1640 = vmatpush.msra.mxu0 %v1639
    %v1641 = vand.u32 %v721, 4294901760
    %1642 = vmatmul.f32.gmra.mxu0 %v1641
    %v1643 = vpop.f32.mrf.mxu0
    %v1644 = vadd.f32 %v1575, %v1643
    %1645 = vdwg.mxu0
    %v1646 = vand.u32 %v784, 4294901760
    %1647 = vmatpush.msra.mxu0 %v1646
    %v1648 = vand.u32 %v780, 4294901760
    %1649 = vmatpush.msra.mxu0 %v1648
    %v1650 = vand.u32 %v776, 4294901760
    %1651 = vmatpush.msra.mxu0 %v1650
    %v1652 = vand.u32 %v772, 4294901760
    %1653 = vmatpush.msra.mxu0 %v1652
    %v1654 = vand.u32 %v768, 4294901760
    %1655 = vmatpush.msra.mxu0 %v1654
    %v1656 = vand.u32 %v764, 4294901760
    %1657 = vmatpush.msra.mxu0 %v1656
    %v1658 = vand.u32 %v760, 4294901760
    %1659 = vmatpush.msra.mxu0 %v1658
    %v1660 = vand.u32 %v756, 4294901760
    %1661 = vmatpush.msra.mxu0 %v1660
    %v1662 = vand.u32 %v752, 4294901760
    %1663 = vmatpush.msra.mxu0 %v1662
    %v1664 = vand.u32 %v748, 4294901760
    %1665 = vmatpush.msra.mxu0 %v1664
    %v1666 = vand.u32 %v744, 4294901760
    %1667 = vmatpush.msra.mxu0 %v1666
    %v1668 = vand.u32 %v740, 4294901760
    %1669 = vmatpush.msra.mxu0 %v1668
    %v1670 = vand.u32 %v736, 4294901760
    %1671 = vmatpush.msra.mxu0 %v1670
    %v1672 = vand.u32 %v732, 4294901760
    %1673 = vmatpush.msra.mxu0 %v1672
    %v1674 = vand.u32 %v728, 4294901760
    %1675 = vmatpush.msra.mxu0 %v1674
    %v1676 = vand.u32 %v724, 4294901760
    %1677 = vmatpush.msra.mxu0 %v1676
    %v1678 = vand.u32 %v721, 4294901760
    %1679 = vmatmul.f32.gmra.mxu0 %v1678
    %v1680 = vpop.f32.mrf.mxu0
    %v1681 = vadd.f32 %v1644, %v1680
    %1682 = vdwg.mxu0
    %1683 = vmatpush.msra.mxu0 0.0
    %1684 = vmatpush.msra.mxu0 0.0
    %1685 = vmatpush.msra.mxu0 0.0
    %1686 = vmatpush.msra.mxu0 0.0
    %1687 = vmatpush.msra.mxu0 0.0
    %1688 = vmatpush.msra.mxu0 0.0
    %1689 = vmatpush.msra.mxu0 0.0
    %1690 = vmatpush.msra.mxu0 0.0
    %1691 = vmatpush.msra.mxu0 0.0
    %1692 = vmatpush.msra.mxu0 0.0
    %1693 = vmatpush.msra.mxu0 0.0
    %1694 = vmatpush.msra.mxu0 0.0
    %v1695 = vand.u32 %v800, 4294901760
    %1696 = vmatpush.msra.mxu0 %v1695
    %v1697 = vand.u32 %v796, 4294901760
    %1698 = vmatpush.msra.mxu0 %v1697
    %v1699 = vand.u32 %v792, 4294901760
    %1700 = vmatpush.msra.mxu0 %v1699
    %v1701 = vand.u32 %v788, 4294901760
    %1702 = vmatpush.msra.mxu0 %v1701
    %v1703 = vand.u32 %v814, 4294901760
    %v1704 = vsub.f32 %v814, %v1703
    %v1705 = vand.u32 %v1704, 4294901760
    %v1706 = vsub.f32 %v1704, %v1705
    %v1707 = vand.u32 %v1706, 4294901760
    %1708 = vmatmul.f32.gmra.mxu0 %v1707
    %v1709 = vpop.f32.mrf.mxu0
    %v1710 = vadd.f32 %v1681, %v1709
    %1711 = vdwg.mxu0
    %1712 = vmatpush.msra.mxu0 0.0
    %1713 = vmatpush.msra.mxu0 0.0
    %1714 = vmatpush.msra.mxu0 0.0
    %1715 = vmatpush.msra.mxu0 0.0
    %1716 = vmatpush.msra.mxu0 0.0
    %1717 = vmatpush.msra.mxu0 0.0
    %1718 = vmatpush.msra.mxu0 0.0
    %1719 = vmatpush.msra.mxu0 0.0
    %1720 = vmatpush.msra.mxu0 0.0
    %1721 = vmatpush.msra.mxu0 0.0
    %1722 = vmatpush.msra.mxu0 0.0
    %1723 = vmatpush.msra.mxu0 0.0
    %v1724 = vand.u32 %v800, 4294901760
    %v1725 = vsub.f32 %v800, %v1724
    %v1726 = vand.u32 %v1725, 4294901760
    %v1727 = vsub.f32 %v1725, %v1726
    %v1728 = vand.u32 %v1727, 4294901760
    %1729 = vmatpush.msra.mxu0 %v1728
    %v1730 = vand.u32 %v796, 4294901760
    %v1731 = vsub.f32 %v796, %v1730
    %v1732 = vand.u32 %v1731, 4294901760
    %v1733 = vsub.f32 %v1731, %v1732
    %v1734 = vand.u32 %v1733, 4294901760
    %1735 = vmatpush.msra.mxu0 %v1734
    %v1736 = vand.u32 %v792, 4294901760
    %v1737 = vsub.f32 %v792, %v1736
    %v1738 = vand.u32 %v1737, 4294901760
    %v1739 = vsub.f32 %v1737, %v1738
    %v1740 = vand.u32 %v1739, 4294901760
    %1741 = vmatpush.msra.mxu0 %v1740
    %v1742 = vand.u32 %v788, 4294901760
    %v1743 = vsub.f32 %v788, %v1742
    %v1744 = vand.u32 %v1743, 4294901760
    %v1745 = vsub.f32 %v1743, %v1744
    %v1746 = vand.u32 %v1745, 4294901760
    %1747 = vmatpush.msra.mxu0 %v1746
    %v1748 = vand.u32 %v814, 4294901760
    %1749 = vmatmul.f32.gmra.mxu0 %v1748
    %v1750 = vpop.f32.mrf.mxu0
    %v1751 = vadd.f32 %v1710, %v1750
    %1752 = vdwg.mxu0
    %1753 = vmatpush.msra.mxu0 0.0
    %1754 = vmatpush.msra.mxu0 0.0
    %1755 = vmatpush.msra.mxu0 0.0
    %1756 = vmatpush.msra.mxu0 0.0
    %1757 = vmatpush.msra.mxu0 0.0
    %1758 = vmatpush.msra.mxu0 0.0
    %1759 = vmatpush.msra.mxu0 0.0
    %1760 = vmatpush.msra.mxu0 0.0
    %1761 = vmatpush.msra.mxu0 0.0
    %1762 = vmatpush.msra.mxu0 0.0
    %1763 = vmatpush.msra.mxu0 0.0
    %1764 = vmatpush.msra.mxu0 0.0
    %v1765 = vand.u32 %v800, 4294901760
    %v1766 = vsub.f32 %v800, %v1765
    %1767 = vmatpush.msra.mxu0 %v1766
    %v1768 = vand.u32 %v796, 4294901760
    %v1769 = vsub.f32 %v796, %v1768
    %1770 = vmatpush.msra.mxu0 %v1769
    %v1771 = vand.u32 %v792, 4294901760
    %v1772 = vsub.f32 %v792, %v1771
    %1773 = vmatpush.msra.mxu0 %v1772
    %v1774 = vand.u32 %v788, 4294901760
    %v1775 = vsub.f32 %v788, %v1774
    %1776 = vmatpush.msra.mxu0 %v1775
    %v1777 = vand.u32 %v814, 4294901760
    %v1778 = vsub.f32 %v814, %v1777
    %1779 = vmatmul.f32.gmra.mxu0 %v1778
    %v1780 = vpop.f32.mrf.mxu0
    %v1781 = vadd.f32 %v1751, %v1780
    %1782 = vdwg.mxu0
    %1783 = vmatpush.msra.mxu0 0.0
    %1784 = vmatpush.msra.mxu0 0.0
    %1785 = vmatpush.msra.mxu0 0.0
    %1786 = vmatpush.msra.mxu0 0.0
    %1787 = vmatpush.msra.mxu0 0.0
    %1788 = vmatpush.msra.mxu0 0.0
    %1789 = vmatpush.msra.mxu0 0.0
    %1790 = vmatpush.msra.mxu0 0.0
    %1791 = vmatpush.msra.mxu0 0.0
    %1792 = vmatpush.msra.mxu0 0.0
    %1793 = vmatpush.msra.mxu0 0.0
    %1794 = vmatpush.msra.mxu0 0.0
    %v1795 = vand.u32 %v800, 4294901760
    %1796 = vmatpush.msra.mxu0 %v1795
    %v1797 = vand.u32 %v796, 4294901760
    %1798 = vmatpush.msra.mxu0 %v1797
    %v1799 = vand.u32 %v792, 4294901760
    %1800 = vmatpush.msra.mxu0 %v1799
    %v1801 = vand.u32 %v788, 4294901760
    %1802 = vmatpush.msra.mxu0 %v1801
    %v1803 = vand.u32 %v814, 4294901760
    %v1804 = vsub.f32 %v814, %v1803
    %v1805 = vand.u32 %v1804, 4294901760
    %1806 = vmatmul.f32.gmra.mxu0 %v1805
    %v1807 = vpop.f32.mrf.mxu0
    %v1808 = vadd.f32 %v1781, %v1807
    %1809 = vdwg.mxu0
    %1810 = vmatpush.msra.mxu0 0.0
    %1811 = vmatpush.msra.mxu0 0.0
    %1812 = vmatpush.msra.mxu0 0.0
    %1813 = vmatpush.msra.mxu0 0.0
    %1814 = vmatpush.msra.mxu0 0.0
    %1815 = vmatpush.msra.mxu0 0.0
    %1816 = vmatpush.msra.mxu0 0.0
    %1817 = vmatpush.msra.mxu0 0.0
    %1818 = vmatpush.msra.mxu0 0.0
    %1819 = vmatpush.msra.mxu0 0.0
    %1820 = vmatpush.msra.mxu0 0.0
    %1821 = vmatpush.msra.mxu0 0.0
    %v1822 = vand.u32 %v800, 4294901760
    %v1823 = vsub.f32 %v800, %v1822
    %v1824 = vand.u32 %v1823, 4294901760
    %1825 = vmatpush.msra.mxu0 %v1824
    %v1826 = vand.u32 %v796, 4294901760
    %v1827 = vsub.f32 %v796, %v1826
    %v1828 = vand.u32 %v1827, 4294901760
    %1829 = vmatpush.msra.mxu0 %v1828
    %v1830 = vand.u32 %v792, 4294901760
    %v1831 = vsub.f32 %v792, %v1830
    %v1832 = vand.u32 %v1831, 4294901760
    %1833 = vmatpush.msra.mxu0 %v1832
    %v1834 = vand.u32 %v788, 4294901760
    %v1835 = vsub.f32 %v788, %v1834
    %v1836 = vand.u32 %v1835, 4294901760
    %1837 = vmatpush.msra.mxu0 %v1836
    %v1838 = vand.u32 %v814, 4294901760
    %1839 = vmatmul.f32.gmra.mxu0 %v1838
    %v1840 = vpop.f32.mrf.mxu0
    %v1841 = vadd.f32 %v1808, %v1840
    %1842 = vdwg.mxu0
    %1843 = vmatpush.msra.mxu0 0.0
    %1844 = vmatpush.msra.mxu0 0.0
    %1845 = vmatpush.msra.mxu0 0.0
    %1846 = vmatpush.msra.mxu0 0.0
    %1847 = vmatpush.msra.mxu0 0.0
    %1848 = vmatpush.msra.mxu0 0.0
    %1849 = vmatpush.msra.mxu0 0.0
    %1850 = vmatpush.msra.mxu0 0.0
    %1851 = vmatpush.msra.mxu0 0.0
    %1852 = vmatpush.msra.mxu0 0.0
    %1853 = vmatpush.msra.mxu0 0.0
    %1854 = vmatpush.msra.mxu0 0.0
    %v1855 = vand.u32 %v800, 4294901760
    %1856 = vmatpush.msra.mxu0 %v1855
    %v1857 = vand.u32 %v796, 4294901760
    %1858 = vmatpush.msra.mxu0 %v1857
    %v1859 = vand.u32 %v792, 4294901760
    %1860 = vmatpush.msra.mxu0 %v1859
    %v1861 = vand.u32 %v788, 4294901760
    %1862 = vmatpush.msra.mxu0 %v1861
    %v1863 = vand.u32 %v814, 4294901760
    %1864 = vmatmul.f32.gmra.mxu0 %v1863
    %v1865 = vpop.f32.mrf.mxu0
    %v1866 = vadd.f32 %v1841, %v1865
    %1867 = vdwg.mxu0
    %v1868 = vand.u32 %v785, 4294901760
    %1869 = vmatpush.msra.mxu0 %v1868
    %v1870 = vand.u32 %v781, 4294901760
    %1871 = vmatpush.msra.mxu0 %v1870
    %v1872 = vand.u32 %v777, 4294901760
    %1873 = vmatpush.msra.mxu0 %v1872
    %v1874 = vand.u32 %v773, 4294901760
    %1875 = vmatpush.msra.mxu0 %v1874
    %v1876 = vand.u32 %v769, 4294901760
    %1877 = vmatpush.msra.mxu0 %v1876
    %v1878 = vand.u32 %v765, 4294901760
    %1879 = vmatpush.msra.mxu0 %v1878
    %v1880 = vand.u32 %v761, 4294901760
    %1881 = vmatpush.msra.mxu0 %v1880
    %v1882 = vand.u32 %v757, 4294901760
    %1883 = vmatpush.msra.mxu0 %v1882
    %v1884 = vand.u32 %v753, 4294901760
    %1885 = vmatpush.msra.mxu0 %v1884
    %v1886 = vand.u32 %v749, 4294901760
    %1887 = vmatpush.msra.mxu0 %v1886
    %v1888 = vand.u32 %v745, 4294901760
    %1889 = vmatpush.msra.mxu0 %v1888
    %v1890 = vand.u32 %v741, 4294901760
    %1891 = vmatpush.msra.mxu0 %v1890
    %v1892 = vand.u32 %v737, 4294901760
    %1893 = vmatpush.msra.mxu0 %v1892
    %v1894 = vand.u32 %v733, 4294901760
    %1895 = vmatpush.msra.mxu0 %v1894
    %v1896 = vand.u32 %v729, 4294901760
    %1897 = vmatpush.msra.mxu0 %v1896
    %v1898 = vand.u32 %v725, 4294901760
    %1899 = vmatpush.msra.mxu0 %v1898
    %v1900 = vand.u32 %v721, 4294901760
    %v1901 = vsub.f32 %v721, %v1900
    %v1902 = vand.u32 %v1901, 4294901760
    %v1903 = vsub.f32 %v1901, %v1902
    %v1904 = vand.u32 %v1903, 4294901760
    %1905 = vmatmul.f32.gmra.mxu0 %v1904
    %v1906 = vpop.f32.mrf.mxu0
    %v1907 = vadd.f32 %v807, %v1906
    %1908 = vdwg.mxu0
    %v1909 = vand.u32 %v785, 4294901760
    %v1910 = vsub.f32 %v785, %v1909
    %v1911 = vand.u32 %v1910, 4294901760
    %v1912 = vsub.f32 %v1910, %v1911
    %v1913 = vand.u32 %v1912, 4294901760
    %1914 = vmatpush.msra.mxu0 %v1913
    %v1915 = vand.u32 %v781, 4294901760
    %v1916 = vsub.f32 %v781, %v1915
    %v1917 = vand.u32 %v1916, 4294901760
    %v1918 = vsub.f32 %v1916, %v1917
    %v1919 = vand.u32 %v1918, 4294901760
    %1920 = vmatpush.msra.mxu0 %v1919
    %v1921 = vand.u32 %v777, 4294901760
    %v1922 = vsub.f32 %v777, %v1921
    %v1923 = vand.u32 %v1922, 4294901760
    %v1924 = vsub.f32 %v1922, %v1923
    %v1925 = vand.u32 %v1924, 4294901760
    %1926 = vmatpush.msra.mxu0 %v1925
    %v1927 = vand.u32 %v773, 4294901760
    %v1928 = vsub.f32 %v773, %v1927
    %v1929 = vand.u32 %v1928, 4294901760
    %v1930 = vsub.f32 %v1928, %v1929
    %v1931 = vand.u32 %v1930, 4294901760
    %1932 = vmatpush.msra.mxu0 %v1931
    %v1933 = vand.u32 %v769, 4294901760
    %v1934 = vsub.f32 %v769, %v1933
    %v1935 = vand.u32 %v1934, 4294901760
    %v1936 = vsub.f32 %v1934, %v1935
    %v1937 = vand.u32 %v1936, 4294901760
    %1938 = vmatpush.msra.mxu0 %v1937
    %v1939 = vand.u32 %v765, 4294901760
    %v1940 = vsub.f32 %v765, %v1939
    %v1941 = vand.u32 %v1940, 4294901760
    %v1942 = vsub.f32 %v1940, %v1941
    %v1943 = vand.u32 %v1942, 4294901760
    %1944 = vmatpush.msra.mxu0 %v1943
    %v1945 = vand.u32 %v761, 4294901760
    %v1946 = vsub.f32 %v761, %v1945
    %v1947 = vand.u32 %v1946, 4294901760
    %v1948 = vsub.f32 %v1946, %v1947
    %v1949 = vand.u32 %v1948, 4294901760
    %1950 = vmatpush.msra.mxu0 %v1949
    %v1951 = vand.u32 %v757, 4294901760
    %v1952 = vsub.f32 %v757, %v1951
    %v1953 = vand.u32 %v1952, 4294901760
    %v1954 = vsub.f32 %v1952, %v1953
    %v1955 = vand.u32 %v1954, 4294901760
    %1956 = vmatpush.msra.mxu0 %v1955
    %v1957 = vand.u32 %v753, 4294901760
    %v1958 = vsub.f32 %v753, %v1957
    %v1959 = vand.u32 %v1958, 4294901760
    %v1960 = vsub.f32 %v1958, %v1959
    %v1961 = vand.u32 %v1960, 4294901760
    %1962 = vmatpush.msra.mxu0 %v1961
    %v1963 = vand.u32 %v749, 4294901760
    %v1964 = vsub.f32 %v749, %v1963
    %v1965 = vand.u32 %v1964, 4294901760
    %v1966 = vsub.f32 %v1964, %v1965
    %v1967 = vand.u32 %v1966, 4294901760
    %1968 = vmatpush.msra.mxu0 %v1967
    %v1969 = vand.u32 %v745, 4294901760
    %v1970 = vsub.f32 %v745, %v1969
    %v1971 = vand.u32 %v1970, 4294901760
    %v1972 = vsub.f32 %v1970, %v1971
    %v1973 = vand.u32 %v1972, 4294901760
    %1974 = vmatpush.msra.mxu0 %v1973
    %v1975 = vand.u32 %v741, 4294901760
    %v1976 = vsub.f32 %v741, %v1975
    %v1977 = vand.u32 %v1976, 4294901760
    %v1978 = vsub.f32 %v1976, %v1977
    %v1979 = vand.u32 %v1978, 4294901760
    %1980 = vmatpush.msra.mxu0 %v1979
    %v1981 = vand.u32 %v737, 4294901760
    %v1982 = vsub.f32 %v737, %v1981
    %v1983 = vand.u32 %v1982, 4294901760
    %v1984 = vsub.f32 %v1982, %v1983
    %v1985 = vand.u32 %v1984, 4294901760
    %1986 = vmatpush.msra.mxu0 %v1985
    %v1987 = vand.u32 %v733, 4294901760
    %v1988 = vsub.f32 %v733, %v1987
    %v1989 = vand.u32 %v1988, 4294901760
    %v1990 = vsub.f32 %v1988, %v1989
    %v1991 = vand.u32 %v1990, 4294901760
    %1992 = vmatpush.msra.mxu0 %v1991
    %v1993 = vand.u32 %v729, 4294901760
    %v1994 = vsub.f32 %v729, %v1993
    %v1995 = vand.u32 %v1994, 4294901760
    %v1996 = vsub.f32 %v1994, %v1995
    %v1997 = vand.u32 %v1996, 4294901760
    %1998 = vmatpush.msra.mxu0 %v1997
    %v1999 = vand.u32 %v725, 4294901760
    %v2000 = vsub.f32 %v725, %v1999
    %v2001 = vand.u32 %v2000, 4294901760
    %v2002 = vsub.f32 %v2000, %v2001
    %v2003 = vand.u32 %v2002, 4294901760
    %2004 = vmatpush.msra.mxu0 %v2003
    %v2005 = vand.u32 %v721, 4294901760
    %2006 = vmatmul.f32.gmra.mxu0 %v2005
    %v2007 = vpop.f32.mrf.mxu0
    %v2008 = vadd.f32 %v1907, %v2007
    %2009 = vdwg.mxu0
    %v2010 = vand.u32 %v785, 4294901760
    %v2011 = vsub.f32 %v785, %v2010
    %2012 = vmatpush.msra.mxu0 %v2011
    %v2013 = vand.u32 %v781, 4294901760
    %v2014 = vsub.f32 %v781, %v2013
    %2015 = vmatpush.msra.mxu0 %v2014
    %v2016 = vand.u32 %v777, 4294901760
    %v2017 = vsub.f32 %v777, %v2016
    %2018 = vmatpush.msra.mxu0 %v2017
    %v2019 = vand.u32 %v773, 4294901760
    %v2020 = vsub.f32 %v773, %v2019
    %2021 = vmatpush.msra.mxu0 %v2020
    %v2022 = vand.u32 %v769, 4294901760
    %v2023 = vsub.f32 %v769, %v2022
    %2024 = vmatpush.msra.mxu0 %v2023
    %v2025 = vand.u32 %v765, 4294901760
    %v2026 = vsub.f32 %v765, %v2025
    %2027 = vmatpush.msra.mxu0 %v2026
    %v2028 = vand.u32 %v761, 4294901760
    %v2029 = vsub.f32 %v761, %v2028
    %2030 = vmatpush.msra.mxu0 %v2029
    %v2031 = vand.u32 %v757, 4294901760
    %v2032 = vsub.f32 %v757, %v2031
    %2033 = vmatpush.msra.mxu0 %v2032
    %v2034 = vand.u32 %v753, 4294901760
    %v2035 = vsub.f32 %v753, %v2034
    %2036 = vmatpush.msra.mxu0 %v2035
    %v2037 = vand.u32 %v749, 4294901760
    %v2038 = vsub.f32 %v749, %v2037
    %2039 = vmatpush.msra.mxu0 %v2038
    %v2040 = vand.u32 %v745, 4294901760
    %v2041 = vsub.f32 %v745, %v2040
    %2042 = vmatpush.msra.mxu0 %v2041
    %v2043 = vand.u32 %v741, 4294901760
    %v2044 = vsub.f32 %v741, %v2043
    %2045 = vmatpush.msra.mxu0 %v2044
    %v2046 = vand.u32 %v737, 4294901760
    %v2047 = vsub.f32 %v737, %v2046
    %2048 = vmatpush.msra.mxu0 %v2047
    %v2049 = vand.u32 %v733, 4294901760
    %v2050 = vsub.f32 %v733, %v2049
    %2051 = vmatpush.msra.mxu0 %v2050
    %v2052 = vand.u32 %v729, 4294901760
    %v2053 = vsub.f32 %v729, %v2052
    %2054 = vmatpush.msra.mxu0 %v2053
    %v2055 = vand.u32 %v725, 4294901760
    %v2056 = vsub.f32 %v725, %v2055
    %2057 = vmatpush.msra.mxu0 %v2056
    %v2058 = vand.u32 %v721, 4294901760
    %v2059 = vsub.f32 %v721, %v2058
    %2060 = vmatmul.f32.gmra.mxu0 %v2059
    %v2061 = vpop.f32.mrf.mxu0
    %v2062 = vadd.f32 %v2008, %v2061
    %2063 = vdwg.mxu0
    %v2064 = vand.u32 %v785, 4294901760
    %2065 = vmatpush.msra.mxu0 %v2064
    %v2066 = vand.u32 %v781, 4294901760
    %2067 = vmatpush.msra.mxu0 %v2066
    %v2068 = vand.u32 %v777, 4294901760
    %2069 = vmatpush.msra.mxu0 %v2068
    %v2070 = vand.u32 %v773, 4294901760
    %2071 = vmatpush.msra.mxu0 %v2070
    %v2072 = vand.u32 %v769, 4294901760
    %2073 = vmatpush.msra.mxu0 %v2072
    %v2074 = vand.u32 %v765, 4294901760
    %2075 = vmatpush.msra.mxu0 %v2074
    %v2076 = vand.u32 %v761, 4294901760
    %2077 = vmatpush.msra.mxu0 %v2076
    %v2078 = vand.u32 %v757, 4294901760
    %2079 = vmatpush.msra.mxu0 %v2078
    %v2080 = vand.u32 %v753, 4294901760
    %2081 = vmatpush.msra.mxu0 %v2080
    %v2082 = vand.u32 %v749, 4294901760
    %2083 = vmatpush.msra.mxu0 %v2082
    %v2084 = vand.u32 %v745, 4294901760
    %2085 = vmatpush.msra.mxu0 %v2084
    %v2086 = vand.u32 %v741, 4294901760
    %2087 = vmatpush.msra.mxu0 %v2086
    %v2088 = vand.u32 %v737, 4294901760
    %2089 = vmatpush.msra.mxu0 %v2088
    %v2090 = vand.u32 %v733, 4294901760
    %2091 = vmatpush.msra.mxu0 %v2090
    %v2092 = vand.u32 %v729, 4294901760
    %2093 = vmatpush.msra.mxu0 %v2092
    %v2094 = vand.u32 %v725, 4294901760
    %2095 = vmatpush.msra.mxu0 %v2094
    %v2096 = vand.u32 %v721, 4294901760
    %v2097 = vsub.f32 %v721, %v2096
    %v2098 = vand.u32 %v2097, 4294901760
    %2099 = vmatmul.f32.gmra.mxu0 %v2098
    %v2100 = vpop.f32.mrf.mxu0
    %v2101 = vadd.f32 %v2062, %v2100
    %2102 = vdwg.mxu0
    %v2103 = vand.u32 %v785, 4294901760
    %v2104 = vsub.f32 %v785, %v2103
    %v2105 = vand.u32 %v2104, 4294901760
    %2106 = vmatpush.msra.mxu0 %v2105
    %v2107 = vand.u32 %v781, 4294901760
    %v2108 = vsub.f32 %v781, %v2107
    %v2109 = vand.u32 %v2108, 4294901760
    %2110 = vmatpush.msra.mxu0 %v2109
    %v2111 = vand.u32 %v777, 4294901760
    %v2112 = vsub.f32 %v777, %v2111
    %v2113 = vand.u32 %v2112, 4294901760
    %2114 = vmatpush.msra.mxu0 %v2113
    %v2115 = vand.u32 %v773, 4294901760
    %v2116 = vsub.f32 %v773, %v2115
    %v2117 = vand.u32 %v2116, 4294901760
    %2118 = vmatpush.msra.mxu0 %v2117
    %v2119 = vand.u32 %v769, 4294901760
    %v2120 = vsub.f32 %v769, %v2119
    %v2121 = vand.u32 %v2120, 4294901760
    %2122 = vmatpush.msra.mxu0 %v2121
    %v2123 = vand.u32 %v765, 4294901760
    %v2124 = vsub.f32 %v765, %v2123
    %v2125 = vand.u32 %v2124, 4294901760
    %2126 = vmatpush.msra.mxu0 %v2125
    %v2127 = vand.u32 %v761, 4294901760
    %v2128 = vsub.f32 %v761, %v2127
    %v2129 = vand.u32 %v2128, 4294901760
    %2130 = vmatpush.msra.mxu0 %v2129
    %v2131 = vand.u32 %v757, 4294901760
    %v2132 = vsub.f32 %v757, %v2131
    %v2133 = vand.u32 %v2132, 4294901760
    %2134 = vmatpush.msra.mxu0 %v2133
    %v2135 = vand.u32 %v753, 4294901760
    %v2136 = vsub.f32 %v753, %v2135
    %v2137 = vand.u32 %v2136, 4294901760
    %2138 = vmatpush.msra.mxu0 %v2137
    %v2139 = vand.u32 %v749, 4294901760
    %v2140 = vsub.f32 %v749, %v2139
    %v2141 = vand.u32 %v2140, 4294901760
    %2142 = vmatpush.msra.mxu0 %v2141
    %v2143 = vand.u32 %v745, 4294901760
    %v2144 = vsub.f32 %v745, %v2143
    %v2145 = vand.u32 %v2144, 4294901760
    %2146 = vmatpush.msra.mxu0 %v2145
    %v2147 = vand.u32 %v741, 4294901760
    %v2148 = vsub.f32 %v741, %v2147
    %v2149 = vand.u32 %v2148, 4294901760
    %2150 = vmatpush.msra.mxu0 %v2149
    %v2151 = vand.u32 %v737, 4294901760
    %v2152 = vsub.f32 %v737, %v2151
    %v2153 = vand.u32 %v2152, 4294901760
    %2154 = vmatpush.msra.mxu0 %v2153
    %v2155 = vand.u32 %v733, 4294901760
    %v2156 = vsub.f32 %v733, %v2155
    %v2157 = vand.u32 %v2156, 4294901760
    %2158 = vmatpush.msra.mxu0 %v2157
    %v2159 = vand.u32 %v729, 4294901760
    %v2160 = vsub.f32 %v729, %v2159
    %v2161 = vand.u32 %v2160, 4294901760
    %2162 = vmatpush.msra.mxu0 %v2161
    %v2163 = vand.u32 %v725, 4294901760
    %v2164 = vsub.f32 %v725, %v2163
    %v2165 = vand.u32 %v2164, 4294901760
    %2166 = vmatpush.msra.mxu0 %v2165
    %v2167 = vand.u32 %v721, 4294901760
    %2168 = vmatmul.f32.gmra.mxu0 %v2167
    %v2169 = vpop.f32.mrf.mxu0
    %v2170 = vadd.f32 %v2101, %v2169
    %2171 = vdwg.mxu0
    %v2172 = vand.u32 %v785, 4294901760
    %2173 = vmatpush.msra.mxu0 %v2172
    %v2174 = vand.u32 %v781, 4294901760
    %2175 = vmatpush.msra.mxu0 %v2174
    %v2176 = vand.u32 %v777, 4294901760
    %2177 = vmatpush.msra.mxu0 %v2176
    %v2178 = vand.u32 %v773, 4294901760
    %2179 = vmatpush.msra.mxu0 %v2178
    %v2180 = vand.u32 %v769, 4294901760
    %2181 = vmatpush.msra.mxu0 %v2180
    %v2182 = vand.u32 %v765, 4294901760
    %2183 = vmatpush.msra.mxu0 %v2182
    %v2184 = vand.u32 %v761, 4294901760
    %2185 = vmatpush.msra.mxu0 %v2184
    %v2186 = vand.u32 %v757, 4294901760
    %2187 = vmatpush.msra.mxu0 %v2186
    %v2188 = vand.u32 %v753, 4294901760
    %2189 = vmatpush.msra.mxu0 %v2188
    %v2190 = vand.u32 %v749, 4294901760
    %2191 = vmatpush.msra.mxu0 %v2190
    %v2192 = vand.u32 %v745, 4294901760
    %2193 = vmatpush.msra.mxu0 %v2192
    %v2194 = vand.u32 %v741, 4294901760
    %2195 = vmatpush.msra.mxu0 %v2194
    %v2196 = vand.u32 %v737, 4294901760
    %2197 = vmatpush.msra.mxu0 %v2196
    %v2198 = vand.u32 %v733, 4294901760
    %2199 = vmatpush.msra.mxu0 %v2198
    %v2200 = vand.u32 %v729, 4294901760
    %2201 = vmatpush.msra.mxu0 %v2200
    %v2202 = vand.u32 %v725, 4294901760
    %2203 = vmatpush.msra.mxu0 %v2202
    %v2204 = vand.u32 %v721, 4294901760
    %2205 = vmatmul.f32.gmra.mxu0 %v2204
    %v2206 = vpop.f32.mrf.mxu0
    %v2207 = vadd.f32 %v2170, %v2206
    %2208 = vdwg.mxu0
    %2209 = vmatpush.msra.mxu0 0.0
    %2210 = vmatpush.msra.mxu0 0.0
    %2211 = vmatpush.msra.mxu0 0.0
    %2212 = vmatpush.msra.mxu0 0.0
    %2213 = vmatpush.msra.mxu0 0.0
    %2214 = vmatpush.msra.mxu0 0.0
    %2215 = vmatpush.msra.mxu0 0.0
    %2216 = vmatpush.msra.mxu0 0.0
    %2217 = vmatpush.msra.mxu0 0.0
    %2218 = vmatpush.msra.mxu0 0.0
    %2219 = vmatpush.msra.mxu0 0.0
    %2220 = vmatpush.msra.mxu0 0.0
    %v2221 = vand.u32 %v801, 4294901760
    %2222 = vmatpush.msra.mxu0 %v2221
    %v2223 = vand.u32 %v797, 4294901760
    %2224 = vmatpush.msra.mxu0 %v2223
    %v2225 = vand.u32 %v793, 4294901760
    %2226 = vmatpush.msra.mxu0 %v2225
    %v2227 = vand.u32 %v789, 4294901760
    %2228 = vmatpush.msra.mxu0 %v2227
    %v2229 = vand.u32 %v814, 4294901760
    %v2230 = vsub.f32 %v814, %v2229
    %v2231 = vand.u32 %v2230, 4294901760
    %v2232 = vsub.f32 %v2230, %v2231
    %v2233 = vand.u32 %v2232, 4294901760
    %2234 = vmatmul.f32.gmra.mxu0 %v2233
    %v2235 = vpop.f32.mrf.mxu0
    %v2236 = vadd.f32 %v2207, %v2235
    %2237 = vdwg.mxu0
    %2238 = vmatpush.msra.mxu0 0.0
    %2239 = vmatpush.msra.mxu0 0.0
    %2240 = vmatpush.msra.mxu0 0.0
    %2241 = vmatpush.msra.mxu0 0.0
    %2242 = vmatpush.msra.mxu0 0.0
    %2243 = vmatpush.msra.mxu0 0.0
    %2244 = vmatpush.msra.mxu0 0.0
    %2245 = vmatpush.msra.mxu0 0.0
    %2246 = vmatpush.msra.mxu0 0.0
    %2247 = vmatpush.msra.mxu0 0.0
    %2248 = vmatpush.msra.mxu0 0.0
    %2249 = vmatpush.msra.mxu0 0.0
    %v2250 = vand.u32 %v801, 4294901760
    %v2251 = vsub.f32 %v801, %v2250
    %v2252 = vand.u32 %v2251, 4294901760
    %v2253 = vsub.f32 %v2251, %v2252
    %v2254 = vand.u32 %v2253, 4294901760
    %2255 = vmatpush.msra.mxu0 %v2254
    %v2256 = vand.u32 %v797, 4294901760
    %v2257 = vsub.f32 %v797, %v2256
    %v2258 = vand.u32 %v2257, 4294901760
    %v2259 = vsub.f32 %v2257, %v2258
    %v2260 = vand.u32 %v2259, 4294901760
    %2261 = vmatpush.msra.mxu0 %v2260
    %v2262 = vand.u32 %v793, 4294901760
    %v2263 = vsub.f32 %v793, %v2262
    %v2264 = vand.u32 %v2263, 4294901760
    %v2265 = vsub.f32 %v2263, %v2264
    %v2266 = vand.u32 %v2265, 4294901760
    %2267 = vmatpush.msra.mxu0 %v2266
    %v2268 = vand.u32 %v789, 4294901760
    %v2269 = vsub.f32 %v789, %v2268
    %v2270 = vand.u32 %v2269, 4294901760
    %v2271 = vsub.f32 %v2269, %v2270
    %v2272 = vand.u32 %v2271, 4294901760
    %2273 = vmatpush.msra.mxu0 %v2272
    %v2274 = vand.u32 %v814, 4294901760
    %2275 = vmatmul.f32.gmra.mxu0 %v2274
    %v2276 = vpop.f32.mrf.mxu0
    %v2277 = vadd.f32 %v2236, %v2276
    %2278 = vdwg.mxu0
    %2279 = vmatpush.msra.mxu0 0.0
    %2280 = vmatpush.msra.mxu0 0.0
    %2281 = vmatpush.msra.mxu0 0.0
    %2282 = vmatpush.msra.mxu0 0.0
    %2283 = vmatpush.msra.mxu0 0.0
    %2284 = vmatpush.msra.mxu0 0.0
    %2285 = vmatpush.msra.mxu0 0.0
    %2286 = vmatpush.msra.mxu0 0.0
    %2287 = vmatpush.msra.mxu0 0.0
    %2288 = vmatpush.msra.mxu0 0.0
    %2289 = vmatpush.msra.mxu0 0.0
    %2290 = vmatpush.msra.mxu0 0.0
    %v2291 = vand.u32 %v801, 4294901760
    %v2292 = vsub.f32 %v801, %v2291
    %2293 = vmatpush.msra.mxu0 %v2292
    %v2294 = vand.u32 %v797, 4294901760
    %v2295 = vsub.f32 %v797, %v2294
    %2296 = vmatpush.msra.mxu0 %v2295
    %v2297 = vand.u32 %v793, 4294901760
    %v2298 = vsub.f32 %v793, %v2297
    %2299 = vmatpush.msra.mxu0 %v2298
    %v2300 = vand.u32 %v789, 4294901760
    %v2301 = vsub.f32 %v789, %v2300
    %2302 = vmatpush.msra.mxu0 %v2301
    %v2303 = vand.u32 %v814, 4294901760
    %v2304 = vsub.f32 %v814, %v2303
    %2305 = vmatmul.f32.gmra.mxu0 %v2304
    %v2306 = vpop.f32.mrf.mxu0
    %v2307 = vadd.f32 %v2277, %v2306
    %2308 = vdwg.mxu0
    %2309 = vmatpush.msra.mxu0 0.0
    %2310 = vmatpush.msra.mxu0 0.0
    %2311 = vmatpush.msra.mxu0 0.0
    %2312 = vmatpush.msra.mxu0 0.0
    %2313 = vmatpush.msra.mxu0 0.0
    %2314 = vmatpush.msra.mxu0 0.0
    %2315 = vmatpush.msra.mxu0 0.0
    %2316 = vmatpush.msra.mxu0 0.0
    %2317 = vmatpush.msra.mxu0 0.0
    %2318 = vmatpush.msra.mxu0 0.0
    %2319 = vmatpush.msra.mxu0 0.0
    %2320 = vmatpush.msra.mxu0 0.0
    %v2321 = vand.u32 %v801, 4294901760
    %2322 = vmatpush.msra.mxu0 %v2321
    %v2323 = vand.u32 %v797, 4294901760
    %2324 = vmatpush.msra.mxu0 %v2323
    %v2325 = vand.u32 %v793, 4294901760
    %2326 = vmatpush.msra.mxu0 %v2325
    %v2327 = vand.u32 %v789, 4294901760
    %2328 = vmatpush.msra.mxu0 %v2327
    %v2329 = vand.u32 %v814, 4294901760
    %v2330 = vsub.f32 %v814, %v2329
    %v2331 = vand.u32 %v2330, 4294901760
    %2332 = vmatmul.f32.gmra.mxu0 %v2331
    %v2333 = vpop.f32.mrf.mxu0
    %v2334 = vadd.f32 %v2307, %v2333
    %2335 = vdwg.mxu0
    %2336 = vmatpush.msra.mxu0 0.0
    %2337 = vmatpush.msra.mxu0 0.0
    %2338 = vmatpush.msra.mxu0 0.0
    %2339 = vmatpush.msra.mxu0 0.0
    %2340 = vmatpush.msra.mxu0 0.0
    %2341 = vmatpush.msra.mxu0 0.0
    %2342 = vmatpush.msra.mxu0 0.0
    %2343 = vmatpush.msra.mxu0 0.0
    %2344 = vmatpush.msra.mxu0 0.0
    %2345 = vmatpush.msra.mxu0 0.0
    %2346 = vmatpush.msra.mxu0 0.0
    %2347 = vmatpush.msra.mxu0 0.0
    %v2348 = vand.u32 %v801, 4294901760
    %v2349 = vsub.f32 %v801, %v2348
    %v2350 = vand.u32 %v2349, 4294901760
    %2351 = vmatpush.msra.mxu0 %v2350
    %v2352 = vand.u32 %v797, 4294901760
    %v2353 = vsub.f32 %v797, %v2352
    %v2354 = vand.u32 %v2353, 4294901760
    %2355 = vmatpush.msra.mxu0 %v2354
    %v2356 = vand.u32 %v793, 4294901760
    %v2357 = vsub.f32 %v793, %v2356
    %v2358 = vand.u32 %v2357, 4294901760
    %2359 = vmatpush.msra.mxu0 %v2358
    %v2360 = vand.u32 %v789, 4294901760
    %v2361 = vsub.f32 %v789, %v2360
    %v2362 = vand.u32 %v2361, 4294901760
    %2363 = vmatpush.msra.mxu0 %v2362
    %v2364 = vand.u32 %v814, 4294901760
    %2365 = vmatmul.f32.gmra.mxu0 %v2364
    %v2366 = vpop.f32.mrf.mxu0
    %v2367 = vadd.f32 %v2334, %v2366
    %2368 = vdwg.mxu0
    %2369 = vmatpush.msra.mxu0 0.0
    %2370 = vmatpush.msra.mxu0 0.0
    %2371 = vmatpush.msra.mxu0 0.0
    %2372 = vmatpush.msra.mxu0 0.0
    %2373 = vmatpush.msra.mxu0 0.0
    %2374 = vmatpush.msra.mxu0 0.0
    %2375 = vmatpush.msra.mxu0 0.0
    %2376 = vmatpush.msra.mxu0 0.0
    %2377 = vmatpush.msra.mxu0 0.0
    %2378 = vmatpush.msra.mxu0 0.0
    %2379 = vmatpush.msra.mxu0 0.0
    %2380 = vmatpush.msra.mxu0 0.0
    %v2381 = vand.u32 %v801, 4294901760
    %2382 = vmatpush.msra.mxu0 %v2381
    %v2383 = vand.u32 %v797, 4294901760
    %2384 = vmatpush.msra.mxu0 %v2383
    %v2385 = vand.u32 %v793, 4294901760
    %2386 = vmatpush.msra.mxu0 %v2385
    %v2387 = vand.u32 %v789, 4294901760
    %2388 = vmatpush.msra.mxu0 %v2387
    %v2389 = vand.u32 %v814, 4294901760
    %2390 = vmatmul.f32.gmra.mxu0 %v2389
    %v2391 = vpop.f32.mrf.mxu0
    %v2392 = vadd.f32 %v2367, %v2391
    %2393 = vdwg.mxu0
    %v2394 = vand.u32 %v786, 4294901760
    %2395 = vmatpush.msra.mxu0 %v2394
    %v2396 = vand.u32 %v782, 4294901760
    %2397 = vmatpush.msra.mxu0 %v2396
    %v2398 = vand.u32 %v778, 4294901760
    %2399 = vmatpush.msra.mxu0 %v2398
    %v2400 = vand.u32 %v774, 4294901760
    %2401 = vmatpush.msra.mxu0 %v2400
    %v2402 = vand.u32 %v770, 4294901760
    %2403 = vmatpush.msra.mxu0 %v2402
    %v2404 = vand.u32 %v766, 4294901760
    %2405 = vmatpush.msra.mxu0 %v2404
    %v2406 = vand.u32 %v762, 4294901760
    %2407 = vmatpush.msra.mxu0 %v2406
    %v2408 = vand.u32 %v758, 4294901760
    %2409 = vmatpush.msra.mxu0 %v2408
    %v2410 = vand.u32 %v754, 4294901760
    %2411 = vmatpush.msra.mxu0 %v2410
    %v2412 = vand.u32 %v750, 4294901760
    %2413 = vmatpush.msra.mxu0 %v2412
    %v2414 = vand.u32 %v746, 4294901760
    %2415 = vmatpush.msra.mxu0 %v2414
    %v2416 = vand.u32 %v742, 4294901760
    %2417 = vmatpush.msra.mxu0 %v2416
    %v2418 = vand.u32 %v738, 4294901760
    %2419 = vmatpush.msra.mxu0 %v2418
    %v2420 = vand.u32 %v734, 4294901760
    %2421 = vmatpush.msra.mxu0 %v2420
    %v2422 = vand.u32 %v730, 4294901760
    %2423 = vmatpush.msra.mxu0 %v2422
    %v2424 = vand.u32 %v726, 4294901760
    %2425 = vmatpush.msra.mxu0 %v2424
    %v2426 = vand.u32 %v721, 4294901760
    %v2427 = vsub.f32 %v721, %v2426
    %v2428 = vand.u32 %v2427, 4294901760
    %v2429 = vsub.f32 %v2427, %v2428
    %v2430 = vand.u32 %v2429, 4294901760
    %2431 = vmatmul.f32.gmra.mxu0 %v2430
    %v2432 = vpop.f32.mrf.mxu0
    %v2433 = vadd.f32 %v808, %v2432
    %2434 = vdwg.mxu0
    %v2435 = vand.u32 %v786, 4294901760
    %v2436 = vsub.f32 %v786, %v2435
    %v2437 = vand.u32 %v2436, 4294901760
    %v2438 = vsub.f32 %v2436, %v2437
    %v2439 = vand.u32 %v2438, 4294901760
    %2440 = vmatpush.msra.mxu0 %v2439
    %v2441 = vand.u32 %v782, 4294901760
    %v2442 = vsub.f32 %v782, %v2441
    %v2443 = vand.u32 %v2442, 4294901760
    %v2444 = vsub.f32 %v2442, %v2443
    %v2445 = vand.u32 %v2444, 4294901760
    %2446 = vmatpush.msra.mxu0 %v2445
    %v2447 = vand.u32 %v778, 4294901760
    %v2448 = vsub.f32 %v778, %v2447
    %v2449 = vand.u32 %v2448, 4294901760
    %v2450 = vsub.f32 %v2448, %v2449
    %v2451 = vand.u32 %v2450, 4294901760
    %2452 = vmatpush.msra.mxu0 %v2451
    %v2453 = vand.u32 %v774, 4294901760
    %v2454 = vsub.f32 %v774, %v2453
    %v2455 = vand.u32 %v2454, 4294901760
    %v2456 = vsub.f32 %v2454, %v2455
    %v2457 = vand.u32 %v2456, 4294901760
    %2458 = vmatpush.msra.mxu0 %v2457
    %v2459 = vand.u32 %v770, 4294901760
    %v2460 = vsub.f32 %v770, %v2459
    %v2461 = vand.u32 %v2460, 4294901760
    %v2462 = vsub.f32 %v2460, %v2461
    %v2463 = vand.u32 %v2462, 4294901760
    %2464 = vmatpush.msra.mxu0 %v2463
    %v2465 = vand.u32 %v766, 4294901760
    %v2466 = vsub.f32 %v766, %v2465
    %v2467 = vand.u32 %v2466, 4294901760
    %v2468 = vsub.f32 %v2466, %v2467
    %v2469 = vand.u32 %v2468, 4294901760
    %2470 = vmatpush.msra.mxu0 %v2469
    %v2471 = vand.u32 %v762, 4294901760
    %v2472 = vsub.f32 %v762, %v2471
    %v2473 = vand.u32 %v2472, 4294901760
    %v2474 = vsub.f32 %v2472, %v2473
    %v2475 = vand.u32 %v2474, 4294901760
    %2476 = vmatpush.msra.mxu0 %v2475
    %v2477 = vand.u32 %v758, 4294901760
    %v2478 = vsub.f32 %v758, %v2477
    %v2479 = vand.u32 %v2478, 4294901760
    %v2480 = vsub.f32 %v2478, %v2479
    %v2481 = vand.u32 %v2480, 4294901760
    %2482 = vmatpush.msra.mxu0 %v2481
    %v2483 = vand.u32 %v754, 4294901760
    %v2484 = vsub.f32 %v754, %v2483
    %v2485 = vand.u32 %v2484, 4294901760
    %v2486 = vsub.f32 %v2484, %v2485
    %v2487 = vand.u32 %v2486, 4294901760
    %2488 = vmatpush.msra.mxu0 %v2487
    %v2489 = vand.u32 %v750, 4294901760
    %v2490 = vsub.f32 %v750, %v2489
    %v2491 = vand.u32 %v2490, 4294901760
    %v2492 = vsub.f32 %v2490, %v2491
    %v2493 = vand.u32 %v2492, 4294901760
    %2494 = vmatpush.msra.mxu0 %v2493
    %v2495 = vand.u32 %v746, 4294901760
    %v2496 = vsub.f32 %v746, %v2495
    %v2497 = vand.u32 %v2496, 4294901760
    %v2498 = vsub.f32 %v2496, %v2497
    %v2499 = vand.u32 %v2498, 4294901760
    %2500 = vmatpush.msra.mxu0 %v2499
    %v2501 = vand.u32 %v742, 4294901760
    %v2502 = vsub.f32 %v742, %v2501
    %v2503 = vand.u32 %v2502, 4294901760
    %v2504 = vsub.f32 %v2502, %v2503
    %v2505 = vand.u32 %v2504, 4294901760
    %2506 = vmatpush.msra.mxu0 %v2505
    %v2507 = vand.u32 %v738, 4294901760
    %v2508 = vsub.f32 %v738, %v2507
    %v2509 = vand.u32 %v2508, 4294901760
    %v2510 = vsub.f32 %v2508, %v2509
    %v2511 = vand.u32 %v2510, 4294901760
    %2512 = vmatpush.msra.mxu0 %v2511
    %v2513 = vand.u32 %v734, 4294901760
    %v2514 = vsub.f32 %v734, %v2513
    %v2515 = vand.u32 %v2514, 4294901760
    %v2516 = vsub.f32 %v2514, %v2515
    %v2517 = vand.u32 %v2516, 4294901760
    %2518 = vmatpush.msra.mxu0 %v2517
    %v2519 = vand.u32 %v730, 4294901760
    %v2520 = vsub.f32 %v730, %v2519
    %v2521 = vand.u32 %v2520, 4294901760
    %v2522 = vsub.f32 %v2520, %v2521
    %v2523 = vand.u32 %v2522, 4294901760
    %2524 = vmatpush.msra.mxu0 %v2523
    %v2525 = vand.u32 %v726, 4294901760
    %v2526 = vsub.f32 %v726, %v2525
    %v2527 = vand.u32 %v2526, 4294901760
    %v2528 = vsub.f32 %v2526, %v2527
    %v2529 = vand.u32 %v2528, 4294901760
    %2530 = vmatpush.msra.mxu0 %v2529
    %v2531 = vand.u32 %v721, 4294901760
    %2532 = vmatmul.f32.gmra.mxu0 %v2531
    %v2533 = vpop.f32.mrf.mxu0
    %v2534 = vadd.f32 %v2433, %v2533
    %2535 = vdwg.mxu0
    %v2536 = vand.u32 %v786, 4294901760
    %v2537 = vsub.f32 %v786, %v2536
    %2538 = vmatpush.msra.mxu0 %v2537
    %v2539 = vand.u32 %v782, 4294901760
    %v2540 = vsub.f32 %v782, %v2539
    %2541 = vmatpush.msra.mxu0 %v2540
    %v2542 = vand.u32 %v778, 4294901760
    %v2543 = vsub.f32 %v778, %v2542
    %2544 = vmatpush.msra.mxu0 %v2543
    %v2545 = vand.u32 %v774, 4294901760
    %v2546 = vsub.f32 %v774, %v2545
    %2547 = vmatpush.msra.mxu0 %v2546
    %v2548 = vand.u32 %v770, 4294901760
    %v2549 = vsub.f32 %v770, %v2548
    %2550 = vmatpush.msra.mxu0 %v2549
    %v2551 = vand.u32 %v766, 4294901760
    %v2552 = vsub.f32 %v766, %v2551
    %2553 = vmatpush.msra.mxu0 %v2552
    %v2554 = vand.u32 %v762, 4294901760
    %v2555 = vsub.f32 %v762, %v2554
    %2556 = vmatpush.msra.mxu0 %v2555
    %v2557 = vand.u32 %v758, 4294901760
    %v2558 = vsub.f32 %v758, %v2557
    %2559 = vmatpush.msra.mxu0 %v2558
    %v2560 = vand.u32 %v754, 4294901760
    %v2561 = vsub.f32 %v754, %v2560
    %2562 = vmatpush.msra.mxu0 %v2561
    %v2563 = vand.u32 %v750, 4294901760
    %v2564 = vsub.f32 %v750, %v2563
    %2565 = vmatpush.msra.mxu0 %v2564
    %v2566 = vand.u32 %v746, 4294901760
    %v2567 = vsub.f32 %v746, %v2566
    %2568 = vmatpush.msra.mxu0 %v2567
    %v2569 = vand.u32 %v742, 4294901760
    %v2570 = vsub.f32 %v742, %v2569
    %2571 = vmatpush.msra.mxu0 %v2570
    %v2572 = vand.u32 %v738, 4294901760
    %v2573 = vsub.f32 %v738, %v2572
    %2574 = vmatpush.msra.mxu0 %v2573
    %v2575 = vand.u32 %v734, 4294901760
    %v2576 = vsub.f32 %v734, %v2575
    %2577 = vmatpush.msra.mxu0 %v2576
    %v2578 = vand.u32 %v730, 4294901760
    %v2579 = vsub.f32 %v730, %v2578
    %2580 = vmatpush.msra.mxu0 %v2579
    %v2581 = vand.u32 %v726, 4294901760
    %v2582 = vsub.f32 %v726, %v2581
    %2583 = vmatpush.msra.mxu0 %v2582
    %v2584 = vand.u32 %v721, 4294901760
    %v2585 = vsub.f32 %v721, %v2584
    %2586 = vmatmul.f32.gmra.mxu0 %v2585
    %v2587 = vpop.f32.mrf.mxu0
    %v2588 = vadd.f32 %v2534, %v2587
    %2589 = vdwg.mxu0
    %v2590 = vand.u32 %v786, 4294901760
    %2591 = vmatpush.msra.mxu0 %v2590
    %v2592 = vand.u32 %v782, 4294901760
    %2593 = vmatpush.msra.mxu0 %v2592
    %v2594 = vand.u32 %v778, 4294901760
    %2595 = vmatpush.msra.mxu0 %v2594
    %v2596 = vand.u32 %v774, 4294901760
    %2597 = vmatpush.msra.mxu0 %v2596
    %v2598 = vand.u32 %v770, 4294901760
    %2599 = vmatpush.msra.mxu0 %v2598
    %v2600 = vand.u32 %v766, 4294901760
    %2601 = vmatpush.msra.mxu0 %v2600
    %v2602 = vand.u32 %v762, 4294901760
    %2603 = vmatpush.msra.mxu0 %v2602
    %v2604 = vand.u32 %v758, 4294901760
    %2605 = vmatpush.msra.mxu0 %v2604
    %v2606 = vand.u32 %v754, 4294901760
    %2607 = vmatpush.msra.mxu0 %v2606
    %v2608 = vand.u32 %v750, 4294901760
    %2609 = vmatpush.msra.mxu0 %v2608
    %v2610 = vand.u32 %v746, 4294901760
    %2611 = vmatpush.msra.mxu0 %v2610
    %v2612 = vand.u32 %v742, 4294901760
    %2613 = vmatpush.msra.mxu0 %v2612
    %v2614 = vand.u32 %v738, 4294901760
    %2615 = vmatpush.msra.mxu0 %v2614
    %v2616 = vand.u32 %v734, 4294901760
    %2617 = vmatpush.msra.mxu0 %v2616
    %v2618 = vand.u32 %v730, 4294901760
    %2619 = vmatpush.msra.mxu0 %v2618
    %v2620 = vand.u32 %v726, 4294901760
    %2621 = vmatpush.msra.mxu0 %v2620
    %v2622 = vand.u32 %v721, 4294901760
    %v2623 = vsub.f32 %v721, %v2622
    %v2624 = vand.u32 %v2623, 4294901760
    %2625 = vmatmul.f32.gmra.mxu0 %v2624
    %v2626 = vpop.f32.mrf.mxu0
    %v2627 = vadd.f32 %v2588, %v2626
    %2628 = vdwg.mxu0
    %v2629 = vand.u32 %v786, 4294901760
    %v2630 = vsub.f32 %v786, %v2629
    %v2631 = vand.u32 %v2630, 4294901760
    %2632 = vmatpush.msra.mxu0 %v2631
    %v2633 = vand.u32 %v782, 4294901760
    %v2634 = vsub.f32 %v782, %v2633
    %v2635 = vand.u32 %v2634, 4294901760
    %2636 = vmatpush.msra.mxu0 %v2635
    %v2637 = vand.u32 %v778, 4294901760
    %v2638 = vsub.f32 %v778, %v2637
    %v2639 = vand.u32 %v2638, 4294901760
    %2640 = vmatpush.msra.mxu0 %v2639
    %v2641 = vand.u32 %v774, 4294901760
    %v2642 = vsub.f32 %v774, %v2641
    %v2643 = vand.u32 %v2642, 4294901760
    %2644 = vmatpush.msra.mxu0 %v2643
    %v2645 = vand.u32 %v770, 4294901760
    %v2646 = vsub.f32 %v770, %v2645
    %v2647 = vand.u32 %v2646, 4294901760
    %2648 = vmatpush.msra.mxu0 %v2647
    %v2649 = vand.u32 %v766, 4294901760
    %v2650 = vsub.f32 %v766, %v2649
    %v2651 = vand.u32 %v2650, 4294901760
    %2652 = vmatpush.msra.mxu0 %v2651
    %v2653 = vand.u32 %v762, 4294901760
    %v2654 = vsub.f32 %v762, %v2653
    %v2655 = vand.u32 %v2654, 4294901760
    %2656 = vmatpush.msra.mxu0 %v2655
    %v2657 = vand.u32 %v758, 4294901760
    %v2658 = vsub.f32 %v758, %v2657
    %v2659 = vand.u32 %v2658, 4294901760
    %2660 = vmatpush.msra.mxu0 %v2659
    %v2661 = vand.u32 %v754, 4294901760
    %v2662 = vsub.f32 %v754, %v2661
    %v2663 = vand.u32 %v2662, 4294901760
    %2664 = vmatpush.msra.mxu0 %v2663
    %v2665 = vand.u32 %v750, 4294901760
    %v2666 = vsub.f32 %v750, %v2665
    %v2667 = vand.u32 %v2666, 4294901760
    %2668 = vmatpush.msra.mxu0 %v2667
    %v2669 = vand.u32 %v746, 4294901760
    %v2670 = vsub.f32 %v746, %v2669
    %v2671 = vand.u32 %v2670, 4294901760
    %2672 = vmatpush.msra.mxu0 %v2671
    %v2673 = vand.u32 %v742, 4294901760
    %v2674 = vsub.f32 %v742, %v2673
    %v2675 = vand.u32 %v2674, 4294901760
    %2676 = vmatpush.msra.mxu0 %v2675
    %v2677 = vand.u32 %v738, 4294901760
    %v2678 = vsub.f32 %v738, %v2677
    %v2679 = vand.u32 %v2678, 4294901760
    %2680 = vmatpush.msra.mxu0 %v2679
    %v2681 = vand.u32 %v734, 4294901760
    %v2682 = vsub.f32 %v734, %v2681
    %v2683 = vand.u32 %v2682, 4294901760
    %2684 = vmatpush.msra.mxu0 %v2683
    %v2685 = vand.u32 %v730, 4294901760
    %v2686 = vsub.f32 %v730, %v2685
    %v2687 = vand.u32 %v2686, 4294901760
    %2688 = vmatpush.msra.mxu0 %v2687
    %v2689 = vand.u32 %v726, 4294901760
    %v2690 = vsub.f32 %v726, %v2689
    %v2691 = vand.u32 %v2690, 4294901760
    %2692 = vmatpush.msra.mxu0 %v2691
    %v2693 = vand.u32 %v721, 4294901760
    %2694 = vmatmul.f32.gmra.mxu0 %v2693
    %v2695 = vpop.f32.mrf.mxu0
    %v2696 = vadd.f32 %v2627, %v2695
    %2697 = vdwg.mxu0
    %v2698 = vand.u32 %v786, 4294901760
    %2699 = vmatpush.msra.mxu0 %v2698
    %v2700 = vand.u32 %v782, 4294901760
    %2701 = vmatpush.msra.mxu0 %v2700
    %v2702 = vand.u32 %v778, 4294901760
    %2703 = vmatpush.msra.mxu0 %v2702
    %v2704 = vand.u32 %v774, 4294901760
    %2705 = vmatpush.msra.mxu0 %v2704
    %v2706 = vand.u32 %v770, 4294901760
    %2707 = vmatpush.msra.mxu0 %v2706
    %v2708 = vand.u32 %v766, 4294901760
    %2709 = vmatpush.msra.mxu0 %v2708
    %v2710 = vand.u32 %v762, 4294901760
    %2711 = vmatpush.msra.mxu0 %v2710
    %v2712 = vand.u32 %v758, 4294901760
    %2713 = vmatpush.msra.mxu0 %v2712
    %v2714 = vand.u32 %v754, 4294901760
    %2715 = vmatpush.msra.mxu0 %v2714
    %v2716 = vand.u32 %v750, 4294901760
    %2717 = vmatpush.msra.mxu0 %v2716
    %v2718 = vand.u32 %v746, 4294901760
    %2719 = vmatpush.msra.mxu0 %v2718
    %v2720 = vand.u32 %v742, 4294901760
    %2721 = vmatpush.msra.mxu0 %v2720
    %v2722 = vand.u32 %v738, 4294901760
    %2723 = vmatpush.msra.mxu0 %v2722
    %v2724 = vand.u32 %v734, 4294901760
    %2725 = vmatpush.msra.mxu0 %v2724
    %v2726 = vand.u32 %v730, 4294901760
    %2727 = vmatpush.msra.mxu0 %v2726
    %v2728 = vand.u32 %v726, 4294901760
    %2729 = vmatpush.msra.mxu0 %v2728
    %v2730 = vand.u32 %v721, 4294901760
    %2731 = vmatmul.f32.gmra.mxu0 %v2730
    %v2732 = vpop.f32.mrf.mxu0
    %v2733 = vadd.f32 %v2696, %v2732
    %2734 = vdwg.mxu0
    %2735 = vmatpush.msra.mxu0 0.0
    %2736 = vmatpush.msra.mxu0 0.0
    %2737 = vmatpush.msra.mxu0 0.0
    %2738 = vmatpush.msra.mxu0 0.0
    %2739 = vmatpush.msra.mxu0 0.0
    %2740 = vmatpush.msra.mxu0 0.0
    %2741 = vmatpush.msra.mxu0 0.0
    %2742 = vmatpush.msra.mxu0 0.0
    %2743 = vmatpush.msra.mxu0 0.0
    %2744 = vmatpush.msra.mxu0 0.0
    %2745 = vmatpush.msra.mxu0 0.0
    %2746 = vmatpush.msra.mxu0 0.0
    %v2747 = vand.u32 %v802, 4294901760
    %2748 = vmatpush.msra.mxu0 %v2747
    %v2749 = vand.u32 %v798, 4294901760
    %2750 = vmatpush.msra.mxu0 %v2749
    %v2751 = vand.u32 %v794, 4294901760
    %2752 = vmatpush.msra.mxu0 %v2751
    %v2753 = vand.u32 %v790, 4294901760
    %2754 = vmatpush.msra.mxu0 %v2753
    %v2755 = vand.u32 %v814, 4294901760
    %v2756 = vsub.f32 %v814, %v2755
    %v2757 = vand.u32 %v2756, 4294901760
    %v2758 = vsub.f32 %v2756, %v2757
    %v2759 = vand.u32 %v2758, 4294901760
    %2760 = vmatmul.f32.gmra.mxu0 %v2759
    %v2761 = vpop.f32.mrf.mxu0
    %v2762 = vadd.f32 %v2733, %v2761
    %2763 = vdwg.mxu0
    %2764 = vmatpush.msra.mxu0 0.0
    %2765 = vmatpush.msra.mxu0 0.0
    %2766 = vmatpush.msra.mxu0 0.0
    %2767 = vmatpush.msra.mxu0 0.0
    %2768 = vmatpush.msra.mxu0 0.0
    %2769 = vmatpush.msra.mxu0 0.0
    %2770 = vmatpush.msra.mxu0 0.0
    %2771 = vmatpush.msra.mxu0 0.0
    %2772 = vmatpush.msra.mxu0 0.0
    %2773 = vmatpush.msra.mxu0 0.0
    %2774 = vmatpush.msra.mxu0 0.0
    %2775 = vmatpush.msra.mxu0 0.0
    %v2776 = vand.u32 %v802, 4294901760
    %v2777 = vsub.f32 %v802, %v2776
    %v2778 = vand.u32 %v2777, 4294901760
    %v2779 = vsub.f32 %v2777, %v2778
    %v2780 = vand.u32 %v2779, 4294901760
    %2781 = vmatpush.msra.mxu0 %v2780
    %v2782 = vand.u32 %v798, 4294901760
    %v2783 = vsub.f32 %v798, %v2782
    %v2784 = vand.u32 %v2783, 4294901760
    %v2785 = vsub.f32 %v2783, %v2784
    %v2786 = vand.u32 %v2785, 4294901760
    %2787 = vmatpush.msra.mxu0 %v2786
    %v2788 = vand.u32 %v794, 4294901760
    %v2789 = vsub.f32 %v794, %v2788
    %v2790 = vand.u32 %v2789, 4294901760
    %v2791 = vsub.f32 %v2789, %v2790
    %v2792 = vand.u32 %v2791, 4294901760
    %2793 = vmatpush.msra.mxu0 %v2792
    %v2794 = vand.u32 %v790, 4294901760
    %v2795 = vsub.f32 %v790, %v2794
    %v2796 = vand.u32 %v2795, 4294901760
    %v2797 = vsub.f32 %v2795, %v2796
    %v2798 = vand.u32 %v2797, 4294901760
    %2799 = vmatpush.msra.mxu0 %v2798
    %v2800 = vand.u32 %v814, 4294901760
    %2801 = vmatmul.f32.gmra.mxu0 %v2800
    %v2802 = vpop.f32.mrf.mxu0
    %v2803 = vadd.f32 %v2762, %v2802
    %2804 = vdwg.mxu0
    %2805 = vmatpush.msra.mxu0 0.0
    %2806 = vmatpush.msra.mxu0 0.0
    %2807 = vmatpush.msra.mxu0 0.0
    %2808 = vmatpush.msra.mxu0 0.0
    %2809 = vmatpush.msra.mxu0 0.0
    %2810 = vmatpush.msra.mxu0 0.0
    %2811 = vmatpush.msra.mxu0 0.0
    %2812 = vmatpush.msra.mxu0 0.0
    %2813 = vmatpush.msra.mxu0 0.0
    %2814 = vmatpush.msra.mxu0 0.0
    %2815 = vmatpush.msra.mxu0 0.0
    %2816 = vmatpush.msra.mxu0 0.0
    %v2817 = vand.u32 %v802, 4294901760
    %v2818 = vsub.f32 %v802, %v2817
    %2819 = vmatpush.msra.mxu0 %v2818
    %v2820 = vand.u32 %v798, 4294901760
    %v2821 = vsub.f32 %v798, %v2820
    %2822 = vmatpush.msra.mxu0 %v2821
    %v2823 = vand.u32 %v794, 4294901760
    %v2824 = vsub.f32 %v794, %v2823
    %2825 = vmatpush.msra.mxu0 %v2824
    %v2826 = vand.u32 %v790, 4294901760
    %v2827 = vsub.f32 %v790, %v2826
    %2828 = vmatpush.msra.mxu0 %v2827
    %v2829 = vand.u32 %v814, 4294901760
    %v2830 = vsub.f32 %v814, %v2829
    %2831 = vmatmul.f32.gmra.mxu0 %v2830
    %v2832 = vpop.f32.mrf.mxu0
    %v2833 = vadd.f32 %v2803, %v2832
    %2834 = vdwg.mxu0
    %2835 = vmatpush.msra.mxu0 0.0
    %2836 = vmatpush.msra.mxu0 0.0
    %2837 = vmatpush.msra.mxu0 0.0
    %2838 = vmatpush.msra.mxu0 0.0
    %2839 = vmatpush.msra.mxu0 0.0
    %2840 = vmatpush.msra.mxu0 0.0
    %2841 = vmatpush.msra.mxu0 0.0
    %2842 = vmatpush.msra.mxu0 0.0
    %2843 = vmatpush.msra.mxu0 0.0
    %2844 = vmatpush.msra.mxu0 0.0
    %2845 = vmatpush.msra.mxu0 0.0
    %2846 = vmatpush.msra.mxu0 0.0
    %v2847 = vand.u32 %v802, 4294901760
    %2848 = vmatpush.msra.mxu0 %v2847
    %v2849 = vand.u32 %v798, 4294901760
    %2850 = vmatpush.msra.mxu0 %v2849
    %v2851 = vand.u32 %v794, 4294901760
    %2852 = vmatpush.msra.mxu0 %v2851
    %v2853 = vand.u32 %v790, 4294901760
    %2854 = vmatpush.msra.mxu0 %v2853
    %v2855 = vand.u32 %v814, 4294901760
    %v2856 = vsub.f32 %v814, %v2855
    %v2857 = vand.u32 %v2856, 4294901760
    %2858 = vmatmul.f32.gmra.mxu0 %v2857
    %v2859 = vpop.f32.mrf.mxu0
    %v2860 = vadd.f32 %v2833, %v2859
    %2861 = vdwg.mxu0
    %2862 = vmatpush.msra.mxu0 0.0
    %2863 = vmatpush.msra.mxu0 0.0
    %2864 = vmatpush.msra.mxu0 0.0
    %2865 = vmatpush.msra.mxu0 0.0
    %2866 = vmatpush.msra.mxu0 0.0
    %2867 = vmatpush.msra.mxu0 0.0
    %2868 = vmatpush.msra.mxu0 0.0
    %2869 = vmatpush.msra.mxu0 0.0
    %2870 = vmatpush.msra.mxu0 0.0
    %2871 = vmatpush.msra.mxu0 0.0
    %2872 = vmatpush.msra.mxu0 0.0
    %2873 = vmatpush.msra.mxu0 0.0
    %v2874 = vand.u32 %v802, 4294901760
    %v2875 = vsub.f32 %v802, %v2874
    %v2876 = vand.u32 %v2875, 4294901760
    %2877 = vmatpush.msra.mxu0 %v2876
    %v2878 = vand.u32 %v798, 4294901760
    %v2879 = vsub.f32 %v798, %v2878
    %v2880 = vand.u32 %v2879, 4294901760
    %2881 = vmatpush.msra.mxu0 %v2880
    %v2882 = vand.u32 %v794, 4294901760
    %v2883 = vsub.f32 %v794, %v2882
    %v2884 = vand.u32 %v2883, 4294901760
    %2885 = vmatpush.msra.mxu0 %v2884
    %v2886 = vand.u32 %v790, 4294901760
    %v2887 = vsub.f32 %v790, %v2886
    %v2888 = vand.u32 %v2887, 4294901760
    %2889 = vmatpush.msra.mxu0 %v2888
    %v2890 = vand.u32 %v814, 4294901760
    %2891 = vmatmul.f32.gmra.mxu0 %v2890
    %v2892 = vpop.f32.mrf.mxu0
    %v2893 = vadd.f32 %v2860, %v2892
    %2894 = vdwg.mxu0
    %2895 = vmatpush.msra.mxu0 0.0
    %2896 = vmatpush.msra.mxu0 0.0
    %2897 = vmatpush.msra.mxu0 0.0
    %2898 = vmatpush.msra.mxu0 0.0
    %2899 = vmatpush.msra.mxu0 0.0
    %2900 = vmatpush.msra.mxu0 0.0
    %2901 = vmatpush.msra.mxu0 0.0
    %2902 = vmatpush.msra.mxu0 0.0
    %2903 = vmatpush.msra.mxu0 0.0
    %2904 = vmatpush.msra.mxu0 0.0
    %2905 = vmatpush.msra.mxu0 0.0
    %2906 = vmatpush.msra.mxu0 0.0
    %v2907 = vand.u32 %v802, 4294901760
    %2908 = vmatpush.msra.mxu0 %v2907
    %v2909 = vand.u32 %v798, 4294901760
    %2910 = vmatpush.msra.mxu0 %v2909
    %v2911 = vand.u32 %v794, 4294901760
    %2912 = vmatpush.msra.mxu0 %v2911
    %v2913 = vand.u32 %v790, 4294901760
    %2914 = vmatpush.msra.mxu0 %v2913
    %v2915 = vand.u32 %v814, 4294901760
    %2916 = vmatmul.f32.gmra.mxu0 %v2915
    %v2917 = vpop.f32.mrf.mxu0
    %v2918 = vadd.f32 %v2893, %v2917
    %2919 = vdwg.mxu0
    %v2920 = vmul.f32 %v1340, 1.702
    %v2921 = vmul.f32 %v1866, 1.702
    %v2922 = vmul.f32 %v2392, 1.702
    %v2923 = vmul.f32 %v2918, 1.702
    %v2924 = vxor.u32 %v2920, 2147483648
    %v2925 = vxor.u32 %v2921, 2147483648
    %v2926 = vxor.u32 %v2922, 2147483648
    %v2927 = vxor.u32 %v2923, 2147483648
    %v2928 = vmul.f32 %v2924, 1.442695
    %v2929 = vpow.pop %v2928
    %v2930 = vmul.f32 %v2925, 1.442695
    %v2931 = vpow.pop %v2930
    %v2932 = vmul.f32 %v2926, 1.442695
    %v2933 = vpow.pop %v2932
    %v2934 = vmul.f32 %v2927, 1.442695
    %v2935 = vpow.pop %v2934
    %v2936 = vadd.f32 %v2929, 1.0
    %v2937 = vadd.f32 %v2931, 1.0
    %v2938 = vadd.f32 %v2933, 1.0
    %v2939 = vadd.f32 %v2935, 1.0
    %v2940 = vrcp.pop %v2936
    %v2941 = vmul.f32 %v2936, %v2940
    %v2942 = vsub.f32 1.0, %v2941
    %v2943 = vmul.f32 %v2940, %v2942
    %v2944 = vadd.f32 %v2940, %v2943
    %vm2945 = vweird.f32 %v2936
    %vm2946 = vweird.f32 %v2940
    %vm2947 = vmor %vm2945, %vm2946
    %v2948 = vsel %vm2947, %v2940, %v2944
    %v2949 = vand.u32 2147483647, %v2936
    %vm2950 = vcmp.eq.f32.partialorder %v2949, 8.507059e+37
    %v2951 = vand.u32 %v2936, 2147483648
    %v2952 = vor.u32 1.1754944e-38, %v2951
    %v2953 = vsel %vm2950, %v2952, %v2948
    %v2954 = vmul.f32 1.0, %v2953
    %v2955 = vrcp.pop %v2937
    %v2956 = vmul.f32 %v2937, %v2955
    %v2957 = vsub.f32 1.0, %v2956
    %v2958 = vmul.f32 %v2955, %v2957
    %v2959 = vadd.f32 %v2955, %v2958
    %vm2960 = vweird.f32 %v2937
    %vm2961 = vweird.f32 %v2955
    %vm2962 = vmor %vm2960, %vm2961
    %v2963 = vsel %vm2962, %v2955, %v2959
    %v2964 = vand.u32 2147483647, %v2937
    %vm2965 = vcmp.eq.f32.partialorder %v2964, 8.507059e+37
    %v2966 = vand.u32 %v2937, 2147483648
    %v2967 = vor.u32 1.1754944e-38, %v2966
    %v2968 = vsel %vm2965, %v2967, %v2963
    %v2969 = vmul.f32 1.0, %v2968
    %v2970 = vrcp.pop %v2938
    %v2971 = vmul.f32 %v2938, %v2970
    %v2972 = vsub.f32 1.0, %v2971
    %v2973 = vmul.f32 %v2970, %v2972
    %v2974 = vadd.f32 %v2970, %v2973
    %vm2975 = vweird.f32 %v2938
    %vm2976 = vweird.f32 %v2970
    %vm2977 = vmor %vm2975, %vm2976
    %v2978 = vsel %vm2977, %v2970, %v2974
    %v2979 = vand.u32 2147483647, %v2938
    %vm2980 = vcmp.eq.f32.partialorder %v2979, 8.507059e+37
    %v2981 = vand.u32 %v2938, 2147483648
    %v2982 = vor.u32 1.1754944e-38, %v2981
    %v2983 = vsel %vm2980, %v2982, %v2978
    %v2984 = vmul.f32 1.0, %v2983
    %v2985 = vrcp.pop %v2939
    %v2986 = vmul.f32 %v2939, %v2985
    %v2987 = vsub.f32 1.0, %v2986
    %v2988 = vmul.f32 %v2985, %v2987
    %v2989 = vadd.f32 %v2985, %v2988
    %vm2990 = vweird.f32 %v2939
    %vm2991 = vweird.f32 %v2985
    %vm2992 = vmor %vm2990, %vm2991
    %v2993 = vsel %vm2992, %v2985, %v2989
    %v2994 = vand.u32 2147483647, %v2939
    %vm2995 = vcmp.eq.f32.partialorder %v2994, 8.507059e+37
    %v2996 = vand.u32 %v2939, 2147483648
    %v2997 = vor.u32 1.1754944e-38, %v2996
    %v2998 = vsel %vm2995, %v2997, %v2993
    %v2999 = vmul.f32 1.0, %v2998
    %v3000 = vmul.f32 %v1340, %v2954
    %v3001 = vmul.f32 %v1866, %v2969
    %v3002 = vmul.f32 %v2392, %v2984
    %v3003 = vmul.f32 %v2918, %v2999
    %v3004 = vld [vmem:[%s7] sm:$0xff]
    %v3005 = vld [vmem:[%s7 + $0x8] sm:$0xff]
    %v3006 = vld [vmem:[%s7 + $0x10] sm:$0xff]
    %v3007 = vld [vmem:[%s7 + $0x18] sm:$0xff]
    %v3008 = vld [vmem:[%s7 + $0x20] sm:$0xff]
    %v3009 = vld [vmem:[%s7 + $0x28] sm:$0xff]
    %v3010 = vld [vmem:[%s7 + $0x30] sm:$0xff]
    %v3011 = vld [vmem:[%s7 + $0x38] sm:$0xff]
    %v3012 = vld [vmem:[%s7 + $0x40] sm:$0xff]
    %v3013 = vld [vmem:[%s7 + $0x48] sm:$0xff]
    %v3014 = vld [vmem:[%s7 + $0x50] sm:$0xff]
    %v3015 = vld [vmem:[%s7 + $0x58] sm:$0xff]
    %v3016 = vld [vmem:[%s7 + $0x60] sm:$0xff]
    %v3017 = vld [vmem:[%s7 + $0x68] sm:$0xff]
    %v3018 = vld [vmem:[%s7 + $0x70] sm:$0xff]
    %v3019 = vld [vmem:[%s7 + $0x78] sm:$0xff]
    %v3020 = vld [vmem:[%s7 + $0x80] sm:$0xff]
    %v3021 = vld [vmem:[%s7 + $0x88] sm:$0xff]
    %v3022 = vld [vmem:[%s7 + $0x90] sm:$0xff]
    %v3023 = vld [vmem:[%s7 + $0x98] sm:$0xff]
    %v3024 = vld [vmem:[%s7 + $0xa0] sm:$0xff]
    %v3025 = vld [vmem:[%s7 + $0xa8] sm:$0xff]
    %v3026 = vld [vmem:[%s7 + $0xb0] sm:$0xff]
    %v3027 = vld [vmem:[%s7 + $0xb8] sm:$0xff]
    %v3028 = vld [vmem:[%s7 + $0xc0] sm:$0xff]
    %v3029 = vld [vmem:[%s7 + $0xc8] sm:$0xff]
    %v3030 = vld [vmem:[%s7 + $0xd0] sm:$0xff]
    %v3031 = vld [vmem:[%s7 + $0xd8] sm:$0xff]
    %v3032 = vld [vmem:[%s7 + $0xe0] sm:$0xff]
    %v3033 = vld [vmem:[%s7 + $0xe8] sm:$0xff]
    %v3034 = vld [vmem:[%s7 + $0xf0] sm:$0xff]
    %v3035 = vld [vmem:[%s7 + $0xf8] sm:$0xff]
    %v3036 = vld [vmem:[%s7 + $0x100] sm:$0xff]
    %v3037 = vld [vmem:[%s7 + $0x108] sm:$0xff]
    %v3038 = vld [vmem:[%s7 + $0x110] sm:$0xff]
    %v3039 = vld [vmem:[%s7 + $0x118] sm:$0xff]
    %v3040 = vld [vmem:[%s7 + $0x120] sm:$0xff]
    %v3041 = vld [vmem:[%s7 + $0x128] sm:$0xff]
    %v3042 = vld [vmem:[%s7 + $0x130] sm:$0xff]
    %v3043 = vld [vmem:[%s7 + $0x138] sm:$0xff]
    %v3044 = vld [vmem:[%s7 + $0x140] sm:$0xff]
    %v3045 = vld [vmem:[%s7 + $0x148] sm:$0xff]
    %v3046 = vld [vmem:[%s7 + $0x150] sm:$0xff]
    %v3047 = vld [vmem:[%s7 + $0x158] sm:$0xff]
    %v3048 = vld [vmem:[%s7 + $0x160] sm:$0xff]
    %v3049 = vld [vmem:[%s7 + $0x168] sm:$0xff]
    %v3050 = vld [vmem:[%s7 + $0x170] sm:$0xff]
    %v3051 = vld [vmem:[%s7 + $0x178] sm:$0xff]
    %v3052 = vld [vmem:[%s7 + $0x180] sm:$0xff]
    %v3053 = vld [vmem:[%s7 + $0x188] sm:$0xff]
    %v3054 = vld [vmem:[%s7 + $0x190] sm:$0xff]
    %v3055 = vld [vmem:[%s7 + $0x198] sm:$0xff]
    %v3056 = vld [vmem:[%s7 + $0x1a0] sm:$0xff]
    %v3057 = vld [vmem:[%s7 + $0x1a8] sm:$0xff]
    %v3058 = vld [vmem:[%s7 + $0x1b0] sm:$0xff]
    %v3059 = vld [vmem:[%s7 + $0x1b8] sm:$0xff]
    %v3060 = vld [vmem:[%s7 + $0x1c0] sm:$0xff]
    %v3061 = vld [vmem:[%s7 + $0x1c8] sm:$0xff]
    %v3062 = vld [vmem:[%s7 + $0x1d0] sm:$0xff]
    %v3063 = vld [vmem:[%s7 + $0x1d8] sm:$0xff]
    %v3064 = vld [vmem:[%s7 + $0x1e0] sm:$0xff]
    %v3065 = vld [vmem:[%s7 + $0x1e8] sm:$0xff]
    %v3066 = vld [vmem:[%s7 + $0x1f0] sm:$0xff]
    %v3067 = vld [vmem:[%s7 + $0x1f8] sm:$0xff]
    %v3068 = vld [vmem:[%s8] sm:$0x1]
    %v3070 = vperm.slane %v3068, 0
    %v3072 = vand.u32 %v3019, 4294901760
    %3073 = vmatpush.msra.mxu0 %v3072
    %v3074 = vand.u32 %v3018, 4294901760
    %3075 = vmatpush.msra.mxu0 %v3074
    %v3076 = vand.u32 %v3017, 4294901760
    %3077 = vmatpush.msra.mxu0 %v3076
    %v3078 = vand.u32 %v3016, 4294901760
    %3079 = vmatpush.msra.mxu0 %v3078
    %v3080 = vand.u32 %v3015, 4294901760
    %3081 = vmatpush.msra.mxu0 %v3080
    %v3082 = vand.u32 %v3014, 4294901760
    %3083 = vmatpush.msra.mxu0 %v3082
    %v3084 = vand.u32 %v3013, 4294901760
    %3085 = vmatpush.msra.mxu0 %v3084
    %v3086 = vand.u32 %v3012, 4294901760
    %3087 = vmatpush.msra.mxu0 %v3086
    %v3088 = vand.u32 %v3011, 4294901760
    %3089 = vmatpush.msra.mxu0 %v3088
    %v3090 = vand.u32 %v3010, 4294901760
    %3091 = vmatpush.msra.mxu0 %v3090
    %v3092 = vand.u32 %v3009, 4294901760
    %3093 = vmatpush.msra.mxu0 %v3092
    %v3094 = vand.u32 %v3008, 4294901760
    %3095 = vmatpush.msra.mxu0 %v3094
    %v3096 = vand.u32 %v3007, 4294901760
    %3097 = vmatpush.msra.mxu0 %v3096
    %v3098 = vand.u32 %v3006, 4294901760
    %3099 = vmatpush.msra.mxu0 %v3098
    %v3100 = vand.u32 %v3005, 4294901760
    %3101 = vmatpush.msra.mxu0 %v3100
    %v3102 = vand.u32 %v3004, 4294901760
    %3103 = vmatpush.msra.mxu0 %v3102
    %v3104 = vand.u32 %v3000, 4294901760
    %v3105 = vsub.f32 %v3000, %v3104
    %v3106 = vand.u32 %v3105, 4294901760
    %v3107 = vsub.f32 %v3105, %v3106
    %v3108 = vand.u32 %v3107, 4294901760
    %3109 = vmatmul.f32.gmra.mxu0 %v3108
    %v3110 = vpop.f32.mrf.mxu0
    %v3111 = vadd.f32 %v3070, %v3110
    %3112 = vdwg.mxu0
    %v3113 = vand.u32 %v3019, 4294901760
    %v3114 = vsub.f32 %v3019, %v3113
    %v3115 = vand.u32 %v3114, 4294901760
    %v3116 = vsub.f32 %v3114, %v3115
    %v3117 = vand.u32 %v3116, 4294901760
    %3118 = vmatpush.msra.mxu0 %v3117
    %v3119 = vand.u32 %v3018, 4294901760
    %v3120 = vsub.f32 %v3018, %v3119
    %v3121 = vand.u32 %v3120, 4294901760
    %v3122 = vsub.f32 %v3120, %v3121
    %v3123 = vand.u32 %v3122, 4294901760
    %3124 = vmatpush.msra.mxu0 %v3123
    %v3125 = vand.u32 %v3017, 4294901760
    %v3126 = vsub.f32 %v3017, %v3125
    %v3127 = vand.u32 %v3126, 4294901760
    %v3128 = vsub.f32 %v3126, %v3127
    %v3129 = vand.u32 %v3128, 4294901760
    %3130 = vmatpush.msra.mxu0 %v3129
    %v3131 = vand.u32 %v3016, 4294901760
    %v3132 = vsub.f32 %v3016, %v3131
    %v3133 = vand.u32 %v3132, 4294901760
    %v3134 = vsub.f32 %v3132, %v3133
    %v3135 = vand.u32 %v3134, 4294901760
    %3136 = vmatpush.msra.mxu0 %v3135
    %v3137 = vand.u32 %v3015, 4294901760
    %v3138 = vsub.f32 %v3015, %v3137
    %v3139 = vand.u32 %v3138, 4294901760
    %v3140 = vsub.f32 %v3138, %v3139
    %v3141 = vand.u32 %v3140, 4294901760
    %3142 = vmatpush.msra.mxu0 %v3141
    %v3143 = vand.u32 %v3014, 4294901760
    %v3144 = vsub.f32 %v3014, %v3143
    %v3145 = vand.u32 %v3144, 4294901760
    %v3146 = vsub.f32 %v3144, %v3145
    %v3147 = vand.u32 %v3146, 4294901760
    %3148 = vmatpush.msra.mxu0 %v3147
    %v3149 = vand.u32 %v3013, 4294901760
    %v3150 = vsub.f32 %v3013, %v3149
    %v3151 = vand.u32 %v3150, 4294901760
    %v3152 = vsub.f32 %v3150, %v3151
    %v3153 = vand.u32 %v3152, 4294901760
    %3154 = vmatpush.msra.mxu0 %v3153
    %v3155 = vand.u32 %v3012, 4294901760
    %v3156 = vsub.f32 %v3012, %v3155
    %v3157 = vand.u32 %v3156, 4294901760
    %v3158 = vsub.f32 %v3156, %v3157
    %v3159 = vand.u32 %v3158, 4294901760
    %3160 = vmatpush.msra.mxu0 %v3159
    %v3161 = vand.u32 %v3011, 4294901760
    %v3162 = vsub.f32 %v3011, %v3161
    %v3163 = vand.u32 %v3162, 4294901760
    %v3164 = vsub.f32 %v3162, %v3163
    %v3165 = vand.u32 %v3164, 4294901760
    %3166 = vmatpush.msra.mxu0 %v3165
    %v3167 = vand.u32 %v3010, 4294901760
    %v3168 = vsub.f32 %v3010, %v3167
    %v3169 = vand.u32 %v3168, 4294901760
    %v3170 = vsub.f32 %v3168, %v3169
    %v3171 = vand.u32 %v3170, 4294901760
    %3172 = vmatpush.msra.mxu0 %v3171
    %v3173 = vand.u32 %v3009, 4294901760
    %v3174 = vsub.f32 %v3009, %v3173
    %v3175 = vand.u32 %v3174, 4294901760
    %v3176 = vsub.f32 %v3174, %v3175
    %v3177 = vand.u32 %v3176, 4294901760
    %3178 = vmatpush.msra.mxu0 %v3177
    %v3179 = vand.u32 %v3008, 4294901760
    %v3180 = vsub.f32 %v3008, %v3179
    %v3181 = vand.u32 %v3180, 4294901760
    %v3182 = vsub.f32 %v3180, %v3181
    %v3183 = vand.u32 %v3182, 4294901760
    %3184 = vmatpush.msra.mxu0 %v3183
    %v3185 = vand.u32 %v3007, 4294901760
    %v3186 = vsub.f32 %v3007, %v3185
    %v3187 = vand.u32 %v3186, 4294901760
    %v3188 = vsub.f32 %v3186, %v3187
    %v3189 = vand.u32 %v3188, 4294901760
    %3190 = vmatpush.msra.mxu0 %v3189
    %v3191 = vand.u32 %v3006, 4294901760
    %v3192 = vsub.f32 %v3006, %v3191
    %v3193 = vand.u32 %v3192, 4294901760
    %v3194 = vsub.f32 %v3192, %v3193
    %v3195 = vand.u32 %v3194, 4294901760
    %3196 = vmatpush.msra.mxu0 %v3195
    %v3197 = vand.u32 %v3005, 4294901760
    %v3198 = vsub.f32 %v3005, %v3197
    %v3199 = vand.u32 %v3198, 4294901760
    %v3200 = vsub.f32 %v3198, %v3199
    %v3201 = vand.u32 %v3200, 4294901760
    %3202 = vmatpush.msra.mxu0 %v3201
    %v3203 = vand.u32 %v3004, 4294901760
    %v3204 = vsub.f32 %v3004, %v3203
    %v3205 = vand.u32 %v3204, 4294901760
    %v3206 = vsub.f32 %v3204, %v3205
    %v3207 = vand.u32 %v3206, 4294901760
    %3208 = vmatpush.msra.mxu0 %v3207
    %v3209 = vand.u32 %v3000, 4294901760
    %3210 = vmatmul.f32.gmra.mxu0 %v3209
    %v3211 = vpop.f32.mrf.mxu0
    %v3212 = vadd.f32 %v3111, %v3211
    %3213 = vdwg.mxu0
    %v3214 = vand.u32 %v3019, 4294901760
    %v3215 = vsub.f32 %v3019, %v3214
    %3216 = vmatpush.msra.mxu0 %v3215
    %v3217 = vand.u32 %v3018, 4294901760
    %v3218 = vsub.f32 %v3018, %v3217
    %3219 = vmatpush.msra.mxu0 %v3218
    %v3220 = vand.u32 %v3017, 4294901760
    %v3221 = vsub.f32 %v3017, %v3220
    %3222 = vmatpush.msra.mxu0 %v3221
    %v3223 = vand.u32 %v3016, 4294901760
    %v3224 = vsub.f32 %v3016, %v3223
    %3225 = vmatpush.msra.mxu0 %v3224
    %v3226 = vand.u32 %v3015, 4294901760
    %v3227 = vsub.f32 %v3015, %v3226
    %3228 = vmatpush.msra.mxu0 %v3227
    %v3229 = vand.u32 %v3014, 4294901760
    %v3230 = vsub.f32 %v3014, %v3229
    %3231 = vmatpush.msra.mxu0 %v3230
    %v3232 = vand.u32 %v3013, 4294901760
    %v3233 = vsub.f32 %v3013, %v3232
    %3234 = vmatpush.msra.mxu0 %v3233
    %v3235 = vand.u32 %v3012, 4294901760
    %v3236 = vsub.f32 %v3012, %v3235
    %3237 = vmatpush.msra.mxu0 %v3236
    %v3238 = vand.u32 %v3011, 4294901760
    %v3239 = vsub.f32 %v3011, %v3238
    %3240 = vmatpush.msra.mxu0 %v3239
    %v3241 = vand.u32 %v3010, 4294901760
    %v3242 = vsub.f32 %v3010, %v3241
    %3243 = vmatpush.msra.mxu0 %v3242
    %v3244 = vand.u32 %v3009, 4294901760
    %v3245 = vsub.f32 %v3009, %v3244
    %3246 = vmatpush.msra.mxu0 %v3245
    %v3247 = vand.u32 %v3008, 4294901760
    %v3248 = vsub.f32 %v3008, %v3247
    %3249 = vmatpush.msra.mxu0 %v3248
    %v3250 = vand.u32 %v3007, 4294901760
    %v3251 = vsub.f32 %v3007, %v3250
    %3252 = vmatpush.msra.mxu0 %v3251
    %v3253 = vand.u32 %v3006, 4294901760
    %v3254 = vsub.f32 %v3006, %v3253
    %3255 = vmatpush.msra.mxu0 %v3254
    %v3256 = vand.u32 %v3005, 4294901760
    %v3257 = vsub.f32 %v3005, %v3256
    %3258 = vmatpush.msra.mxu0 %v3257
    %v3259 = vand.u32 %v3004, 4294901760
    %v3260 = vsub.f32 %v3004, %v3259
    %3261 = vmatpush.msra.mxu0 %v3260
    %v3262 = vand.u32 %v3000, 4294901760
    %v3263 = vsub.f32 %v3000, %v3262
    %3264 = vmatmul.f32.gmra.mxu0 %v3263
    %v3265 = vpop.f32.mrf.mxu0
    %v3266 = vadd.f32 %v3212, %v3265
    %3267 = vdwg.mxu0
    %v3268 = vand.u32 %v3019, 4294901760
    %3269 = vmatpush.msra.mxu0 %v3268
    %v3270 = vand.u32 %v3018, 4294901760
    %3271 = vmatpush.msra.mxu0 %v3270
    %v3272 = vand.u32 %v3017, 4294901760
    %3273 = vmatpush.msra.mxu0 %v3272
    %v3274 = vand.u32 %v3016, 4294901760
    %3275 = vmatpush.msra.mxu0 %v3274
    %v3276 = vand.u32 %v3015, 4294901760
    %3277 = vmatpush.msra.mxu0 %v3276
    %v3278 = vand.u32 %v3014, 4294901760
    %3279 = vmatpush.msra.mxu0 %v3278
    %v3280 = vand.u32 %v3013, 4294901760
    %3281 = vmatpush.msra.mxu0 %v3280
    %v3282 = vand.u32 %v3012, 4294901760
    %3283 = vmatpush.msra.mxu0 %v3282
    %v3284 = vand.u32 %v3011, 4294901760
    %3285 = vmatpush.msra.mxu0 %v3284
    %v3286 = vand.u32 %v3010, 4294901760
    %3287 = vmatpush.msra.mxu0 %v3286
    %v3288 = vand.u32 %v3009, 4294901760
    %3289 = vmatpush.msra.mxu0 %v3288
    %v3290 = vand.u32 %v3008, 4294901760
    %3291 = vmatpush.msra.mxu0 %v3290
    %v3292 = vand.u32 %v3007, 4294901760
    %3293 = vmatpush.msra.mxu0 %v3292
    %v3294 = vand.u32 %v3006, 4294901760
    %3295 = vmatpush.msra.mxu0 %v3294
    %v3296 = vand.u32 %v3005, 4294901760
    %3297 = vmatpush.msra.mxu0 %v3296
    %v3298 = vand.u32 %v3004, 4294901760
    %3299 = vmatpush.msra.mxu0 %v3298
    %v3300 = vand.u32 %v3000, 4294901760
    %v3301 = vsub.f32 %v3000, %v3300
    %v3302 = vand.u32 %v3301, 4294901760
    %3303 = vmatmul.f32.gmra.mxu0 %v3302
    %v3304 = vpop.f32.mrf.mxu0
    %v3305 = vadd.f32 %v3266, %v3304
    %3306 = vdwg.mxu0
    %v3307 = vand.u32 %v3019, 4294901760
    %v3308 = vsub.f32 %v3019, %v3307
    %v3309 = vand.u32 %v3308, 4294901760
    %3310 = vmatpush.msra.mxu0 %v3309
    %v3311 = vand.u32 %v3018, 4294901760
    %v3312 = vsub.f32 %v3018, %v3311
    %v3313 = vand.u32 %v3312, 4294901760
    %3314 = vmatpush.msra.mxu0 %v3313
    %v3315 = vand.u32 %v3017, 4294901760
    %v3316 = vsub.f32 %v3017, %v3315
    %v3317 = vand.u32 %v3316, 4294901760
    %3318 = vmatpush.msra.mxu0 %v3317
    %v3319 = vand.u32 %v3016, 4294901760
    %v3320 = vsub.f32 %v3016, %v3319
    %v3321 = vand.u32 %v3320, 4294901760
    %3322 = vmatpush.msra.mxu0 %v3321
    %v3323 = vand.u32 %v3015, 4294901760
    %v3324 = vsub.f32 %v3015, %v3323
    %v3325 = vand.u32 %v3324, 4294901760
    %3326 = vmatpush.msra.mxu0 %v3325
    %v3327 = vand.u32 %v3014, 4294901760
    %v3328 = vsub.f32 %v3014, %v3327
    %v3329 = vand.u32 %v3328, 4294901760
    %3330 = vmatpush.msra.mxu0 %v3329
    %v3331 = vand.u32 %v3013, 4294901760
    %v3332 = vsub.f32 %v3013, %v3331
    %v3333 = vand.u32 %v3332, 4294901760
    %3334 = vmatpush.msra.mxu0 %v3333
    %v3335 = vand.u32 %v3012, 4294901760
    %v3336 = vsub.f32 %v3012, %v3335
    %v3337 = vand.u32 %v3336, 4294901760
    %3338 = vmatpush.msra.mxu0 %v3337
    %v3339 = vand.u32 %v3011, 4294901760
    %v3340 = vsub.f32 %v3011, %v3339
    %v3341 = vand.u32 %v3340, 4294901760
    %3342 = vmatpush.msra.mxu0 %v3341
    %v3343 = vand.u32 %v3010, 4294901760
    %v3344 = vsub.f32 %v3010, %v3343
    %v3345 = vand.u32 %v3344, 4294901760
    %3346 = vmatpush.msra.mxu0 %v3345
    %v3347 = vand.u32 %v3009, 4294901760
    %v3348 = vsub.f32 %v3009, %v3347
    %v3349 = vand.u32 %v3348, 4294901760
    %3350 = vmatpush.msra.mxu0 %v3349
    %v3351 = vand.u32 %v3008, 4294901760
    %v3352 = vsub.f32 %v3008, %v3351
    %v3353 = vand.u32 %v3352, 4294901760
    %3354 = vmatpush.msra.mxu0 %v3353
    %v3355 = vand.u32 %v3007, 4294901760
    %v3356 = vsub.f32 %v3007, %v3355
    %v3357 = vand.u32 %v3356, 4294901760
    %3358 = vmatpush.msra.mxu0 %v3357
    %v3359 = vand.u32 %v3006, 4294901760
    %v3360 = vsub.f32 %v3006, %v3359
    %v3361 = vand.u32 %v3360, 4294901760
    %3362 = vmatpush.msra.mxu0 %v3361
    %v3363 = vand.u32 %v3005, 4294901760
    %v3364 = vsub.f32 %v3005, %v3363
    %v3365 = vand.u32 %v3364, 4294901760
    %3366 = vmatpush.msra.mxu0 %v3365
    %v3367 = vand.u32 %v3004, 4294901760
    %v3368 = vsub.f32 %v3004, %v3367
    %v3369 = vand.u32 %v3368, 4294901760
    %3370 = vmatpush.msra.mxu0 %v3369
    %v3371 = vand.u32 %v3000, 4294901760
    %3372 = vmatmul.f32.gmra.mxu0 %v3371
    %v3373 = vpop.f32.mrf.mxu0
    %v3374 = vadd.f32 %v3305, %v3373
    %3375 = vdwg.mxu0
    %v3376 = vand.u32 %v3019, 4294901760
    %3377 = vmatpush.msra.mxu0 %v3376
    %v3378 = vand.u32 %v3018, 4294901760
    %3379 = vmatpush.msra.mxu0 %v3378
    %v3380 = vand.u32 %v3017, 4294901760
    %3381 = vmatpush.msra.mxu0 %v3380
    %v3382 = vand.u32 %v3016, 4294901760
    %3383 = vmatpush.msra.mxu0 %v3382
    %v3384 = vand.u32 %v3015, 4294901760
    %3385 = vmatpush.msra.mxu0 %v3384
    %v3386 = vand.u32 %v3014, 4294901760
    %3387 = vmatpush.msra.mxu0 %v3386
    %v3388 = vand.u32 %v3013, 4294901760
    %3389 = vmatpush.msra.mxu0 %v3388
    %v3390 = vand.u32 %v3012, 4294901760
    %3391 = vmatpush.msra.mxu0 %v3390
    %v3392 = vand.u32 %v3011, 4294901760
    %3393 = vmatpush.msra.mxu0 %v3392
    %v3394 = vand.u32 %v3010, 4294901760
    %3395 = vmatpush.msra.mxu0 %v3394
    %v3396 = vand.u32 %v3009, 4294901760
    %3397 = vmatpush.msra.mxu0 %v3396
    %v3398 = vand.u32 %v3008, 4294901760
    %3399 = vmatpush.msra.mxu0 %v3398
    %v3400 = vand.u32 %v3007, 4294901760
    %3401 = vmatpush.msra.mxu0 %v3400
    %v3402 = vand.u32 %v3006, 4294901760
    %3403 = vmatpush.msra.mxu0 %v3402
    %v3404 = vand.u32 %v3005, 4294901760
    %3405 = vmatpush.msra.mxu0 %v3404
    %v3406 = vand.u32 %v3004, 4294901760
    %3407 = vmatpush.msra.mxu0 %v3406
    %v3408 = vand.u32 %v3000, 4294901760
    %3409 = vmatmul.f32.gmra.mxu0 %v3408
    %v3410 = vpop.f32.mrf.mxu0
    %v3411 = vadd.f32 %v3374, %v3410
    %3412 = vdwg.mxu0
    %v3413 = vand.u32 %v3035, 4294901760
    %3414 = vmatpush.msra.mxu0 %v3413
    %v3415 = vand.u32 %v3034, 4294901760
    %3416 = vmatpush.msra.mxu0 %v3415
    %v3417 = vand.u32 %v3033, 4294901760
    %3418 = vmatpush.msra.mxu0 %v3417
    %v3419 = vand.u32 %v3032, 4294901760
    %3420 = vmatpush.msra.mxu0 %v3419
    %v3421 = vand.u32 %v3031, 4294901760
    %3422 = vmatpush.msra.mxu0 %v3421
    %v3423 = vand.u32 %v3030, 4294901760
    %3424 = vmatpush.msra.mxu0 %v3423
    %v3425 = vand.u32 %v3029, 4294901760
    %3426 = vmatpush.msra.mxu0 %v3425
    %v3427 = vand.u32 %v3028, 4294901760
    %3428 = vmatpush.msra.mxu0 %v3427
    %v3429 = vand.u32 %v3027, 4294901760
    %3430 = vmatpush.msra.mxu0 %v3429
    %v3431 = vand.u32 %v3026, 4294901760
    %3432 = vmatpush.msra.mxu0 %v3431
    %v3433 = vand.u32 %v3025, 4294901760
    %3434 = vmatpush.msra.mxu0 %v3433
    %v3435 = vand.u32 %v3024, 4294901760
    %3436 = vmatpush.msra.mxu0 %v3435
    %v3437 = vand.u32 %v3023, 4294901760
    %3438 = vmatpush.msra.mxu0 %v3437
    %v3439 = vand.u32 %v3022, 4294901760
    %3440 = vmatpush.msra.mxu0 %v3439
    %v3441 = vand.u32 %v3021, 4294901760
    %3442 = vmatpush.msra.mxu0 %v3441
    %v3443 = vand.u32 %v3020, 4294901760
    %3444 = vmatpush.msra.mxu0 %v3443
    %v3445 = vand.u32 %v3001, 4294901760
    %v3446 = vsub.f32 %v3001, %v3445
    %v3447 = vand.u32 %v3446, 4294901760
    %v3448 = vsub.f32 %v3446, %v3447
    %v3449 = vand.u32 %v3448, 4294901760
    %3450 = vmatmul.f32.gmra.mxu0 %v3449
    %v3451 = vpop.f32.mrf.mxu0
    %v3452 = vadd.f32 %v3411, %v3451
    %3453 = vdwg.mxu0
    %v3454 = vand.u32 %v3035, 4294901760
    %v3455 = vsub.f32 %v3035, %v3454
    %v3456 = vand.u32 %v3455, 4294901760
    %v3457 = vsub.f32 %v3455, %v3456
    %v3458 = vand.u32 %v3457, 4294901760
    %3459 = vmatpush.msra.mxu0 %v3458
    %v3460 = vand.u32 %v3034, 4294901760
    %v3461 = vsub.f32 %v3034, %v3460
    %v3462 = vand.u32 %v3461, 4294901760
    %v3463 = vsub.f32 %v3461, %v3462
    %v3464 = vand.u32 %v3463, 4294901760
    %3465 = vmatpush.msra.mxu0 %v3464
    %v3466 = vand.u32 %v3033, 4294901760
    %v3467 = vsub.f32 %v3033, %v3466
    %v3468 = vand.u32 %v3467, 4294901760
    %v3469 = vsub.f32 %v3467, %v3468
    %v3470 = vand.u32 %v3469, 4294901760
    %3471 = vmatpush.msra.mxu0 %v3470
    %v3472 = vand.u32 %v3032, 4294901760
    %v3473 = vsub.f32 %v3032, %v3472
    %v3474 = vand.u32 %v3473, 4294901760
    %v3475 = vsub.f32 %v3473, %v3474
    %v3476 = vand.u32 %v3475, 4294901760
    %3477 = vmatpush.msra.mxu0 %v3476
    %v3478 = vand.u32 %v3031, 4294901760
    %v3479 = vsub.f32 %v3031, %v3478
    %v3480 = vand.u32 %v3479, 4294901760
    %v3481 = vsub.f32 %v3479, %v3480
    %v3482 = vand.u32 %v3481, 4294901760
    %3483 = vmatpush.msra.mxu0 %v3482
    %v3484 = vand.u32 %v3030, 4294901760
    %v3485 = vsub.f32 %v3030, %v3484
    %v3486 = vand.u32 %v3485, 4294901760
    %v3487 = vsub.f32 %v3485, %v3486
    %v3488 = vand.u32 %v3487, 4294901760
    %3489 = vmatpush.msra.mxu0 %v3488
    %v3490 = vand.u32 %v3029, 4294901760
    %v3491 = vsub.f32 %v3029, %v3490
    %v3492 = vand.u32 %v3491, 4294901760
    %v3493 = vsub.f32 %v3491, %v3492
    %v3494 = vand.u32 %v3493, 4294901760
    %3495 = vmatpush.msra.mxu0 %v3494
    %v3496 = vand.u32 %v3028, 4294901760
    %v3497 = vsub.f32 %v3028, %v3496
    %v3498 = vand.u32 %v3497, 4294901760
    %v3499 = vsub.f32 %v3497, %v3498
    %v3500 = vand.u32 %v3499, 4294901760
    %3501 = vmatpush.msra.mxu0 %v3500
    %v3502 = vand.u32 %v3027, 4294901760
    %v3503 = vsub.f32 %v3027, %v3502
    %v3504 = vand.u32 %v3503, 4294901760
    %v3505 = vsub.f32 %v3503, %v3504
    %v3506 = vand.u32 %v3505, 4294901760
    %3507 = vmatpush.msra.mxu0 %v3506
    %v3508 = vand.u32 %v3026, 4294901760
    %v3509 = vsub.f32 %v3026, %v3508
    %v3510 = vand.u32 %v3509, 4294901760
    %v3511 = vsub.f32 %v3509, %v3510
    %v3512 = vand.u32 %v3511, 4294901760
    %3513 = vmatpush.msra.mxu0 %v3512
    %v3514 = vand.u32 %v3025, 4294901760
    %v3515 = vsub.f32 %v3025, %v3514
    %v3516 = vand.u32 %v3515, 4294901760
    %v3517 = vsub.f32 %v3515, %v3516
    %v3518 = vand.u32 %v3517, 4294901760
    %3519 = vmatpush.msra.mxu0 %v3518
    %v3520 = vand.u32 %v3024, 4294901760
    %v3521 = vsub.f32 %v3024, %v3520
    %v3522 = vand.u32 %v3521, 4294901760
    %v3523 = vsub.f32 %v3521, %v3522
    %v3524 = vand.u32 %v3523, 4294901760
    %3525 = vmatpush.msra.mxu0 %v3524
    %v3526 = vand.u32 %v3023, 4294901760
    %v3527 = vsub.f32 %v3023, %v3526
    %v3528 = vand.u32 %v3527, 4294901760
    %v3529 = vsub.f32 %v3527, %v3528
    %v3530 = vand.u32 %v3529, 4294901760
    %3531 = vmatpush.msra.mxu0 %v3530
    %v3532 = vand.u32 %v3022, 4294901760
    %v3533 = vsub.f32 %v3022, %v3532
    %v3534 = vand.u32 %v3533, 4294901760
    %v3535 = vsub.f32 %v3533, %v3534
    %v3536 = vand.u32 %v3535, 4294901760
    %3537 = vmatpush.msra.mxu0 %v3536
    %v3538 = vand.u32 %v3021, 4294901760
    %v3539 = vsub.f32 %v3021, %v3538
    %v3540 = vand.u32 %v3539, 4294901760
    %v3541 = vsub.f32 %v3539, %v3540
    %v3542 = vand.u32 %v3541, 4294901760
    %3543 = vmatpush.msra.mxu0 %v3542
    %v3544 = vand.u32 %v3020, 4294901760
    %v3545 = vsub.f32 %v3020, %v3544
    %v3546 = vand.u32 %v3545, 4294901760
    %v3547 = vsub.f32 %v3545, %v3546
    %v3548 = vand.u32 %v3547, 4294901760
    %3549 = vmatpush.msra.mxu0 %v3548
    %v3550 = vand.u32 %v3001, 4294901760
    %3551 = vmatmul.f32.gmra.mxu0 %v3550
    %v3552 = vpop.f32.mrf.mxu0
    %v3553 = vadd.f32 %v3452, %v3552
    %3554 = vdwg.mxu0
    %v3555 = vand.u32 %v3035, 4294901760
    %v3556 = vsub.f32 %v3035, %v3555
    %3557 = vmatpush.msra.mxu0 %v3556
    %v3558 = vand.u32 %v3034, 4294901760
    %v3559 = vsub.f32 %v3034, %v3558
    %3560 = vmatpush.msra.mxu0 %v3559
    %v3561 = vand.u32 %v3033, 4294901760
    %v3562 = vsub.f32 %v3033, %v3561
    %3563 = vmatpush.msra.mxu0 %v3562
    %v3564 = vand.u32 %v3032, 4294901760
    %v3565 = vsub.f32 %v3032, %v3564
    %3566 = vmatpush.msra.mxu0 %v3565
    %v3567 = vand.u32 %v3031, 4294901760
    %v3568 = vsub.f32 %v3031, %v3567
    %3569 = vmatpush.msra.mxu0 %v3568
    %v3570 = vand.u32 %v3030, 4294901760
    %v3571 = vsub.f32 %v3030, %v3570
    %3572 = vmatpush.msra.mxu0 %v3571
    %v3573 = vand.u32 %v3029, 4294901760
    %v3574 = vsub.f32 %v3029, %v3573
    %3575 = vmatpush.msra.mxu0 %v3574
    %v3576 = vand.u32 %v3028, 4294901760
    %v3577 = vsub.f32 %v3028, %v3576
    %3578 = vmatpush.msra.mxu0 %v3577
    %v3579 = vand.u32 %v3027, 4294901760
    %v3580 = vsub.f32 %v3027, %v3579
    %3581 = vmatpush.msra.mxu0 %v3580
    %v3582 = vand.u32 %v3026, 4294901760
    %v3583 = vsub.f32 %v3026, %v3582
    %3584 = vmatpush.msra.mxu0 %v3583
    %v3585 = vand.u32 %v3025, 4294901760
    %v3586 = vsub.f32 %v3025, %v3585
    %3587 = vmatpush.msra.mxu0 %v3586
    %v3588 = vand.u32 %v3024, 4294901760
    %v3589 = vsub.f32 %v3024, %v3588
    %3590 = vmatpush.msra.mxu0 %v3589
    %v3591 = vand.u32 %v3023, 4294901760
    %v3592 = vsub.f32 %v3023, %v3591
    %3593 = vmatpush.msra.mxu0 %v3592
    %v3594 = vand.u32 %v3022, 4294901760
    %v3595 = vsub.f32 %v3022, %v3594
    %3596 = vmatpush.msra.mxu0 %v3595
    %v3597 = vand.u32 %v3021, 4294901760
    %v3598 = vsub.f32 %v3021, %v3597
    %3599 = vmatpush.msra.mxu0 %v3598
    %v3600 = vand.u32 %v3020, 4294901760
    %v3601 = vsub.f32 %v3020, %v3600
    %3602 = vmatpush.msra.mxu0 %v3601
    %v3603 = vand.u32 %v3001, 4294901760
    %v3604 = vsub.f32 %v3001, %v3603
    %3605 = vmatmul.f32.gmra.mxu0 %v3604
    %v3606 = vpop.f32.mrf.mxu0
    %v3607 = vadd.f32 %v3553, %v3606
    %3608 = vdwg.mxu0
    %v3609 = vand.u32 %v3035, 4294901760
    %3610 = vmatpush.msra.mxu0 %v3609
    %v3611 = vand.u32 %v3034, 4294901760
    %3612 = vmatpush.msra.mxu0 %v3611
    %v3613 = vand.u32 %v3033, 4294901760
    %3614 = vmatpush.msra.mxu0 %v3613
    %v3615 = vand.u32 %v3032, 4294901760
    %3616 = vmatpush.msra.mxu0 %v3615
    %v3617 = vand.u32 %v3031, 4294901760
    %3618 = vmatpush.msra.mxu0 %v3617
    %v3619 = vand.u32 %v3030, 4294901760
    %3620 = vmatpush.msra.mxu0 %v3619
    %v3621 = vand.u32 %v3029, 4294901760
    %3622 = vmatpush.msra.mxu0 %v3621
    %v3623 = vand.u32 %v3028, 4294901760
    %3624 = vmatpush.msra.mxu0 %v3623
    %v3625 = vand.u32 %v3027, 4294901760
    %3626 = vmatpush.msra.mxu0 %v3625
    %v3627 = vand.u32 %v3026, 4294901760
    %3628 = vmatpush.msra.mxu0 %v3627
    %v3629 = vand.u32 %v3025, 4294901760
    %3630 = vmatpush.msra.mxu0 %v3629
    %v3631 = vand.u32 %v3024, 4294901760
    %3632 = vmatpush.msra.mxu0 %v3631
    %v3633 = vand.u32 %v3023, 4294901760
    %3634 = vmatpush.msra.mxu0 %v3633
    %v3635 = vand.u32 %v3022, 4294901760
    %3636 = vmatpush.msra.mxu0 %v3635
    %v3637 = vand.u32 %v3021, 4294901760
    %3638 = vmatpush.msra.mxu0 %v3637
    %v3639 = vand.u32 %v3020, 4294901760
    %3640 = vmatpush.msra.mxu0 %v3639
    %v3641 = vand.u32 %v3001, 4294901760
    %v3642 = vsub.f32 %v3001, %v3641
    %v3643 = vand.u32 %v3642, 4294901760
    %3644 = vmatmul.f32.gmra.mxu0 %v3643
    %v3645 = vpop.f32.mrf.mxu0
    %v3646 = vadd.f32 %v3607, %v3645
    %3647 = vdwg.mxu0
    %v3648 = vand.u32 %v3035, 4294901760
    %v3649 = vsub.f32 %v3035, %v3648
    %v3650 = vand.u32 %v3649, 4294901760
    %3651 = vmatpush.msra.mxu0 %v3650
    %v3652 = vand.u32 %v3034, 4294901760
    %v3653 = vsub.f32 %v3034, %v3652
    %v3654 = vand.u32 %v3653, 4294901760
    %3655 = vmatpush.msra.mxu0 %v3654
    %v3656 = vand.u32 %v3033, 4294901760
    %v3657 = vsub.f32 %v3033, %v3656
    %v3658 = vand.u32 %v3657, 4294901760
    %3659 = vmatpush.msra.mxu0 %v3658
    %v3660 = vand.u32 %v3032, 4294901760
    %v3661 = vsub.f32 %v3032, %v3660
    %v3662 = vand.u32 %v3661, 4294901760
    %3663 = vmatpush.msra.mxu0 %v3662
    %v3664 = vand.u32 %v3031, 4294901760
    %v3665 = vsub.f32 %v3031, %v3664
    %v3666 = vand.u32 %v3665, 4294901760
    %3667 = vmatpush.msra.mxu0 %v3666
    %v3668 = vand.u32 %v3030, 4294901760
    %v3669 = vsub.f32 %v3030, %v3668
    %v3670 = vand.u32 %v3669, 4294901760
    %3671 = vmatpush.msra.mxu0 %v3670
    %v3672 = vand.u32 %v3029, 4294901760
    %v3673 = vsub.f32 %v3029, %v3672
    %v3674 = vand.u32 %v3673, 4294901760
    %3675 = vmatpush.msra.mxu0 %v3674
    %v3676 = vand.u32 %v3028, 4294901760
    %v3677 = vsub.f32 %v3028, %v3676
    %v3678 = vand.u32 %v3677, 4294901760
    %3679 = vmatpush.msra.mxu0 %v3678
    %v3680 = vand.u32 %v3027, 4294901760
    %v3681 = vsub.f32 %v3027, %v3680
    %v3682 = vand.u32 %v3681, 4294901760
    %3683 = vmatpush.msra.mxu0 %v3682
    %v3684 = vand.u32 %v3026, 4294901760
    %v3685 = vsub.f32 %v3026, %v3684
    %v3686 = vand.u32 %v3685, 4294901760
    %3687 = vmatpush.msra.mxu0 %v3686
    %v3688 = vand.u32 %v3025, 4294901760
    %v3689 = vsub.f32 %v3025, %v3688
    %v3690 = vand.u32 %v3689, 4294901760
    %3691 = vmatpush.msra.mxu0 %v3690
    %v3692 = vand.u32 %v3024, 4294901760
    %v3693 = vsub.f32 %v3024, %v3692
    %v3694 = vand.u32 %v3693, 4294901760
    %3695 = vmatpush.msra.mxu0 %v3694
    %v3696 = vand.u32 %v3023, 4294901760
    %v3697 = vsub.f32 %v3023, %v3696
    %v3698 = vand.u32 %v3697, 4294901760
    %3699 = vmatpush.msra.mxu0 %v3698
    %v3700 = vand.u32 %v3022, 4294901760
    %v3701 = vsub.f32 %v3022, %v3700
    %v3702 = vand.u32 %v3701, 4294901760
    %3703 = vmatpush.msra.mxu0 %v3702
    %v3704 = vand.u32 %v3021, 4294901760
    %v3705 = vsub.f32 %v3021, %v3704
    %v3706 = vand.u32 %v3705, 4294901760
    %3707 = vmatpush.msra.mxu0 %v3706
    %v3708 = vand.u32 %v3020, 4294901760
    %v3709 = vsub.f32 %v3020, %v3708
    %v3710 = vand.u32 %v3709, 4294901760
    %3711 = vmatpush.msra.mxu0 %v3710
    %v3712 = vand.u32 %v3001, 4294901760
    %3713 = vmatmul.f32.gmra.mxu0 %v3712
    %v3714 = vpop.f32.mrf.mxu0
    %v3715 = vadd.f32 %v3646, %v3714
    %3716 = vdwg.mxu0
    %v3717 = vand.u32 %v3035, 4294901760
    %3718 = vmatpush.msra.mxu0 %v3717
    %v3719 = vand.u32 %v3034, 4294901760
    %3720 = vmatpush.msra.mxu0 %v3719
    %v3721 = vand.u32 %v3033, 4294901760
    %3722 = vmatpush.msra.mxu0 %v3721
    %v3723 = vand.u32 %v3032, 4294901760
    %3724 = vmatpush.msra.mxu0 %v3723
    %v3725 = vand.u32 %v3031, 4294901760
    %3726 = vmatpush.msra.mxu0 %v3725
    %v3727 = vand.u32 %v3030, 4294901760
    %3728 = vmatpush.msra.mxu0 %v3727
    %v3729 = vand.u32 %v3029, 4294901760
    %3730 = vmatpush.msra.mxu0 %v3729
    %v3731 = vand.u32 %v3028, 4294901760
    %3732 = vmatpush.msra.mxu0 %v3731
    %v3733 = vand.u32 %v3027, 4294901760
    %3734 = vmatpush.msra.mxu0 %v3733
    %v3735 = vand.u32 %v3026, 4294901760
    %3736 = vmatpush.msra.mxu0 %v3735
    %v3737 = vand.u32 %v3025, 4294901760
    %3738 = vmatpush.msra.mxu0 %v3737
    %v3739 = vand.u32 %v3024, 4294901760
    %3740 = vmatpush.msra.mxu0 %v3739
    %v3741 = vand.u32 %v3023, 4294901760
    %3742 = vmatpush.msra.mxu0 %v3741
    %v3743 = vand.u32 %v3022, 4294901760
    %3744 = vmatpush.msra.mxu0 %v3743
    %v3745 = vand.u32 %v3021, 4294901760
    %3746 = vmatpush.msra.mxu0 %v3745
    %v3747 = vand.u32 %v3020, 4294901760
    %3748 = vmatpush.msra.mxu0 %v3747
    %v3749 = vand.u32 %v3001, 4294901760
    %3750 = vmatmul.f32.gmra.mxu0 %v3749
    %v3751 = vpop.f32.mrf.mxu0
    %v3752 = vadd.f32 %v3715, %v3751
    %3753 = vdwg.mxu0
    %v3754 = vand.u32 %v3051, 4294901760
    %3755 = vmatpush.msra.mxu0 %v3754
    %v3756 = vand.u32 %v3050, 4294901760
    %3757 = vmatpush.msra.mxu0 %v3756
    %v3758 = vand.u32 %v3049, 4294901760
    %3759 = vmatpush.msra.mxu0 %v3758
    %v3760 = vand.u32 %v3048, 4294901760
    %3761 = vmatpush.msra.mxu0 %v3760
    %v3762 = vand.u32 %v3047, 4294901760
    %3763 = vmatpush.msra.mxu0 %v3762
    %v3764 = vand.u32 %v3046, 4294901760
    %3765 = vmatpush.msra.mxu0 %v3764
    %v3766 = vand.u32 %v3045, 4294901760
    %3767 = vmatpush.msra.mxu0 %v3766
    %v3768 = vand.u32 %v3044, 4294901760
    %3769 = vmatpush.msra.mxu0 %v3768
    %v3770 = vand.u32 %v3043, 4294901760
    %3771 = vmatpush.msra.mxu0 %v3770
    %v3772 = vand.u32 %v3042, 4294901760
    %3773 = vmatpush.msra.mxu0 %v3772
    %v3774 = vand.u32 %v3041, 4294901760
    %3775 = vmatpush.msra.mxu0 %v3774
    %v3776 = vand.u32 %v3040, 4294901760
    %3777 = vmatpush.msra.mxu0 %v3776
    %v3778 = vand.u32 %v3039, 4294901760
    %3779 = vmatpush.msra.mxu0 %v3778
    %v3780 = vand.u32 %v3038, 4294901760
    %3781 = vmatpush.msra.mxu0 %v3780
    %v3782 = vand.u32 %v3037, 4294901760
    %3783 = vmatpush.msra.mxu0 %v3782
    %v3784 = vand.u32 %v3036, 4294901760
    %3785 = vmatpush.msra.mxu0 %v3784
    %v3786 = vand.u32 %v3002, 4294901760
    %v3787 = vsub.f32 %v3002, %v3786
    %v3788 = vand.u32 %v3787, 4294901760
    %v3789 = vsub.f32 %v3787, %v3788
    %v3790 = vand.u32 %v3789, 4294901760
    %3791 = vmatmul.f32.gmra.mxu0 %v3790
    %v3792 = vpop.f32.mrf.mxu0
    %v3793 = vadd.f32 %v3752, %v3792
    %3794 = vdwg.mxu0
    %v3795 = vand.u32 %v3051, 4294901760
    %v3796 = vsub.f32 %v3051, %v3795
    %v3797 = vand.u32 %v3796, 4294901760
    %v3798 = vsub.f32 %v3796, %v3797
    %v3799 = vand.u32 %v3798, 4294901760
    %3800 = vmatpush.msra.mxu0 %v3799
    %v3801 = vand.u32 %v3050, 4294901760
    %v3802 = vsub.f32 %v3050, %v3801
    %v3803 = vand.u32 %v3802, 4294901760
    %v3804 = vsub.f32 %v3802, %v3803
    %v3805 = vand.u32 %v3804, 4294901760
    %3806 = vmatpush.msra.mxu0 %v3805
    %v3807 = vand.u32 %v3049, 4294901760
    %v3808 = vsub.f32 %v3049, %v3807
    %v3809 = vand.u32 %v3808, 4294901760
    %v3810 = vsub.f32 %v3808, %v3809
    %v3811 = vand.u32 %v3810, 4294901760
    %3812 = vmatpush.msra.mxu0 %v3811
    %v3813 = vand.u32 %v3048, 4294901760
    %v3814 = vsub.f32 %v3048, %v3813
    %v3815 = vand.u32 %v3814, 4294901760
    %v3816 = vsub.f32 %v3814, %v3815
    %v3817 = vand.u32 %v3816, 4294901760
    %3818 = vmatpush.msra.mxu0 %v3817
    %v3819 = vand.u32 %v3047, 4294901760
    %v3820 = vsub.f32 %v3047, %v3819
    %v3821 = vand.u32 %v3820, 4294901760
    %v3822 = vsub.f32 %v3820, %v3821
    %v3823 = vand.u32 %v3822, 4294901760
    %3824 = vmatpush.msra.mxu0 %v3823
    %v3825 = vand.u32 %v3046, 4294901760
    %v3826 = vsub.f32 %v3046, %v3825
    %v3827 = vand.u32 %v3826, 4294901760
    %v3828 = vsub.f32 %v3826, %v3827
    %v3829 = vand.u32 %v3828, 4294901760
    %3830 = vmatpush.msra.mxu0 %v3829
    %v3831 = vand.u32 %v3045, 4294901760
    %v3832 = vsub.f32 %v3045, %v3831
    %v3833 = vand.u32 %v3832, 4294901760
    %v3834 = vsub.f32 %v3832, %v3833
    %v3835 = vand.u32 %v3834, 4294901760
    %3836 = vmatpush.msra.mxu0 %v3835
    %v3837 = vand.u32 %v3044, 4294901760
    %v3838 = vsub.f32 %v3044, %v3837
    %v3839 = vand.u32 %v3838, 4294901760
    %v3840 = vsub.f32 %v3838, %v3839
    %v3841 = vand.u32 %v3840, 4294901760
    %3842 = vmatpush.msra.mxu0 %v3841
    %v3843 = vand.u32 %v3043, 4294901760
    %v3844 = vsub.f32 %v3043, %v3843
    %v3845 = vand.u32 %v3844, 4294901760
    %v3846 = vsub.f32 %v3844, %v3845
    %v3847 = vand.u32 %v3846, 4294901760
    %3848 = vmatpush.msra.mxu0 %v3847
    %v3849 = vand.u32 %v3042, 4294901760
    %v3850 = vsub.f32 %v3042, %v3849
    %v3851 = vand.u32 %v3850, 4294901760
    %v3852 = vsub.f32 %v3850, %v3851
    %v3853 = vand.u32 %v3852, 4294901760
    %3854 = vmatpush.msra.mxu0 %v3853
    %v3855 = vand.u32 %v3041, 4294901760
    %v3856 = vsub.f32 %v3041, %v3855
    %v3857 = vand.u32 %v3856, 4294901760
    %v3858 = vsub.f32 %v3856, %v3857
    %v3859 = vand.u32 %v3858, 4294901760
    %3860 = vmatpush.msra.mxu0 %v3859
    %v3861 = vand.u32 %v3040, 4294901760
    %v3862 = vsub.f32 %v3040, %v3861
    %v3863 = vand.u32 %v3862, 4294901760
    %v3864 = vsub.f32 %v3862, %v3863
    %v3865 = vand.u32 %v3864, 4294901760
    %3866 = vmatpush.msra.mxu0 %v3865
    %v3867 = vand.u32 %v3039, 4294901760
    %v3868 = vsub.f32 %v3039, %v3867
    %v3869 = vand.u32 %v3868, 4294901760
    %v3870 = vsub.f32 %v3868, %v3869
    %v3871 = vand.u32 %v3870, 4294901760
    %3872 = vmatpush.msra.mxu0 %v3871
    %v3873 = vand.u32 %v3038, 4294901760
    %v3874 = vsub.f32 %v3038, %v3873
    %v3875 = vand.u32 %v3874, 4294901760
    %v3876 = vsub.f32 %v3874, %v3875
    %v3877 = vand.u32 %v3876, 4294901760
    %3878 = vmatpush.msra.mxu0 %v3877
    %v3879 = vand.u32 %v3037, 4294901760
    %v3880 = vsub.f32 %v3037, %v3879
    %v3881 = vand.u32 %v3880, 4294901760
    %v3882 = vsub.f32 %v3880, %v3881
    %v3883 = vand.u32 %v3882, 4294901760
    %3884 = vmatpush.msra.mxu0 %v3883
    %v3885 = vand.u32 %v3036, 4294901760
    %v3886 = vsub.f32 %v3036, %v3885
    %v3887 = vand.u32 %v3886, 4294901760
    %v3888 = vsub.f32 %v3886, %v3887
    %v3889 = vand.u32 %v3888, 4294901760
    %3890 = vmatpush.msra.mxu0 %v3889
    %v3891 = vand.u32 %v3002, 4294901760
    %3892 = vmatmul.f32.gmra.mxu0 %v3891
    %v3893 = vpop.f32.mrf.mxu0
    %v3894 = vadd.f32 %v3793, %v3893
    %3895 = vdwg.mxu0
    %v3896 = vand.u32 %v3051, 4294901760
    %v3897 = vsub.f32 %v3051, %v3896
    %3898 = vmatpush.msra.mxu0 %v3897
    %v3899 = vand.u32 %v3050, 4294901760
    %v3900 = vsub.f32 %v3050, %v3899
    %3901 = vmatpush.msra.mxu0 %v3900
    %v3902 = vand.u32 %v3049, 4294901760
    %v3903 = vsub.f32 %v3049, %v3902
    %3904 = vmatpush.msra.mxu0 %v3903
    %v3905 = vand.u32 %v3048, 4294901760
    %v3906 = vsub.f32 %v3048, %v3905
    %3907 = vmatpush.msra.mxu0 %v3906
    %v3908 = vand.u32 %v3047, 4294901760
    %v3909 = vsub.f32 %v3047, %v3908
    %3910 = vmatpush.msra.mxu0 %v3909
    %v3911 = vand.u32 %v3046, 4294901760
    %v3912 = vsub.f32 %v3046, %v3911
    %3913 = vmatpush.msra.mxu0 %v3912
    %v3914 = vand.u32 %v3045, 4294901760
    %v3915 = vsub.f32 %v3045, %v3914
    %3916 = vmatpush.msra.mxu0 %v3915
    %v3917 = vand.u32 %v3044, 4294901760
    %v3918 = vsub.f32 %v3044, %v3917
    %3919 = vmatpush.msra.mxu0 %v3918
    %v3920 = vand.u32 %v3043, 4294901760
    %v3921 = vsub.f32 %v3043, %v3920
    %3922 = vmatpush.msra.mxu0 %v3921
    %v3923 = vand.u32 %v3042, 4294901760
    %v3924 = vsub.f32 %v3042, %v3923
    %3925 = vmatpush.msra.mxu0 %v3924
    %v3926 = vand.u32 %v3041, 4294901760
    %v3927 = vsub.f32 %v3041, %v3926
    %3928 = vmatpush.msra.mxu0 %v3927
    %v3929 = vand.u32 %v3040, 4294901760
    %v3930 = vsub.f32 %v3040, %v3929
    %3931 = vmatpush.msra.mxu0 %v3930
    %v3932 = vand.u32 %v3039, 4294901760
    %v3933 = vsub.f32 %v3039, %v3932
    %3934 = vmatpush.msra.mxu0 %v3933
    %v3935 = vand.u32 %v3038, 4294901760
    %v3936 = vsub.f32 %v3038, %v3935
    %3937 = vmatpush.msra.mxu0 %v3936
    %v3938 = vand.u32 %v3037, 4294901760
    %v3939 = vsub.f32 %v3037, %v3938
    %3940 = vmatpush.msra.mxu0 %v3939
    %v3941 = vand.u32 %v3036, 4294901760
    %v3942 = vsub.f32 %v3036, %v3941
    %3943 = vmatpush.msra.mxu0 %v3942
    %v3944 = vand.u32 %v3002, 4294901760
    %v3945 = vsub.f32 %v3002, %v3944
    %3946 = vmatmul.f32.gmra.mxu0 %v3945
    %v3947 = vpop.f32.mrf.mxu0
    %v3948 = vadd.f32 %v3894, %v3947
    %3949 = vdwg.mxu0
    %v3950 = vand.u32 %v3051, 4294901760
    %3951 = vmatpush.msra.mxu0 %v3950
    %v3952 = vand.u32 %v3050, 4294901760
    %3953 = vmatpush.msra.mxu0 %v3952
    %v3954 = vand.u32 %v3049, 4294901760
    %3955 = vmatpush.msra.mxu0 %v3954
    %v3956 = vand.u32 %v3048, 4294901760
    %3957 = vmatpush.msra.mxu0 %v3956
    %v3958 = vand.u32 %v3047, 4294901760
    %3959 = vmatpush.msra.mxu0 %v3958
    %v3960 = vand.u32 %v3046, 4294901760
    %3961 = vmatpush.msra.mxu0 %v3960
    %v3962 = vand.u32 %v3045, 4294901760
    %3963 = vmatpush.msra.mxu0 %v3962
    %v3964 = vand.u32 %v3044, 4294901760
    %3965 = vmatpush.msra.mxu0 %v3964
    %v3966 = vand.u32 %v3043, 4294901760
    %3967 = vmatpush.msra.mxu0 %v3966
    %v3968 = vand.u32 %v3042, 4294901760
    %3969 = vmatpush.msra.mxu0 %v3968
    %v3970 = vand.u32 %v3041, 4294901760
    %3971 = vmatpush.msra.mxu0 %v3970
    %v3972 = vand.u32 %v3040, 4294901760
    %3973 = vmatpush.msra.mxu0 %v3972
    %v3974 = vand.u32 %v3039, 4294901760
    %3975 = vmatpush.msra.mxu0 %v3974
    %v3976 = vand.u32 %v3038, 4294901760
    %3977 = vmatpush.msra.mxu0 %v3976
    %v3978 = vand.u32 %v3037, 4294901760
    %3979 = vmatpush.msra.mxu0 %v3978
    %v3980 = vand.u32 %v3036, 4294901760
    %3981 = vmatpush.msra.mxu0 %v3980
    %v3982 = vand.u32 %v3002, 4294901760
    %v3983 = vsub.f32 %v3002, %v3982
    %v3984 = vand.u32 %v3983, 4294901760
    %3985 = vmatmul.f32.gmra.mxu0 %v3984
    %v3986 = vpop.f32.mrf.mxu0
    %v3987 = vadd.f32 %v3948, %v3986
    %3988 = vdwg.mxu0
    %v3989 = vand.u32 %v3051, 4294901760
    %v3990 = vsub.f32 %v3051, %v3989
    %v3991 = vand.u32 %v3990, 4294901760
    %3992 = vmatpush.msra.mxu0 %v3991
    %v3993 = vand.u32 %v3050, 4294901760
    %v3994 = vsub.f32 %v3050, %v3993
    %v3995 = vand.u32 %v3994, 4294901760
    %3996 = vmatpush.msra.mxu0 %v3995
    %v3997 = vand.u32 %v3049, 4294901760
    %v3998 = vsub.f32 %v3049, %v3997
    %v3999 = vand.u32 %v3998, 4294901760
    %4000 = vmatpush.msra.mxu0 %v3999
    %v4001 = vand.u32 %v3048, 4294901760
    %v4002 = vsub.f32 %v3048, %v4001
    %v4003 = vand.u32 %v4002, 4294901760
    %4004 = vmatpush.msra.mxu0 %v4003
    %v4005 = vand.u32 %v3047, 4294901760
    %v4006 = vsub.f32 %v3047, %v4005
    %v4007 = vand.u32 %v4006, 4294901760
    %4008 = vmatpush.msra.mxu0 %v4007
    %v4009 = vand.u32 %v3046, 4294901760
    %v4010 = vsub.f32 %v3046, %v4009
    %v4011 = vand.u32 %v4010, 4294901760
    %4012 = vmatpush.msra.mxu0 %v4011
    %v4013 = vand.u32 %v3045, 4294901760
    %v4014 = vsub.f32 %v3045, %v4013
    %v4015 = vand.u32 %v4014, 4294901760
    %4016 = vmatpush.msra.mxu0 %v4015
    %v4017 = vand.u32 %v3044, 4294901760
    %v4018 = vsub.f32 %v3044, %v4017
    %v4019 = vand.u32 %v4018, 4294901760
    %4020 = vmatpush.msra.mxu0 %v4019
    %v4021 = vand.u32 %v3043, 4294901760
    %v4022 = vsub.f32 %v3043, %v4021
    %v4023 = vand.u32 %v4022, 4294901760
    %4024 = vmatpush.msra.mxu0 %v4023
    %v4025 = vand.u32 %v3042, 4294901760
    %v4026 = vsub.f32 %v3042, %v4025
    %v4027 = vand.u32 %v4026, 4294901760
    %4028 = vmatpush.msra.mxu0 %v4027
    %v4029 = vand.u32 %v3041, 4294901760
    %v4030 = vsub.f32 %v3041, %v4029
    %v4031 = vand.u32 %v4030, 4294901760
    %4032 = vmatpush.msra.mxu0 %v4031
    %v4033 = vand.u32 %v3040, 4294901760
    %v4034 = vsub.f32 %v3040, %v4033
    %v4035 = vand.u32 %v4034, 4294901760
    %4036 = vmatpush.msra.mxu0 %v4035
    %v4037 = vand.u32 %v3039, 4294901760
    %v4038 = vsub.f32 %v3039, %v4037
    %v4039 = vand.u32 %v4038, 4294901760
    %4040 = vmatpush.msra.mxu0 %v4039
    %v4041 = vand.u32 %v3038, 4294901760
    %v4042 = vsub.f32 %v3038, %v4041
    %v4043 = vand.u32 %v4042, 4294901760
    %4044 = vmatpush.msra.mxu0 %v4043
    %v4045 = vand.u32 %v3037, 4294901760
    %v4046 = vsub.f32 %v3037, %v4045
    %v4047 = vand.u32 %v4046, 4294901760
    %4048 = vmatpush.msra.mxu0 %v4047
    %v4049 = vand.u32 %v3036, 4294901760
    %v4050 = vsub.f32 %v3036, %v4049
    %v4051 = vand.u32 %v4050, 4294901760
    %4052 = vmatpush.msra.mxu0 %v4051
    %v4053 = vand.u32 %v3002, 4294901760
    %4054 = vmatmul.f32.gmra.mxu0 %v4053
    %v4055 = vpop.f32.mrf.mxu0
    %v4056 = vadd.f32 %v3987, %v4055
    %4057 = vdwg.mxu0
    %v4058 = vand.u32 %v3051, 4294901760
    %4059 = vmatpush.msra.mxu0 %v4058
    %v4060 = vand.u32 %v3050, 4294901760
    %4061 = vmatpush.msra.mxu0 %v4060
    %v4062 = vand.u32 %v3049, 4294901760
    %4063 = vmatpush.msra.mxu0 %v4062
    %v4064 = vand.u32 %v3048, 4294901760
    %4065 = vmatpush.msra.mxu0 %v4064
    %v4066 = vand.u32 %v3047, 4294901760
    %4067 = vmatpush.msra.mxu0 %v4066
    %v4068 = vand.u32 %v3046, 4294901760
    %4069 = vmatpush.msra.mxu0 %v4068
    %v4070 = vand.u32 %v3045, 4294901760
    %4071 = vmatpush.msra.mxu0 %v4070
    %v4072 = vand.u32 %v3044, 4294901760
    %4073 = vmatpush.msra.mxu0 %v4072
    %v4074 = vand.u32 %v3043, 4294901760
    %4075 = vmatpush.msra.mxu0 %v4074
    %v4076 = vand.u32 %v3042, 4294901760
    %4077 = vmatpush.msra.mxu0 %v4076
    %v4078 = vand.u32 %v3041, 4294901760
    %4079 = vmatpush.msra.mxu0 %v4078
    %v4080 = vand.u32 %v3040, 4294901760
    %4081 = vmatpush.msra.mxu0 %v4080
    %v4082 = vand.u32 %v3039, 4294901760
    %4083 = vmatpush.msra.mxu0 %v4082
    %v4084 = vand.u32 %v3038, 4294901760
    %4085 = vmatpush.msra.mxu0 %v4084
    %v4086 = vand.u32 %v3037, 4294901760
    %4087 = vmatpush.msra.mxu0 %v4086
    %v4088 = vand.u32 %v3036, 4294901760
    %4089 = vmatpush.msra.mxu0 %v4088
    %v4090 = vand.u32 %v3002, 4294901760
    %4091 = vmatmul.f32.gmra.mxu0 %v4090
    %v4092 = vpop.f32.mrf.mxu0
    %v4093 = vadd.f32 %v4056, %v4092
    %4094 = vdwg.mxu0
    %v4095 = vand.u32 %v3067, 4294901760
    %4096 = vmatpush.msra.mxu0 %v4095
    %v4097 = vand.u32 %v3066, 4294901760
    %4098 = vmatpush.msra.mxu0 %v4097
    %v4099 = vand.u32 %v3065, 4294901760
    %4100 = vmatpush.msra.mxu0 %v4099
    %v4101 = vand.u32 %v3064, 4294901760
    %4102 = vmatpush.msra.mxu0 %v4101
    %v4103 = vand.u32 %v3063, 4294901760
    %4104 = vmatpush.msra.mxu0 %v4103
    %v4105 = vand.u32 %v3062, 4294901760
    %4106 = vmatpush.msra.mxu0 %v4105
    %v4107 = vand.u32 %v3061, 4294901760
    %4108 = vmatpush.msra.mxu0 %v4107
    %v4109 = vand.u32 %v3060, 4294901760
    %4110 = vmatpush.msra.mxu0 %v4109
    %v4111 = vand.u32 %v3059, 4294901760
    %4112 = vmatpush.msra.mxu0 %v4111
    %v4113 = vand.u32 %v3058, 4294901760
    %4114 = vmatpush.msra.mxu0 %v4113
    %v4115 = vand.u32 %v3057, 4294901760
    %4116 = vmatpush.msra.mxu0 %v4115
    %v4117 = vand.u32 %v3056, 4294901760
    %4118 = vmatpush.msra.mxu0 %v4117
    %v4119 = vand.u32 %v3055, 4294901760
    %4120 = vmatpush.msra.mxu0 %v4119
    %v4121 = vand.u32 %v3054, 4294901760
    %4122 = vmatpush.msra.mxu0 %v4121
    %v4123 = vand.u32 %v3053, 4294901760
    %4124 = vmatpush.msra.mxu0 %v4123
    %v4125 = vand.u32 %v3052, 4294901760
    %4126 = vmatpush.msra.mxu0 %v4125
    %v4127 = vand.u32 %v3003, 4294901760
    %v4128 = vsub.f32 %v3003, %v4127
    %v4129 = vand.u32 %v4128, 4294901760
    %v4130 = vsub.f32 %v4128, %v4129
    %v4131 = vand.u32 %v4130, 4294901760
    %4132 = vmatmul.f32.gmra.mxu0 %v4131
    %v4133 = vpop.f32.mrf.mxu0
    %v4134 = vadd.f32 %v4093, %v4133
    %4135 = vdwg.mxu0
    %v4136 = vand.u32 %v3067, 4294901760
    %v4137 = vsub.f32 %v3067, %v4136
    %v4138 = vand.u32 %v4137, 4294901760
    %v4139 = vsub.f32 %v4137, %v4138
    %v4140 = vand.u32 %v4139, 4294901760
    %4141 = vmatpush.msra.mxu0 %v4140
    %v4142 = vand.u32 %v3066, 4294901760
    %v4143 = vsub.f32 %v3066, %v4142
    %v4144 = vand.u32 %v4143, 4294901760
    %v4145 = vsub.f32 %v4143, %v4144
    %v4146 = vand.u32 %v4145, 4294901760
    %4147 = vmatpush.msra.mxu0 %v4146
    %v4148 = vand.u32 %v3065, 4294901760
    %v4149 = vsub.f32 %v3065, %v4148
    %v4150 = vand.u32 %v4149, 4294901760
    %v4151 = vsub.f32 %v4149, %v4150
    %v4152 = vand.u32 %v4151, 4294901760
    %4153 = vmatpush.msra.mxu0 %v4152
    %v4154 = vand.u32 %v3064, 4294901760
    %v4155 = vsub.f32 %v3064, %v4154
    %v4156 = vand.u32 %v4155, 4294901760
    %v4157 = vsub.f32 %v4155, %v4156
    %v4158 = vand.u32 %v4157, 4294901760
    %4159 = vmatpush.msra.mxu0 %v4158
    %v4160 = vand.u32 %v3063, 4294901760
    %v4161 = vsub.f32 %v3063, %v4160
    %v4162 = vand.u32 %v4161, 4294901760
    %v4163 = vsub.f32 %v4161, %v4162
    %v4164 = vand.u32 %v4163, 4294901760
    %4165 = vmatpush.msra.mxu0 %v4164
    %v4166 = vand.u32 %v3062, 4294901760
    %v4167 = vsub.f32 %v3062, %v4166
    %v4168 = vand.u32 %v4167, 4294901760
    %v4169 = vsub.f32 %v4167, %v4168
    %v4170 = vand.u32 %v4169, 4294901760
    %4171 = vmatpush.msra.mxu0 %v4170
    %v4172 = vand.u32 %v3061, 4294901760
    %v4173 = vsub.f32 %v3061, %v4172
    %v4174 = vand.u32 %v4173, 4294901760
    %v4175 = vsub.f32 %v4173, %v4174
    %v4176 = vand.u32 %v4175, 4294901760
    %4177 = vmatpush.msra.mxu0 %v4176
    %v4178 = vand.u32 %v3060, 4294901760
    %v4179 = vsub.f32 %v3060, %v4178
    %v4180 = vand.u32 %v4179, 4294901760
    %v4181 = vsub.f32 %v4179, %v4180
    %v4182 = vand.u32 %v4181, 4294901760
    %4183 = vmatpush.msra.mxu0 %v4182
    %v4184 = vand.u32 %v3059, 4294901760
    %v4185 = vsub.f32 %v3059, %v4184
    %v4186 = vand.u32 %v4185, 4294901760
    %v4187 = vsub.f32 %v4185, %v4186
    %v4188 = vand.u32 %v4187, 4294901760
    %4189 = vmatpush.msra.mxu0 %v4188
    %v4190 = vand.u32 %v3058, 4294901760
    %v4191 = vsub.f32 %v3058, %v4190
    %v4192 = vand.u32 %v4191, 4294901760
    %v4193 = vsub.f32 %v4191, %v4192
    %v4194 = vand.u32 %v4193, 4294901760
    %4195 = vmatpush.msra.mxu0 %v4194
    %v4196 = vand.u32 %v3057, 4294901760
    %v4197 = vsub.f32 %v3057, %v4196
    %v4198 = vand.u32 %v4197, 4294901760
    %v4199 = vsub.f32 %v4197, %v4198
    %v4200 = vand.u32 %v4199, 4294901760
    %4201 = vmatpush.msra.mxu0 %v4200
    %v4202 = vand.u32 %v3056, 4294901760
    %v4203 = vsub.f32 %v3056, %v4202
    %v4204 = vand.u32 %v4203, 4294901760
    %v4205 = vsub.f32 %v4203, %v4204
    %v4206 = vand.u32 %v4205, 4294901760
    %4207 = vmatpush.msra.mxu0 %v4206
    %v4208 = vand.u32 %v3055, 4294901760
    %v4209 = vsub.f32 %v3055, %v4208
    %v4210 = vand.u32 %v4209, 4294901760
    %v4211 = vsub.f32 %v4209, %v4210
    %v4212 = vand.u32 %v4211, 4294901760
    %4213 = vmatpush.msra.mxu0 %v4212
    %v4214 = vand.u32 %v3054, 4294901760
    %v4215 = vsub.f32 %v3054, %v4214
    %v4216 = vand.u32 %v4215, 4294901760
    %v4217 = vsub.f32 %v4215, %v4216
    %v4218 = vand.u32 %v4217, 4294901760
    %4219 = vmatpush.msra.mxu0 %v4218
    %v4220 = vand.u32 %v3053, 4294901760
    %v4221 = vsub.f32 %v3053, %v4220
    %v4222 = vand.u32 %v4221, 4294901760
    %v4223 = vsub.f32 %v4221, %v4222
    %v4224 = vand.u32 %v4223, 4294901760
    %4225 = vmatpush.msra.mxu0 %v4224
    %v4226 = vand.u32 %v3052, 4294901760
    %v4227 = vsub.f32 %v3052, %v4226
    %v4228 = vand.u32 %v4227, 4294901760
    %v4229 = vsub.f32 %v4227, %v4228
    %v4230 = vand.u32 %v4229, 4294901760
    %4231 = vmatpush.msra.mxu0 %v4230
    %v4232 = vand.u32 %v3003, 4294901760
    %4233 = vmatmul.f32.gmra.mxu0 %v4232
    %v4234 = vpop.f32.mrf.mxu0
    %v4235 = vadd.f32 %v4134, %v4234
    %4236 = vdwg.mxu0
    %v4237 = vand.u32 %v3067, 4294901760
    %v4238 = vsub.f32 %v3067, %v4237
    %4239 = vmatpush.msra.mxu0 %v4238
    %v4240 = vand.u32 %v3066, 4294901760
    %v4241 = vsub.f32 %v3066, %v4240
    %4242 = vmatpush.msra.mxu0 %v4241
    %v4243 = vand.u32 %v3065, 4294901760
    %v4244 = vsub.f32 %v3065, %v4243
    %4245 = vmatpush.msra.mxu0 %v4244
    %v4246 = vand.u32 %v3064, 4294901760
    %v4247 = vsub.f32 %v3064, %v4246
    %4248 = vmatpush.msra.mxu0 %v4247
    %v4249 = vand.u32 %v3063, 4294901760
    %v4250 = vsub.f32 %v3063, %v4249
    %4251 = vmatpush.msra.mxu0 %v4250
    %v4252 = vand.u32 %v3062, 4294901760
    %v4253 = vsub.f32 %v3062, %v4252
    %4254 = vmatpush.msra.mxu0 %v4253
    %v4255 = vand.u32 %v3061, 4294901760
    %v4256 = vsub.f32 %v3061, %v4255
    %4257 = vmatpush.msra.mxu0 %v4256
    %v4258 = vand.u32 %v3060, 4294901760
    %v4259 = vsub.f32 %v3060, %v4258
    %4260 = vmatpush.msra.mxu0 %v4259
    %v4261 = vand.u32 %v3059, 4294901760
    %v4262 = vsub.f32 %v3059, %v4261
    %4263 = vmatpush.msra.mxu0 %v4262
    %v4264 = vand.u32 %v3058, 4294901760
    %v4265 = vsub.f32 %v3058, %v4264
    %4266 = vmatpush.msra.mxu0 %v4265
    %v4267 = vand.u32 %v3057, 4294901760
    %v4268 = vsub.f32 %v3057, %v4267
    %4269 = vmatpush.msra.mxu0 %v4268
    %v4270 = vand.u32 %v3056, 4294901760
    %v4271 = vsub.f32 %v3056, %v4270
    %4272 = vmatpush.msra.mxu0 %v4271
    %v4273 = vand.u32 %v3055, 4294901760
    %v4274 = vsub.f32 %v3055, %v4273
    %4275 = vmatpush.msra.mxu0 %v4274
    %v4276 = vand.u32 %v3054, 4294901760
    %v4277 = vsub.f32 %v3054, %v4276
    %4278 = vmatpush.msra.mxu0 %v4277
    %v4279 = vand.u32 %v3053, 4294901760
    %v4280 = vsub.f32 %v3053, %v4279
    %4281 = vmatpush.msra.mxu0 %v4280
    %v4282 = vand.u32 %v3052, 4294901760
    %v4283 = vsub.f32 %v3052, %v4282
    %4284 = vmatpush.msra.mxu0 %v4283
    %v4285 = vand.u32 %v3003, 4294901760
    %v4286 = vsub.f32 %v3003, %v4285
    %4287 = vmatmul.f32.gmra.mxu0 %v4286
    %v4288 = vpop.f32.mrf.mxu0
    %v4289 = vadd.f32 %v4235, %v4288
    %4290 = vdwg.mxu0
    %v4291 = vand.u32 %v3067, 4294901760
    %4292 = vmatpush.msra.mxu0 %v4291
    %v4293 = vand.u32 %v3066, 4294901760
    %4294 = vmatpush.msra.mxu0 %v4293
    %v4295 = vand.u32 %v3065, 4294901760
    %4296 = vmatpush.msra.mxu0 %v4295
    %v4297 = vand.u32 %v3064, 4294901760
    %4298 = vmatpush.msra.mxu0 %v4297
    %v4299 = vand.u32 %v3063, 4294901760
    %4300 = vmatpush.msra.mxu0 %v4299
    %v4301 = vand.u32 %v3062, 4294901760
    %4302 = vmatpush.msra.mxu0 %v4301
    %v4303 = vand.u32 %v3061, 4294901760
    %4304 = vmatpush.msra.mxu0 %v4303
    %v4305 = vand.u32 %v3060, 4294901760
    %4306 = vmatpush.msra.mxu0 %v4305
    %v4307 = vand.u32 %v3059, 4294901760
    %4308 = vmatpush.msra.mxu0 %v4307
    %v4309 = vand.u32 %v3058, 4294901760
    %4310 = vmatpush.msra.mxu0 %v4309
    %v4311 = vand.u32 %v3057, 4294901760
    %4312 = vmatpush.msra.mxu0 %v4311
    %v4313 = vand.u32 %v3056, 4294901760
    %4314 = vmatpush.msra.mxu0 %v4313
    %v4315 = vand.u32 %v3055, 4294901760
    %4316 = vmatpush.msra.mxu0 %v4315
    %v4317 = vand.u32 %v3054, 4294901760
    %4318 = vmatpush.msra.mxu0 %v4317
    %v4319 = vand.u32 %v3053, 4294901760
    %4320 = vmatpush.msra.mxu0 %v4319
    %v4321 = vand.u32 %v3052, 4294901760
    %4322 = vmatpush.msra.mxu0 %v4321
    %v4323 = vand.u32 %v3003, 4294901760
    %v4324 = vsub.f32 %v3003, %v4323
    %v4325 = vand.u32 %v4324, 4294901760
    %4326 = vmatmul.f32.gmra.mxu0 %v4325
    %v4327 = vpop.f32.mrf.mxu0
    %v4328 = vadd.f32 %v4289, %v4327
    %4329 = vdwg.mxu0
    %v4330 = vand.u32 %v3067, 4294901760
    %v4331 = vsub.f32 %v3067, %v4330
    %v4332 = vand.u32 %v4331, 4294901760
    %4333 = vmatpush.msra.mxu0 %v4332
    %v4334 = vand.u32 %v3066, 4294901760
    %v4335 = vsub.f32 %v3066, %v4334
    %v4336 = vand.u32 %v4335, 4294901760
    %4337 = vmatpush.msra.mxu0 %v4336
    %v4338 = vand.u32 %v3065, 4294901760
    %v4339 = vsub.f32 %v3065, %v4338
    %v4340 = vand.u32 %v4339, 4294901760
    %4341 = vmatpush.msra.mxu0 %v4340
    %v4342 = vand.u32 %v3064, 4294901760
    %v4343 = vsub.f32 %v3064, %v4342
    %v4344 = vand.u32 %v4343, 4294901760
    %4345 = vmatpush.msra.mxu0 %v4344
    %v4346 = vand.u32 %v3063, 4294901760
    %v4347 = vsub.f32 %v3063, %v4346
    %v4348 = vand.u32 %v4347, 4294901760
    %4349 = vmatpush.msra.mxu0 %v4348
    %v4350 = vand.u32 %v3062, 4294901760
    %v4351 = vsub.f32 %v3062, %v4350
    %v4352 = vand.u32 %v4351, 4294901760
    %4353 = vmatpush.msra.mxu0 %v4352
    %v4354 = vand.u32 %v3061, 4294901760
    %v4355 = vsub.f32 %v3061, %v4354
    %v4356 = vand.u32 %v4355, 4294901760
    %4357 = vmatpush.msra.mxu0 %v4356
    %v4358 = vand.u32 %v3060, 4294901760
    %v4359 = vsub.f32 %v3060, %v4358
    %v4360 = vand.u32 %v4359, 4294901760
    %4361 = vmatpush.msra.mxu0 %v4360
    %v4362 = vand.u32 %v3059, 4294901760
    %v4363 = vsub.f32 %v3059, %v4362
    %v4364 = vand.u32 %v4363, 4294901760
    %4365 = vmatpush.msra.mxu0 %v4364
    %v4366 = vand.u32 %v3058, 4294901760
    %v4367 = vsub.f32 %v3058, %v4366
    %v4368 = vand.u32 %v4367, 4294901760
    %4369 = vmatpush.msra.mxu0 %v4368
    %v4370 = vand.u32 %v3057, 4294901760
    %v4371 = vsub.f32 %v3057, %v4370
    %v4372 = vand.u32 %v4371, 4294901760
    %4373 = vmatpush.msra.mxu0 %v4372
    %v4374 = vand.u32 %v3056, 4294901760
    %v4375 = vsub.f32 %v3056, %v4374
    %v4376 = vand.u32 %v4375, 4294901760
    %4377 = vmatpush.msra.mxu0 %v4376
    %v4378 = vand.u32 %v3055, 4294901760
    %v4379 = vsub.f32 %v3055, %v4378
    %v4380 = vand.u32 %v4379, 4294901760
    %4381 = vmatpush.msra.mxu0 %v4380
    %v4382 = vand.u32 %v3054, 4294901760
    %v4383 = vsub.f32 %v3054, %v4382
    %v4384 = vand.u32 %v4383, 4294901760
    %4385 = vmatpush.msra.mxu0 %v4384
    %v4386 = vand.u32 %v3053, 4294901760
    %v4387 = vsub.f32 %v3053, %v4386
    %v4388 = vand.u32 %v4387, 4294901760
    %4389 = vmatpush.msra.mxu0 %v4388
    %v4390 = vand.u32 %v3052, 4294901760
    %v4391 = vsub.f32 %v3052, %v4390
    %v4392 = vand.u32 %v4391, 4294901760
    %4393 = vmatpush.msra.mxu0 %v4392
    %v4394 = vand.u32 %v3003, 4294901760
    %4395 = vmatmul.f32.gmra.mxu0 %v4394
    %v4396 = vpop.f32.mrf.mxu0
    %v4397 = vadd.f32 %v4328, %v4396
    %4398 = vdwg.mxu0
    %v4399 = vand.u32 %v3067, 4294901760
    %4400 = vmatpush.msra.mxu0 %v4399
    %v4401 = vand.u32 %v3066, 4294901760
    %4402 = vmatpush.msra.mxu0 %v4401
    %v4403 = vand.u32 %v3065, 4294901760
    %4404 = vmatpush.msra.mxu0 %v4403
    %v4405 = vand.u32 %v3064, 4294901760
    %4406 = vmatpush.msra.mxu0 %v4405
    %v4407 = vand.u32 %v3063, 4294901760
    %4408 = vmatpush.msra.mxu0 %v4407
    %v4409 = vand.u32 %v3062, 4294901760
    %4410 = vmatpush.msra.mxu0 %v4409
    %v4411 = vand.u32 %v3061, 4294901760
    %4412 = vmatpush.msra.mxu0 %v4411
    %v4413 = vand.u32 %v3060, 4294901760
    %4414 = vmatpush.msra.mxu0 %v4413
    %v4415 = vand.u32 %v3059, 4294901760
    %4416 = vmatpush.msra.mxu0 %v4415
    %v4417 = vand.u32 %v3058, 4294901760
    %4418 = vmatpush.msra.mxu0 %v4417
    %v4419 = vand.u32 %v3057, 4294901760
    %4420 = vmatpush.msra.mxu0 %v4419
    %v4421 = vand.u32 %v3056, 4294901760
    %4422 = vmatpush.msra.mxu0 %v4421
    %v4423 = vand.u32 %v3055, 4294901760
    %4424 = vmatpush.msra.mxu0 %v4423
    %v4425 = vand.u32 %v3054, 4294901760
    %4426 = vmatpush.msra.mxu0 %v4425
    %v4427 = vand.u32 %v3053, 4294901760
    %4428 = vmatpush.msra.mxu0 %v4427
    %v4429 = vand.u32 %v3052, 4294901760
    %4430 = vmatpush.msra.mxu0 %v4429
    %v4431 = vand.u32 %v3003, 4294901760
    %4432 = vmatmul.f32.gmra.mxu0 %v4431
    %v4433 = vpop.f32.mrf.mxu0
    %v4434 = vadd.f32 %v4397, %v4433
    %4435 = vdwg.mxu0
    %vm4436 = vcmask 130048
    %4437 = vst.msk [vmem:[#allocation13] sm:$0xff] %vm4436, %v4434
    // Predicated region
    $region58: #{tpu_custom_call.1} parent=1 // pred_check
      _
    $region59: #{tpu_custom_call.1} parent=1 // pred_check_branch
      %4439 = sbr.rel (0) target = $region61
    $region60: #{tpu_custom_call.1} parent=1 // pred_region
      %4441 = vsyncadd [#allocation5], 0
      %s4443 = sshll.u32 [#allocation13], 4
      %s4444 = int_to_ptr.vmem [resolvable:$true] %s4443
      %s4445 = sshll.u32 %s9, 4
      %s4446 = int_to_ptr.hbm [resolvable:$true] %s4445
      %4448 = dma.vmem_to_hbm [thread:$0]  %s4444, 128, %s4446, [#allocation5]
    $region61: #{tpu_custom_call.1} parent=1 // pred_fallthru
      _
    // Predicated region
    $region62: #{tpu_custom_call.1} parent=1 // pred_check
      _
    $region63: #{tpu_custom_call.1} parent=1 // pred_check_branch
      %4450 = sbr.rel (0) target = $region65
    $region64: #{tpu_custom_call.1} parent=1 // pred_region
      %4452 = dma.done [#allocation5], 128
    $region65: #{tpu_custom_call.1} parent=1 // pred_fallthru
      _
    %4453 = vsyncpa [#allocation4], 1
    %4454 = vsyncpa [#allocation5], 1
    %4455 = vsyncpa [#allocation6], 1
    %4456 = vsyncpa [#allocation8], 1
    %4457 = vsyncpa [#allocation11], 1

</llo_original>
